<compile_context>
chip_gen: v6e
topology: v6e:2x2x1
jax: 0.10.0
libtpu: 0.0.40
codegen_flags: <defaults>
</compile_context>

<pallas_src>
import functools

import jax
import jax.numpy as jnp
from jax import lax
from jax.experimental import pallas as pl
from jax.experimental.pallas import tpu as pltpu

_IN = 2
_H1 = 15
_H2 = 15


def _mlp_kernel(x_ref, w1_ref, b1_ref, w2_ref, b2_ref, w3_ref, b3_ref, o_ref):
    rows = o_ref.shape[0]            # R (multiple of 8): batch rows in this tile
    n_chunks = rows // 8

    # Hoist every scalar weight/bias read out of the batch loop (SMEM reads).
    w1 = [[w1_ref[j, k] for k in range(_IN)] for j in range(_H1)]
    b1 = [b1_ref[j] for j in range(_H1)]
    w2 = [[w2_ref[j, k] for k in range(_H1)] for j in range(_H2)]
    b2 = [b2_ref[j] for j in range(_H2)]
    w3 = [w3_ref[0, j] for j in range(_H2)]
    b3 = b3_ref[0]

    def chunk(c, carry):
        base = pl.multiple_of(c * 8, 8)
        x0 = x_ref[0, pl.ds(base, 8), :]          # (8, 128) dense batch vreg
        x1 = x_ref[1, pl.ds(base, 8), :]

        # fc1 + ReLU: 15 hidden units, one dense (8,128) vreg each (VPU only).
        h1 = [jnp.maximum(x0 * w1[j][0] + x1 * w1[j][1] + b1[j], 0.0)
              for j in range(_H1)]

        # fc2 + ReLU, fused with the fc3 accumulation (each h2_j dies at once).
        acc = None
        for j in range(_H2):
            s = h1[0] * w2[j][0]
            for k in range(1, _H1):
                s = s + h1[k] * w2[j][k]
            h2j = jnp.maximum(s + b2[j], 0.0)
            acc = h2j * w3[j] if acc is None else acc + h2j * w3[j]

        y = jnp.maximum(acc + b3, 0.0)            # fc3 + ReLU
        o_ref[pl.ds(base, 8), :] = y
        return carry

    lax.fori_loop(0, n_chunks, chunk, 0)


def _round_up(v, m):
    return ((v + m - 1) // m) * m


@functools.partial(jax.jit, static_argnames=("block_b",))
def ta130_fuel_nn(x, w1, b1, w2, b2, w3, b3, *, block_b=65536):
    """Forward pass of _TA130FuelNN.

    x:  (B, 2) float32
    w*: PyTorch layout (out_features, in_features); b*: (out_features,)
    returns (B, 1) float32
    """
    B = x.shape[0]

    # Batch tile: multiple of 1024 (8 sublanes x 128 lanes), no larger than
    # requested, and no larger than ~half the batch so both v7x TensorCores
    # get tiles once B is big enough.
    blk = max(1024, min(_round_up(block_b, 1024), _round_up(pl.cdiv(B, 2), 1024)))
    grid_n = pl.cdiv(B, blk)
    B_pad = grid_n * blk

    x32 = x.astype(jnp.float32)
    if B_pad != B:
        x32 = jnp.pad(x32, ((0, B_pad - B), (0, 0)))
    # Single input re-layout pass: feature-major, batch fully lane/sublane dense.
    x_t = x32.T.reshape(2, B_pad // 128, 128)

    rows_per_blk = blk // 128
    smem = pl.BlockSpec(memory_space=pltpu.MemorySpace.SMEM)

    out2d = pl.pallas_call(
        _mlp_kernel,
        out_shape=jax.ShapeDtypeStruct((B_pad // 128, 128), jnp.float32),
        grid_spec=pl.GridSpec(
            grid=(grid_n,),
            in_specs=[
                pl.BlockSpec((2, rows_per_blk, 128), lambda i: (0, i, 0)),  # x tile
                smem, smem,   # w1, b1
                smem, smem,   # w2, b2
                smem, smem,   # w3, b3
            ],
            out_specs=pl.BlockSpec((rows_per_blk, 128), lambda i: (i, 0)),
        ),
        compiler_params=pltpu.CompilerParams(
            dimension_semantics=("parallel",),          # megacore-shardable on v7x
            vmem_limit_bytes=32 * 1024 * 1024,
        ),
    )(x_t,
      w1.astype(jnp.float32), b1.astype(jnp.float32),
      w2.astype(jnp.float32), b2.astype(jnp.float32),
      w3.astype(jnp.float32), b3.astype(jnp.float32))

    # Dense output slab -> (B, 1): reshape is free, no transpose pass.
    return out2d.reshape(B_pad, 1)[:B]


def _init_linear(key, fan_in, fan_out):
    """PyTorch-style init: U(-1/sqrt(fan_in), 1/sqrt(fan_in)); weight (out, in)."""
    kw, kb = jax.random.split(key)
    bound = 1.0 / jnp.sqrt(jnp.float32(fan_in))
    w = jax.random.uniform(kw, (fan_out, fan_in), jnp.float32, -bound, bound)
    b = jax.random.uniform(kb, (fan_out,), jnp.float32, -bound, bound)
    return w, b


def _reference(x, w1, b1, w2, b2, w3, b3):
    hp = jax.lax.Precision.HIGHEST
    h = jnp.maximum(jnp.dot(x, w1.T, precision=hp) + b1, 0.0)
    h = jnp.maximum(jnp.dot(h, w2.T, precision=hp) + b2, 0.0)
    h = jnp.maximum(jnp.dot(h, w3.T, precision=hp) + b3, 0.0)
    return h


if __name__ == "__main__":
    key = jax.random.PRNGKey(0)
    kx1, kx2, k1, k2, k3 = jax.random.split(key, 5)

    w1, b1 = _init_linear(k1, 2, 15)    # fc1: Linear(2, 15)
    w2, b2 = _init_linear(k2, 15, 15)   # fc2: Linear(15, 15)
    w3, b3 = _init_linear(k3, 15, 1)    # fc3: Linear(15, 1)

    # Case 1: small, non-tile-multiple batch (single grid step, single chunk).
    B1 = 300
    x1 = jax.random.normal(kx1, (B1, 2), jnp.float32)
    out1 = jax.block_until_ready(ta130_fuel_nn(x1, w1, b1, w2, b2, w3, b3))
    ref1 = _reference(x1, w1, b1, w2, b2, w3, b3)
    assert out1.shape == (B1, 1)
    assert jnp.allclose(out1, ref1, atol=2e-5, rtol=2e-5), "mismatch vs reference (B=300)"

    # Case 2: multi-step grid + multi-chunk in-kernel loop + batch padding.
    B2 = 5000
    x2 = jax.random.normal(kx2, (B2, 2), jnp.float32)
    out2 = jax.block_until_ready(ta130_fuel_nn(x2, w1, b1, w2, b2, w3, b3))
    ref2 = _reference(x2, w1, b1, w2, b2, w3, b3)
    assert out2.shape == (B2, 1)
    assert jnp.allclose(out2, ref2, atol=2e-5, rtol=2e-5), "mismatch vs reference (B=5000)"

    print("KERNEL_OK")
</pallas_src>

<mosaic_0001>
module attributes {stable_mosaic.version = 11 : i64} {
  func.func @_mlp_kernel(%arg0: i32, %arg1: memref<2x8x128xf32, #tpu.memory_space<vmem>>, %arg2: memref<15x2xf32, #tpu.memory_space<smem>>, %arg3: memref<15xf32, #tpu.memory_space<smem>>, %arg4: memref<15x15xf32, #tpu.memory_space<smem>>, %arg5: memref<15xf32, #tpu.memory_space<smem>>, %arg6: memref<1x15xf32, #tpu.memory_space<smem>>, %arg7: memref<1xf32, #tpu.memory_space<smem>>, %arg8: memref<8x128xf32, #tpu.memory_space<vmem>>) attributes {dimension_semantics = [#tpu.dimension_semantics<parallel>], iteration_bounds = array<i64: 1>, scalar_prefetch = 0 : i64, scratch_operands = 0 : i64, tpu.core_type = #tpu.core_type<tc>, window_params = [{transform_indices = @transform_0, window_bounds = array<i64: 2, 8, 128>}, {transform_indices = @transform_1, window_bounds = array<i64: 15, 2>}, {transform_indices = @transform_2, window_bounds = array<i64: 15>}, {transform_indices = @transform_3, window_bounds = array<i64: 15, 15>}, {transform_indices = @transform_4, window_bounds = array<i64: 15>}, {transform_indices = @transform_5, window_bounds = array<i64: 1, 15>}, {transform_indices = @transform_6, window_bounds = array<i64: 1>}, {transform_indices = @transform_7, window_bounds = array<i64: 8, 128>}]} {
    %c0 = arith.constant 0 : index
    %c0_0 = arith.constant 0 : index
    %0 = memref.load %arg2[%c0, %c0_0] : memref<15x2xf32, #tpu.memory_space<smem>>
    %c0_1 = arith.constant 0 : index
    %c1 = arith.constant 1 : index
    %1 = memref.load %arg2[%c0_1, %c1] : memref<15x2xf32, #tpu.memory_space<smem>>
    %c1_2 = arith.constant 1 : index
    %c0_3 = arith.constant 0 : index
    %2 = memref.load %arg2[%c1_2, %c0_3] : memref<15x2xf32, #tpu.memory_space<smem>>
    %c1_4 = arith.constant 1 : index
    %c1_5 = arith.constant 1 : index
    %3 = memref.load %arg2[%c1_4, %c1_5] : memref<15x2xf32, #tpu.memory_space<smem>>
    %c2 = arith.constant 2 : index
    %c0_6 = arith.constant 0 : index
    %4 = memref.load %arg2[%c2, %c0_6] : memref<15x2xf32, #tpu.memory_space<smem>>
    %c2_7 = arith.constant 2 : index
    %c1_8 = arith.constant 1 : index
    %5 = memref.load %arg2[%c2_7, %c1_8] : memref<15x2xf32, #tpu.memory_space<smem>>
    %c3 = arith.constant 3 : index
    %c0_9 = arith.constant 0 : index
    %6 = memref.load %arg2[%c3, %c0_9] : memref<15x2xf32, #tpu.memory_space<smem>>
    %c3_10 = arith.constant 3 : index
    %c1_11 = arith.constant 1 : index
    %7 = memref.load %arg2[%c3_10, %c1_11] : memref<15x2xf32, #tpu.memory_space<smem>>
    %c4 = arith.constant 4 : index
    %c0_12 = arith.constant 0 : index
    %8 = memref.load %arg2[%c4, %c0_12] : memref<15x2xf32, #tpu.memory_space<smem>>
    %c4_13 = arith.constant 4 : index
    %c1_14 = arith.constant 1 : index
    %9 = memref.load %arg2[%c4_13, %c1_14] : memref<15x2xf32, #tpu.memory_space<smem>>
    %c5 = arith.constant 5 : index
    %c0_15 = arith.constant 0 : index
    %10 = memref.load %arg2[%c5, %c0_15] : memref<15x2xf32, #tpu.memory_space<smem>>
    %c5_16 = arith.constant 5 : index
    %c1_17 = arith.constant 1 : index
    %11 = memref.load %arg2[%c5_16, %c1_17] : memref<15x2xf32, #tpu.memory_space<smem>>
    %c6 = arith.constant 6 : index
    %c0_18 = arith.constant 0 : index
    %12 = memref.load %arg2[%c6, %c0_18] : memref<15x2xf32, #tpu.memory_space<smem>>
    %c6_19 = arith.constant 6 : index
    %c1_20 = arith.constant 1 : index
    %13 = memref.load %arg2[%c6_19, %c1_20] : memref<15x2xf32, #tpu.memory_space<smem>>
    %c7 = arith.constant 7 : index
    %c0_21 = arith.constant 0 : index
    %14 = memref.load %arg2[%c7, %c0_21] : memref<15x2xf32, #tpu.memory_space<smem>>
    %c7_22 = arith.constant 7 : index
    %c1_23 = arith.constant 1 : index
    %15 = memref.load %arg2[%c7_22, %c1_23] : memref<15x2xf32, #tpu.memory_space<smem>>
    %c8 = arith.constant 8 : index
    %c0_24 = arith.constant 0 : index
    %16 = memref.load %arg2[%c8, %c0_24] : memref<15x2xf32, #tpu.memory_space<smem>>
    %c8_25 = arith.constant 8 : index
    %c1_26 = arith.constant 1 : index
    %17 = memref.load %arg2[%c8_25, %c1_26] : memref<15x2xf32, #tpu.memory_space<smem>>
    %c9 = arith.constant 9 : index
    %c0_27 = arith.constant 0 : index
    %18 = memref.load %arg2[%c9, %c0_27] : memref<15x2xf32, #tpu.memory_space<smem>>
    %c9_28 = arith.constant 9 : index
    %c1_29 = arith.constant 1 : index
    %19 = memref.load %arg2[%c9_28, %c1_29] : memref<15x2xf32, #tpu.memory_space<smem>>
    %c10 = arith.constant 10 : index
    %c0_30 = arith.constant 0 : index
    %20 = memref.load %arg2[%c10, %c0_30] : memref<15x2xf32, #tpu.memory_space<smem>>
    %c10_31 = arith.constant 10 : index
    %c1_32 = arith.constant 1 : index
    %21 = memref.load %arg2[%c10_31, %c1_32] : memref<15x2xf32, #tpu.memory_space<smem>>
    %c11 = arith.constant 11 : index
    %c0_33 = arith.constant 0 : index
    %22 = memref.load %arg2[%c11, %c0_33] : memref<15x2xf32, #tpu.memory_space<smem>>
    %c11_34 = arith.constant 11 : index
    %c1_35 = arith.constant 1 : index
    %23 = memref.load %arg2[%c11_34, %c1_35] : memref<15x2xf32, #tpu.memory_space<smem>>
    %c12 = arith.constant 12 : index
    %c0_36 = arith.constant 0 : index
    %24 = memref.load %arg2[%c12, %c0_36] : memref<15x2xf32, #tpu.memory_space<smem>>
    %c12_37 = arith.constant 12 : index
    %c1_38 = arith.constant 1 : index
    %25 = memref.load %arg2[%c12_37, %c1_38] : memref<15x2xf32, #tpu.memory_space<smem>>
    %c13 = arith.constant 13 : index
    %c0_39 = arith.constant 0 : index
    %26 = memref.load %arg2[%c13, %c0_39] : memref<15x2xf32, #tpu.memory_space<smem>>
    %c13_40 = arith.constant 13 : index
    %c1_41 = arith.constant 1 : index
    %27 = memref.load %arg2[%c13_40, %c1_41] : memref<15x2xf32, #tpu.memory_space<smem>>
    %c14 = arith.constant 14 : index
    %c0_42 = arith.constant 0 : index
    %28 = memref.load %arg2[%c14, %c0_42] : memref<15x2xf32, #tpu.memory_space<smem>>
    %c14_43 = arith.constant 14 : index
    %c1_44 = arith.constant 1 : index
    %29 = memref.load %arg2[%c14_43, %c1_44] : memref<15x2xf32, #tpu.memory_space<smem>>
    %c0_45 = arith.constant 0 : index
    %30 = memref.load %arg3[%c0_45] : memref<15xf32, #tpu.memory_space<smem>>
    %c1_46 = arith.constant 1 : index
    %31 = memref.load %arg3[%c1_46] : memref<15xf32, #tpu.memory_space<smem>>
    %c2_47 = arith.constant 2 : index
    %32 = memref.load %arg3[%c2_47] : memref<15xf32, #tpu.memory_space<smem>>
    %c3_48 = arith.constant 3 : index
    %33 = memref.load %arg3[%c3_48] : memref<15xf32, #tpu.memory_space<smem>>
    %c4_49 = arith.constant 4 : index
    %34 = memref.load %arg3[%c4_49] : memref<15xf32, #tpu.memory_space<smem>>
    %c5_50 = arith.constant 5 : index
    %35 = memref.load %arg3[%c5_50] : memref<15xf32, #tpu.memory_space<smem>>
    %c6_51 = arith.constant 6 : index
    %36 = memref.load %arg3[%c6_51] : memref<15xf32, #tpu.memory_space<smem>>
    %c7_52 = arith.constant 7 : index
    %37 = memref.load %arg3[%c7_52] : memref<15xf32, #tpu.memory_space<smem>>
    %c8_53 = arith.constant 8 : index
    %38 = memref.load %arg3[%c8_53] : memref<15xf32, #tpu.memory_space<smem>>
    %c9_54 = arith.constant 9 : index
    %39 = memref.load %arg3[%c9_54] : memref<15xf32, #tpu.memory_space<smem>>
    %c10_55 = arith.constant 10 : index
    %40 = memref.load %arg3[%c10_55] : memref<15xf32, #tpu.memory_space<smem>>
    %c11_56 = arith.constant 11 : index
    %41 = memref.load %arg3[%c11_56] : memref<15xf32, #tpu.memory_space<smem>>
    %c12_57 = arith.constant 12 : index
    %42 = memref.load %arg3[%c12_57] : memref<15xf32, #tpu.memory_space<smem>>
    %c13_58 = arith.constant 13 : index
    %43 = memref.load %arg3[%c13_58] : memref<15xf32, #tpu.memory_space<smem>>
    %c14_59 = arith.constant 14 : index
    %44 = memref.load %arg3[%c14_59] : memref<15xf32, #tpu.memory_space<smem>>
    %c0_60 = arith.constant 0 : index
    %c0_61 = arith.constant 0 : index
    %45 = memref.load %arg4[%c0_60, %c0_61] : memref<15x15xf32, #tpu.memory_space<smem>>
    %c0_62 = arith.constant 0 : index
    %c1_63 = arith.constant 1 : index
    %46 = memref.load %arg4[%c0_62, %c1_63] : memref<15x15xf32, #tpu.memory_space<smem>>
    %c0_64 = arith.constant 0 : index
    %c2_65 = arith.constant 2 : index
    %47 = memref.load %arg4[%c0_64, %c2_65] : memref<15x15xf32, #tpu.memory_space<smem>>
    %c0_66 = arith.constant 0 : index
    %c3_67 = arith.constant 3 : index
    %48 = memref.load %arg4[%c0_66, %c3_67] : memref<15x15xf32, #tpu.memory_space<smem>>
    %c0_68 = arith.constant 0 : index
    %c4_69 = arith.constant 4 : index
    %49 = memref.load %arg4[%c0_68, %c4_69] : memref<15x15xf32, #tpu.memory_space<smem>>
    %c0_70 = arith.constant 0 : index
    %c5_71 = arith.constant 5 : index
    %50 = memref.load %arg4[%c0_70, %c5_71] : memref<15x15xf32, #tpu.memory_space<smem>>
    %c0_72 = arith.constant 0 : index
    %c6_73 = arith.constant 6 : index
    %51 = memref.load %arg4[%c0_72, %c6_73] : memref<15x15xf32, #tpu.memory_space<smem>>
    %c0_74 = arith.constant 0 : index
    %c7_75 = arith.constant 7 : index
    %52 = memref.load %arg4[%c0_74, %c7_75] : memref<15x15xf32, #tpu.memory_space<smem>>
    %c0_76 = arith.constant 0 : index
    %c8_77 = arith.constant 8 : index
    %53 = memref.load %arg4[%c0_76, %c8_77] : memref<15x15xf32, #tpu.memory_space<smem>>
    %c0_78 = arith.constant 0 : index
    %c9_79 = arith.constant 9 : index
    %54 = memref.load %arg4[%c0_78, %c9_79] : memref<15x15xf32, #tpu.memory_space<smem>>
    %c0_80 = arith.constant 0 : index
    %c10_81 = arith.constant 10 : index
    %55 = memref.load %arg4[%c0_80, %c10_81] : memref<15x15xf32, #tpu.memory_space<smem>>
    %c0_82 = arith.constant 0 : index
    %c11_83 = arith.constant 11 : index
    %56 = memref.load %arg4[%c0_82, %c11_83] : memref<15x15xf32, #tpu.memory_space<smem>>
    %c0_84 = arith.constant 0 : index
    %c12_85 = arith.constant 12 : index
    %57 = memref.load %arg4[%c0_84, %c12_85] : memref<15x15xf32, #tpu.memory_space<smem>>
    %c0_86 = arith.constant 0 : index
    %c13_87 = arith.constant 13 : index
    %58 = memref.load %arg4[%c0_86, %c13_87] : memref<15x15xf32, #tpu.memory_space<smem>>
    %c0_88 = arith.constant 0 : index
    %c14_89 = arith.constant 14 : index
    %59 = memref.load %arg4[%c0_88, %c14_89] : memref<15x15xf32, #tpu.memory_space<smem>>
    %c1_90 = arith.constant 1 : index
    %c0_91 = arith.constant 0 : index
    %60 = memref.load %arg4[%c1_90, %c0_91] : memref<15x15xf32, #tpu.memory_space<smem>>
    %c1_92 = arith.constant 1 : index
    %c1_93 = arith.constant 1 : index
    %61 = memref.load %arg4[%c1_92, %c1_93] : memref<15x15xf32, #tpu.memory_space<smem>>
    %c1_94 = arith.constant 1 : index
    %c2_95 = arith.constant 2 : index
    %62 = memref.load %arg4[%c1_94, %c2_95] : memref<15x15xf32, #tpu.memory_space<smem>>
    %c1_96 = arith.constant 1 : index
    %c3_97 = arith.constant 3 : index
    %63 = memref.load %arg4[%c1_96, %c3_97] : memref<15x15xf32, #tpu.memory_space<smem>>
    %c1_98 = arith.constant 1 : index
    %c4_99 = arith.constant 4 : index
    %64 = memref.load %arg4[%c1_98, %c4_99] : memref<15x15xf32, #tpu.memory_space<smem>>
    %c1_100 = arith.constant 1 : index
    %c5_101 = arith.constant 5 : index
    %65 = memref.load %arg4[%c1_100, %c5_101] : memref<15x15xf32, #tpu.memory_space<smem>>
    %c1_102 = arith.constant 1 : index
    %c6_103 = arith.constant 6 : index
    %66 = memref.load %arg4[%c1_102, %c6_103] : memref<15x15xf32, #tpu.memory_space<smem>>
    %c1_104 = arith.constant 1 : index
    %c7_105 = arith.constant 7 : index
    %67 = memref.load %arg4[%c1_104, %c7_105] : memref<15x15xf32, #tpu.memory_space<smem>>
    %c1_106 = arith.constant 1 : index
    %c8_107 = arith.constant 8 : index
    %68 = memref.load %arg4[%c1_106, %c8_107] : memref<15x15xf32, #tpu.memory_space<smem>>
    %c1_108 = arith.constant 1 : index
    %c9_109 = arith.constant 9 : index
    %69 = memref.load %arg4[%c1_108, %c9_109] : memref<15x15xf32, #tpu.memory_space<smem>>
    %c1_110 = arith.constant 1 : index
    %c10_111 = arith.constant 10 : index
    %70 = memref.load %arg4[%c1_110, %c10_111] : memref<15x15xf32, #tpu.memory_space<smem>>
    %c1_112 = arith.constant 1 : index
    %c11_113 = arith.constant 11 : index
    %71 = memref.load %arg4[%c1_112, %c11_113] : memref<15x15xf32, #tpu.memory_space<smem>>
    %c1_114 = arith.constant 1 : index
    %c12_115 = arith.constant 12 : index
    %72 = memref.load %arg4[%c1_114, %c12_115] : memref<15x15xf32, #tpu.memory_space<smem>>
    %c1_116 = arith.constant 1 : index
    %c13_117 = arith.constant 13 : index
    %73 = memref.load %arg4[%c1_116, %c13_117] : memref<15x15xf32, #tpu.memory_space<smem>>
    %c1_118 = arith.constant 1 : index
    %c14_119 = arith.constant 14 : index
    %74 = memref.load %arg4[%c1_118, %c14_119] : memref<15x15xf32, #tpu.memory_space<smem>>
    %c2_120 = arith.constant 2 : index
    %c0_121 = arith.constant 0 : index
    %75 = memref.load %arg4[%c2_120, %c0_121] : memref<15x15xf32, #tpu.memory_space<smem>>
    %c2_122 = arith.constant 2 : index
    %c1_123 = arith.constant 1 : index
    %76 = memref.load %arg4[%c2_122, %c1_123] : memref<15x15xf32, #tpu.memory_space<smem>>
    %c2_124 = arith.constant 2 : index
    %c2_125 = arith.constant 2 : index
    %77 = memref.load %arg4[%c2_124, %c2_125] : memref<15x15xf32, #tpu.memory_space<smem>>
    %c2_126 = arith.constant 2 : index
    %c3_127 = arith.constant 3 : index
    %78 = memref.load %arg4[%c2_126, %c3_127] : memref<15x15xf32, #tpu.memory_space<smem>>
    %c2_128 = arith.constant 2 : index
    %c4_129 = arith.constant 4 : index
    %79 = memref.load %arg4[%c2_128, %c4_129] : memref<15x15xf32, #tpu.memory_space<smem>>
    %c2_130 = arith.constant 2 : index
    %c5_131 = arith.constant 5 : index
    %80 = memref.load %arg4[%c2_130, %c5_131] : memref<15x15xf32, #tpu.memory_space<smem>>
    %c2_132 = arith.constant 2 : index
    %c6_133 = arith.constant 6 : index
    %81 = memref.load %arg4[%c2_132, %c6_133] : memref<15x15xf32, #tpu.memory_space<smem>>
    %c2_134 = arith.constant 2 : index
    %c7_135 = arith.constant 7 : index
    %82 = memref.load %arg4[%c2_134, %c7_135] : memref<15x15xf32, #tpu.memory_space<smem>>
    %c2_136 = arith.constant 2 : index
    %c8_137 = arith.constant 8 : index
    %83 = memref.load %arg4[%c2_136, %c8_137] : memref<15x15xf32, #tpu.memory_space<smem>>
    %c2_138 = arith.constant 2 : index
    %c9_139 = arith.constant 9 : index
    %84 = memref.load %arg4[%c2_138, %c9_139] : memref<15x15xf32, #tpu.memory_space<smem>>
    %c2_140 = arith.constant 2 : index
    %c10_141 = arith.constant 10 : index
    %85 = memref.load %arg4[%c2_140, %c10_141] : memref<15x15xf32, #tpu.memory_space<smem>>
    %c2_142 = arith.constant 2 : index
    %c11_143 = arith.constant 11 : index
    %86 = memref.load %arg4[%c2_142, %c11_143] : memref<15x15xf32, #tpu.memory_space<smem>>
    %c2_144 = arith.constant 2 : index
    %c12_145 = arith.constant 12 : index
    %87 = memref.load %arg4[%c2_144, %c12_145] : memref<15x15xf32, #tpu.memory_space<smem>>
    %c2_146 = arith.constant 2 : index
    %c13_147 = arith.constant 13 : index
    %88 = memref.load %arg4[%c2_146, %c13_147] : memref<15x15xf32, #tpu.memory_space<smem>>
    %c2_148 = arith.constant 2 : index
    %c14_149 = arith.constant 14 : index
    %89 = memref.load %arg4[%c2_148, %c14_149] : memref<15x15xf32, #tpu.memory_space<smem>>
    %c3_150 = arith.constant 3 : index
    %c0_151 = arith.constant 0 : index
    %90 = memref.load %arg4[%c3_150, %c0_151] : memref<15x15xf32, #tpu.memory_space<smem>>
    %c3_152 = arith.constant 3 : index
    %c1_153 = arith.constant 1 : index
    %91 = memref.load %arg4[%c3_152, %c1_153] : memref<15x15xf32, #tpu.memory_space<smem>>
    %c3_154 = arith.constant 3 : index
    %c2_155 = arith.constant 2 : index
    %92 = memref.load %arg4[%c3_154, %c2_155] : memref<15x15xf32, #tpu.memory_space<smem>>
    %c3_156 = arith.constant 3 : index
    %c3_157 = arith.constant 3 : index
    %93 = memref.load %arg4[%c3_156, %c3_157] : memref<15x15xf32, #tpu.memory_space<smem>>
    %c3_158 = arith.constant 3 : index
    %c4_159 = arith.constant 4 : index
    %94 = memref.load %arg4[%c3_158, %c4_159] : memref<15x15xf32, #tpu.memory_space<smem>>
    %c3_160 = arith.constant 3 : index
    %c5_161 = arith.constant 5 : index
    %95 = memref.load %arg4[%c3_160, %c5_161] : memref<15x15xf32, #tpu.memory_space<smem>>
    %c3_162 = arith.constant 3 : index
    %c6_163 = arith.constant 6 : index
    %96 = memref.load %arg4[%c3_162, %c6_163] : memref<15x15xf32, #tpu.memory_space<smem>>
    %c3_164 = arith.constant 3 : index
    %c7_165 = arith.constant 7 : index
    %97 = memref.load %arg4[%c3_164, %c7_165] : memref<15x15xf32, #tpu.memory_space<smem>>
    %c3_166 = arith.constant 3 : index
    %c8_167 = arith.constant 8 : index
    %98 = memref.load %arg4[%c3_166, %c8_167] : memref<15x15xf32, #tpu.memory_space<smem>>
    %c3_168 = arith.constant 3 : index
    %c9_169 = arith.constant 9 : index
    %99 = memref.load %arg4[%c3_168, %c9_169] : memref<15x15xf32, #tpu.memory_space<smem>>
    %c3_170 = arith.constant 3 : index
    %c10_171 = arith.constant 10 : index
    %100 = memref.load %arg4[%c3_170, %c10_171] : memref<15x15xf32, #tpu.memory_space<smem>>
    %c3_172 = arith.constant 3 : index
    %c11_173 = arith.constant 11 : index
    %101 = memref.load %arg4[%c3_172, %c11_173] : memref<15x15xf32, #tpu.memory_space<smem>>
    %c3_174 = arith.constant 3 : index
    %c12_175 = arith.constant 12 : index
    %102 = memref.load %arg4[%c3_174, %c12_175] : memref<15x15xf32, #tpu.memory_space<smem>>
    %c3_176 = arith.constant 3 : index
    %c13_177 = arith.constant 13 : index
    %103 = memref.load %arg4[%c3_176, %c13_177] : memref<15x15xf32, #tpu.memory_space<smem>>
    %c3_178 = arith.constant 3 : index
    %c14_179 = arith.constant 14 : index
    %104 = memref.load %arg4[%c3_178, %c14_179] : memref<15x15xf32, #tpu.memory_space<smem>>
    %c4_180 = arith.constant 4 : index
    %c0_181 = arith.constant 0 : index
    %105 = memref.load %arg4[%c4_180, %c0_181] : memref<15x15xf32, #tpu.memory_space<smem>>
    %c4_182 = arith.constant 4 : index
    %c1_183 = arith.constant 1 : index
    %106 = memref.load %arg4[%c4_182, %c1_183] : memref<15x15xf32, #tpu.memory_space<smem>>
    %c4_184 = arith.constant 4 : index
    %c2_185 = arith.constant 2 : index
    %107 = memref.load %arg4[%c4_184, %c2_185] : memref<15x15xf32, #tpu.memory_space<smem>>
    %c4_186 = arith.constant 4 : index
    %c3_187 = arith.constant 3 : index
    %108 = memref.load %arg4[%c4_186, %c3_187] : memref<15x15xf32, #tpu.memory_space<smem>>
    %c4_188 = arith.constant 4 : index
    %c4_189 = arith.constant 4 : index
    %109 = memref.load %arg4[%c4_188, %c4_189] : memref<15x15xf32, #tpu.memory_space<smem>>
    %c4_190 = arith.constant 4 : index
    %c5_191 = arith.constant 5 : index
    %110 = memref.load %arg4[%c4_190, %c5_191] : memref<15x15xf32, #tpu.memory_space<smem>>
    %c4_192 = arith.constant 4 : index
    %c6_193 = arith.constant 6 : index
    %111 = memref.load %arg4[%c4_192, %c6_193] : memref<15x15xf32, #tpu.memory_space<smem>>
    %c4_194 = arith.constant 4 : index
    %c7_195 = arith.constant 7 : index
    %112 = memref.load %arg4[%c4_194, %c7_195] : memref<15x15xf32, #tpu.memory_space<smem>>
    %c4_196 = arith.constant 4 : index
    %c8_197 = arith.constant 8 : index
    %113 = memref.load %arg4[%c4_196, %c8_197] : memref<15x15xf32, #tpu.memory_space<smem>>
    %c4_198 = arith.constant 4 : index
    %c9_199 = arith.constant 9 : index
    %114 = memref.load %arg4[%c4_198, %c9_199] : memref<15x15xf32, #tpu.memory_space<smem>>
    %c4_200 = arith.constant 4 : index
    %c10_201 = arith.constant 10 : index
    %115 = memref.load %arg4[%c4_200, %c10_201] : memref<15x15xf32, #tpu.memory_space<smem>>
    %c4_202 = arith.constant 4 : index
    %c11_203 = arith.constant 11 : index
    %116 = memref.load %arg4[%c4_202, %c11_203] : memref<15x15xf32, #tpu.memory_space<smem>>
    %c4_204 = arith.constant 4 : index
    %c12_205 = arith.constant 12 : index
    %117 = memref.load %arg4[%c4_204, %c12_205] : memref<15x15xf32, #tpu.memory_space<smem>>
    %c4_206 = arith.constant 4 : index
    %c13_207 = arith.constant 13 : index
    %118 = memref.load %arg4[%c4_206, %c13_207] : memref<15x15xf32, #tpu.memory_space<smem>>
    %c4_208 = arith.constant 4 : index
    %c14_209 = arith.constant 14 : index
    %119 = memref.load %arg4[%c4_208, %c14_209] : memref<15x15xf32, #tpu.memory_space<smem>>
    %c5_210 = arith.constant 5 : index
    %c0_211 = arith.constant 0 : index
    %120 = memref.load %arg4[%c5_210, %c0_211] : memref<15x15xf32, #tpu.memory_space<smem>>
    %c5_212 = arith.constant 5 : index
    %c1_213 = arith.constant 1 : index
    %121 = memref.load %arg4[%c5_212, %c1_213] : memref<15x15xf32, #tpu.memory_space<smem>>
    %c5_214 = arith.constant 5 : index
    %c2_215 = arith.constant 2 : index
    %122 = memref.load %arg4[%c5_214, %c2_215] : memref<15x15xf32, #tpu.memory_space<smem>>
    %c5_216 = arith.constant 5 : index
    %c3_217 = arith.constant 3 : index
    %123 = memref.load %arg4[%c5_216, %c3_217] : memref<15x15xf32, #tpu.memory_space<smem>>
    %c5_218 = arith.constant 5 : index
    %c4_219 = arith.constant 4 : index
    %124 = memref.load %arg4[%c5_218, %c4_219] : memref<15x15xf32, #tpu.memory_space<smem>>
    %c5_220 = arith.constant 5 : index
    %c5_221 = arith.constant 5 : index
    %125 = memref.load %arg4[%c5_220, %c5_221] : memref<15x15xf32, #tpu.memory_space<smem>>
    %c5_222 = arith.constant 5 : index
    %c6_223 = arith.constant 6 : index
    %126 = memref.load %arg4[%c5_222, %c6_223] : memref<15x15xf32, #tpu.memory_space<smem>>
    %c5_224 = arith.constant 5 : index
    %c7_225 = arith.constant 7 : index
    %127 = memref.load %arg4[%c5_224, %c7_225] : memref<15x15xf32, #tpu.memory_space<smem>>
    %c5_226 = arith.constant 5 : index
    %c8_227 = arith.constant 8 : index
    %128 = memref.load %arg4[%c5_226, %c8_227] : memref<15x15xf32, #tpu.memory_space<smem>>
    %c5_228 = arith.constant 5 : index
    %c9_229 = arith.constant 9 : index
    %129 = memref.load %arg4[%c5_228, %c9_229] : memref<15x15xf32, #tpu.memory_space<smem>>
    %c5_230 = arith.constant 5 : index
    %c10_231 = arith.constant 10 : index
    %130 = memref.load %arg4[%c5_230, %c10_231] : memref<15x15xf32, #tpu.memory_space<smem>>
    %c5_232 = arith.constant 5 : index
    %c11_233 = arith.constant 11 : index
    %131 = memref.load %arg4[%c5_232, %c11_233] : memref<15x15xf32, #tpu.memory_space<smem>>
    %c5_234 = arith.constant 5 : index
    %c12_235 = arith.constant 12 : index
    %132 = memref.load %arg4[%c5_234, %c12_235] : memref<15x15xf32, #tpu.memory_space<smem>>
    %c5_236 = arith.constant 5 : index
    %c13_237 = arith.constant 13 : index
    %133 = memref.load %arg4[%c5_236, %c13_237] : memref<15x15xf32, #tpu.memory_space<smem>>
    %c5_238 = arith.constant 5 : index
    %c14_239 = arith.constant 14 : index
    %134 = memref.load %arg4[%c5_238, %c14_239] : memref<15x15xf32, #tpu.memory_space<smem>>
    %c6_240 = arith.constant 6 : index
    %c0_241 = arith.constant 0 : index
    %135 = memref.load %arg4[%c6_240, %c0_241] : memref<15x15xf32, #tpu.memory_space<smem>>
    %c6_242 = arith.constant 6 : index
    %c1_243 = arith.constant 1 : index
    %136 = memref.load %arg4[%c6_242, %c1_243] : memref<15x15xf32, #tpu.memory_space<smem>>
    %c6_244 = arith.constant 6 : index
    %c2_245 = arith.constant 2 : index
    %137 = memref.load %arg4[%c6_244, %c2_245] : memref<15x15xf32, #tpu.memory_space<smem>>
    %c6_246 = arith.constant 6 : index
    %c3_247 = arith.constant 3 : index
    %138 = memref.load %arg4[%c6_246, %c3_247] : memref<15x15xf32, #tpu.memory_space<smem>>
    %c6_248 = arith.constant 6 : index
    %c4_249 = arith.constant 4 : index
    %139 = memref.load %arg4[%c6_248, %c4_249] : memref<15x15xf32, #tpu.memory_space<smem>>
    %c6_250 = arith.constant 6 : index
    %c5_251 = arith.constant 5 : index
    %140 = memref.load %arg4[%c6_250, %c5_251] : memref<15x15xf32, #tpu.memory_space<smem>>
    %c6_252 = arith.constant 6 : index
    %c6_253 = arith.constant 6 : index
    %141 = memref.load %arg4[%c6_252, %c6_253] : memref<15x15xf32, #tpu.memory_space<smem>>
    %c6_254 = arith.constant 6 : index
    %c7_255 = arith.constant 7 : index
    %142 = memref.load %arg4[%c6_254, %c7_255] : memref<15x15xf32, #tpu.memory_space<smem>>
    %c6_256 = arith.constant 6 : index
    %c8_257 = arith.constant 8 : index
    %143 = memref.load %arg4[%c6_256, %c8_257] : memref<15x15xf32, #tpu.memory_space<smem>>
    %c6_258 = arith.constant 6 : index
    %c9_259 = arith.constant 9 : index
    %144 = memref.load %arg4[%c6_258, %c9_259] : memref<15x15xf32, #tpu.memory_space<smem>>
    %c6_260 = arith.constant 6 : index
    %c10_261 = arith.constant 10 : index
    %145 = memref.load %arg4[%c6_260, %c10_261] : memref<15x15xf32, #tpu.memory_space<smem>>
    %c6_262 = arith.constant 6 : index
    %c11_263 = arith.constant 11 : index
    %146 = memref.load %arg4[%c6_262, %c11_263] : memref<15x15xf32, #tpu.memory_space<smem>>
    %c6_264 = arith.constant 6 : index
    %c12_265 = arith.constant 12 : index
    %147 = memref.load %arg4[%c6_264, %c12_265] : memref<15x15xf32, #tpu.memory_space<smem>>
    %c6_266 = arith.constant 6 : index
    %c13_267 = arith.constant 13 : index
    %148 = memref.load %arg4[%c6_266, %c13_267] : memref<15x15xf32, #tpu.memory_space<smem>>
    %c6_268 = arith.constant 6 : index
    %c14_269 = arith.constant 14 : index
    %149 = memref.load %arg4[%c6_268, %c14_269] : memref<15x15xf32, #tpu.memory_space<smem>>
    %c7_270 = arith.constant 7 : index
    %c0_271 = arith.constant 0 : index
    %150 = memref.load %arg4[%c7_270, %c0_271] : memref<15x15xf32, #tpu.memory_space<smem>>
    %c7_272 = arith.constant 7 : index
    %c1_273 = arith.constant 1 : index
    %151 = memref.load %arg4[%c7_272, %c1_273] : memref<15x15xf32, #tpu.memory_space<smem>>
    %c7_274 = arith.constant 7 : index
    %c2_275 = arith.constant 2 : index
    %152 = memref.load %arg4[%c7_274, %c2_275] : memref<15x15xf32, #tpu.memory_space<smem>>
    %c7_276 = arith.constant 7 : index
    %c3_277 = arith.constant 3 : index
    %153 = memref.load %arg4[%c7_276, %c3_277] : memref<15x15xf32, #tpu.memory_space<smem>>
    %c7_278 = arith.constant 7 : index
    %c4_279 = arith.constant 4 : index
    %154 = memref.load %arg4[%c7_278, %c4_279] : memref<15x15xf32, #tpu.memory_space<smem>>
    %c7_280 = arith.constant 7 : index
    %c5_281 = arith.constant 5 : index
    %155 = memref.load %arg4[%c7_280, %c5_281] : memref<15x15xf32, #tpu.memory_space<smem>>
    %c7_282 = arith.constant 7 : index
    %c6_283 = arith.constant 6 : index
    %156 = memref.load %arg4[%c7_282, %c6_283] : memref<15x15xf32, #tpu.memory_space<smem>>
    %c7_284 = arith.constant 7 : index
    %c7_285 = arith.constant 7 : index
    %157 = memref.load %arg4[%c7_284, %c7_285] : memref<15x15xf32, #tpu.memory_space<smem>>
    %c7_286 = arith.constant 7 : index
    %c8_287 = arith.constant 8 : index
    %158 = memref.load %arg4[%c7_286, %c8_287] : memref<15x15xf32, #tpu.memory_space<smem>>
    %c7_288 = arith.constant 7 : index
    %c9_289 = arith.constant 9 : index
    %159 = memref.load %arg4[%c7_288, %c9_289] : memref<15x15xf32, #tpu.memory_space<smem>>
    %c7_290 = arith.constant 7 : index
    %c10_291 = arith.constant 10 : index
    %160 = memref.load %arg4[%c7_290, %c10_291] : memref<15x15xf32, #tpu.memory_space<smem>>
    %c7_292 = arith.constant 7 : index
    %c11_293 = arith.constant 11 : index
    %161 = memref.load %arg4[%c7_292, %c11_293] : memref<15x15xf32, #tpu.memory_space<smem>>
    %c7_294 = arith.constant 7 : index
    %c12_295 = arith.constant 12 : index
    %162 = memref.load %arg4[%c7_294, %c12_295] : memref<15x15xf32, #tpu.memory_space<smem>>
    %c7_296 = arith.constant 7 : index
    %c13_297 = arith.constant 13 : index
    %163 = memref.load %arg4[%c7_296, %c13_297] : memref<15x15xf32, #tpu.memory_space<smem>>
    %c7_298 = arith.constant 7 : index
    %c14_299 = arith.constant 14 : index
    %164 = memref.load %arg4[%c7_298, %c14_299] : memref<15x15xf32, #tpu.memory_space<smem>>
    %c8_300 = arith.constant 8 : index
    %c0_301 = arith.constant 0 : index
    %165 = memref.load %arg4[%c8_300, %c0_301] : memref<15x15xf32, #tpu.memory_space<smem>>
    %c8_302 = arith.constant 8 : index
    %c1_303 = arith.constant 1 : index
    %166 = memref.load %arg4[%c8_302, %c1_303] : memref<15x15xf32, #tpu.memory_space<smem>>
    %c8_304 = arith.constant 8 : index
    %c2_305 = arith.constant 2 : index
    %167 = memref.load %arg4[%c8_304, %c2_305] : memref<15x15xf32, #tpu.memory_space<smem>>
    %c8_306 = arith.constant 8 : index
    %c3_307 = arith.constant 3 : index
    %168 = memref.load %arg4[%c8_306, %c3_307] : memref<15x15xf32, #tpu.memory_space<smem>>
    %c8_308 = arith.constant 8 : index
    %c4_309 = arith.constant 4 : index
    %169 = memref.load %arg4[%c8_308, %c4_309] : memref<15x15xf32, #tpu.memory_space<smem>>
    %c8_310 = arith.constant 8 : index
    %c5_311 = arith.constant 5 : index
    %170 = memref.load %arg4[%c8_310, %c5_311] : memref<15x15xf32, #tpu.memory_space<smem>>
    %c8_312 = arith.constant 8 : index
    %c6_313 = arith.constant 6 : index
    %171 = memref.load %arg4[%c8_312, %c6_313] : memref<15x15xf32, #tpu.memory_space<smem>>
    %c8_314 = arith.constant 8 : index
    %c7_315 = arith.constant 7 : index
    %172 = memref.load %arg4[%c8_314, %c7_315] : memref<15x15xf32, #tpu.memory_space<smem>>
    %c8_316 = arith.constant 8 : index
    %c8_317 = arith.constant 8 : index
    %173 = memref.load %arg4[%c8_316, %c8_317] : memref<15x15xf32, #tpu.memory_space<smem>>
    %c8_318 = arith.constant 8 : index
    %c9_319 = arith.constant 9 : index
    %174 = memref.load %arg4[%c8_318, %c9_319] : memref<15x15xf32, #tpu.memory_space<smem>>
    %c8_320 = arith.constant 8 : index
    %c10_321 = arith.constant 10 : index
    %175 = memref.load %arg4[%c8_320, %c10_321] : memref<15x15xf32, #tpu.memory_space<smem>>
    %c8_322 = arith.constant 8 : index
    %c11_323 = arith.constant 11 : index
    %176 = memref.load %arg4[%c8_322, %c11_323] : memref<15x15xf32, #tpu.memory_space<smem>>
    %c8_324 = arith.constant 8 : index
    %c12_325 = arith.constant 12 : index
    %177 = memref.load %arg4[%c8_324, %c12_325] : memref<15x15xf32, #tpu.memory_space<smem>>
    %c8_326 = arith.constant 8 : index
    %c13_327 = arith.constant 13 : index
    %178 = memref.load %arg4[%c8_326, %c13_327] : memref<15x15xf32, #tpu.memory_space<smem>>
    %c8_328 = arith.constant 8 : index
    %c14_329 = arith.constant 14 : index
    %179 = memref.load %arg4[%c8_328, %c14_329] : memref<15x15xf32, #tpu.memory_space<smem>>
    %c9_330 = arith.constant 9 : index
    %c0_331 = arith.constant 0 : index
    %180 = memref.load %arg4[%c9_330, %c0_331] : memref<15x15xf32, #tpu.memory_space<smem>>
    %c9_332 = arith.constant 9 : index
    %c1_333 = arith.constant 1 : index
    %181 = memref.load %arg4[%c9_332, %c1_333] : memref<15x15xf32, #tpu.memory_space<smem>>
    %c9_334 = arith.constant 9 : index
    %c2_335 = arith.constant 2 : index
    %182 = memref.load %arg4[%c9_334, %c2_335] : memref<15x15xf32, #tpu.memory_space<smem>>
    %c9_336 = arith.constant 9 : index
    %c3_337 = arith.constant 3 : index
    %183 = memref.load %arg4[%c9_336, %c3_337] : memref<15x15xf32, #tpu.memory_space<smem>>
    %c9_338 = arith.constant 9 : index
    %c4_339 = arith.constant 4 : index
    %184 = memref.load %arg4[%c9_338, %c4_339] : memref<15x15xf32, #tpu.memory_space<smem>>
    %c9_340 = arith.constant 9 : index
    %c5_341 = arith.constant 5 : index
    %185 = memref.load %arg4[%c9_340, %c5_341] : memref<15x15xf32, #tpu.memory_space<smem>>
    %c9_342 = arith.constant 9 : index
    %c6_343 = arith.constant 6 : index
    %186 = memref.load %arg4[%c9_342, %c6_343] : memref<15x15xf32, #tpu.memory_space<smem>>
    %c9_344 = arith.constant 9 : index
    %c7_345 = arith.constant 7 : index
    %187 = memref.load %arg4[%c9_344, %c7_345] : memref<15x15xf32, #tpu.memory_space<smem>>
    %c9_346 = arith.constant 9 : index
    %c8_347 = arith.constant 8 : index
    %188 = memref.load %arg4[%c9_346, %c8_347] : memref<15x15xf32, #tpu.memory_space<smem>>
    %c9_348 = arith.constant 9 : index
    %c9_349 = arith.constant 9 : index
    %189 = memref.load %arg4[%c9_348, %c9_349] : memref<15x15xf32, #tpu.memory_space<smem>>
    %c9_350 = arith.constant 9 : index
    %c10_351 = arith.constant 10 : index
    %190 = memref.load %arg4[%c9_350, %c10_351] : memref<15x15xf32, #tpu.memory_space<smem>>
    %c9_352 = arith.constant 9 : index
    %c11_353 = arith.constant 11 : index
    %191 = memref.load %arg4[%c9_352, %c11_353] : memref<15x15xf32, #tpu.memory_space<smem>>
    %c9_354 = arith.constant 9 : index
    %c12_355 = arith.constant 12 : index
    %192 = memref.load %arg4[%c9_354, %c12_355] : memref<15x15xf32, #tpu.memory_space<smem>>
    %c9_356 = arith.constant 9 : index
    %c13_357 = arith.constant 13 : index
    %193 = memref.load %arg4[%c9_356, %c13_357] : memref<15x15xf32, #tpu.memory_space<smem>>
    %c9_358 = arith.constant 9 : index
    %c14_359 = arith.constant 14 : index
    %194 = memref.load %arg4[%c9_358, %c14_359] : memref<15x15xf32, #tpu.memory_space<smem>>
    %c10_360 = arith.constant 10 : index
    %c0_361 = arith.constant 0 : index
    %195 = memref.load %arg4[%c10_360, %c0_361] : memref<15x15xf32, #tpu.memory_space<smem>>
    %c10_362 = arith.constant 10 : index
    %c1_363 = arith.constant 1 : index
    %196 = memref.load %arg4[%c10_362, %c1_363] : memref<15x15xf32, #tpu.memory_space<smem>>
    %c10_364 = arith.constant 10 : index
    %c2_365 = arith.constant 2 : index
    %197 = memref.load %arg4[%c10_364, %c2_365] : memref<15x15xf32, #tpu.memory_space<smem>>
    %c10_366 = arith.constant 10 : index
    %c3_367 = arith.constant 3 : index
    %198 = memref.load %arg4[%c10_366, %c3_367] : memref<15x15xf32, #tpu.memory_space<smem>>
    %c10_368 = arith.constant 10 : index
    %c4_369 = arith.constant 4 : index
    %199 = memref.load %arg4[%c10_368, %c4_369] : memref<15x15xf32, #tpu.memory_space<smem>>
    %c10_370 = arith.constant 10 : index
    %c5_371 = arith.constant 5 : index
    %200 = memref.load %arg4[%c10_370, %c5_371] : memref<15x15xf32, #tpu.memory_space<smem>>
    %c10_372 = arith.constant 10 : index
    %c6_373 = arith.constant 6 : index
    %201 = memref.load %arg4[%c10_372, %c6_373] : memref<15x15xf32, #tpu.memory_space<smem>>
    %c10_374 = arith.constant 10 : index
    %c7_375 = arith.constant 7 : index
    %202 = memref.load %arg4[%c10_374, %c7_375] : memref<15x15xf32, #tpu.memory_space<smem>>
    %c10_376 = arith.constant 10 : index
    %c8_377 = arith.constant 8 : index
    %203 = memref.load %arg4[%c10_376, %c8_377] : memref<15x15xf32, #tpu.memory_space<smem>>
    %c10_378 = arith.constant 10 : index
    %c9_379 = arith.constant 9 : index
    %204 = memref.load %arg4[%c10_378, %c9_379] : memref<15x15xf32, #tpu.memory_space<smem>>
    %c10_380 = arith.constant 10 : index
    %c10_381 = arith.constant 10 : index
    %205 = memref.load %arg4[%c10_380, %c10_381] : memref<15x15xf32, #tpu.memory_space<smem>>
    %c10_382 = arith.constant 10 : index
    %c11_383 = arith.constant 11 : index
    %206 = memref.load %arg4[%c10_382, %c11_383] : memref<15x15xf32, #tpu.memory_space<smem>>
    %c10_384 = arith.constant 10 : index
    %c12_385 = arith.constant 12 : index
    %207 = memref.load %arg4[%c10_384, %c12_385] : memref<15x15xf32, #tpu.memory_space<smem>>
    %c10_386 = arith.constant 10 : index
    %c13_387 = arith.constant 13 : index
    %208 = memref.load %arg4[%c10_386, %c13_387] : memref<15x15xf32, #tpu.memory_space<smem>>
    %c10_388 = arith.constant 10 : index
    %c14_389 = arith.constant 14 : index
    %209 = memref.load %arg4[%c10_388, %c14_389] : memref<15x15xf32, #tpu.memory_space<smem>>
    %c11_390 = arith.constant 11 : index
    %c0_391 = arith.constant 0 : index
    %210 = memref.load %arg4[%c11_390, %c0_391] : memref<15x15xf32, #tpu.memory_space<smem>>
    %c11_392 = arith.constant 11 : index
    %c1_393 = arith.constant 1 : index
    %211 = memref.load %arg4[%c11_392, %c1_393] : memref<15x15xf32, #tpu.memory_space<smem>>
    %c11_394 = arith.constant 11 : index
    %c2_395 = arith.constant 2 : index
    %212 = memref.load %arg4[%c11_394, %c2_395] : memref<15x15xf32, #tpu.memory_space<smem>>
    %c11_396 = arith.constant 11 : index
    %c3_397 = arith.constant 3 : index
    %213 = memref.load %arg4[%c11_396, %c3_397] : memref<15x15xf32, #tpu.memory_space<smem>>
    %c11_398 = arith.constant 11 : index
    %c4_399 = arith.constant 4 : index
    %214 = memref.load %arg4[%c11_398, %c4_399] : memref<15x15xf32, #tpu.memory_space<smem>>
    %c11_400 = arith.constant 11 : index
    %c5_401 = arith.constant 5 : index
    %215 = memref.load %arg4[%c11_400, %c5_401] : memref<15x15xf32, #tpu.memory_space<smem>>
    %c11_402 = arith.constant 11 : index
    %c6_403 = arith.constant 6 : index
    %216 = memref.load %arg4[%c11_402, %c6_403] : memref<15x15xf32, #tpu.memory_space<smem>>
    %c11_404 = arith.constant 11 : index
    %c7_405 = arith.constant 7 : index
    %217 = memref.load %arg4[%c11_404, %c7_405] : memref<15x15xf32, #tpu.memory_space<smem>>
    %c11_406 = arith.constant 11 : index
    %c8_407 = arith.constant 8 : index
    %218 = memref.load %arg4[%c11_406, %c8_407] : memref<15x15xf32, #tpu.memory_space<smem>>
    %c11_408 = arith.constant 11 : index
    %c9_409 = arith.constant 9 : index
    %219 = memref.load %arg4[%c11_408, %c9_409] : memref<15x15xf32, #tpu.memory_space<smem>>
    %c11_410 = arith.constant 11 : index
    %c10_411 = arith.constant 10 : index
    %220 = memref.load %arg4[%c11_410, %c10_411] : memref<15x15xf32, #tpu.memory_space<smem>>
    %c11_412 = arith.constant 11 : index
    %c11_413 = arith.constant 11 : index
    %221 = memref.load %arg4[%c11_412, %c11_413] : memref<15x15xf32, #tpu.memory_space<smem>>
    %c11_414 = arith.constant 11 : index
    %c12_415 = arith.constant 12 : index
    %222 = memref.load %arg4[%c11_414, %c12_415] : memref<15x15xf32, #tpu.memory_space<smem>>
    %c11_416 = arith.constant 11 : index
    %c13_417 = arith.constant 13 : index
    %223 = memref.load %arg4[%c11_416, %c13_417] : memref<15x15xf32, #tpu.memory_space<smem>>
    %c11_418 = arith.constant 11 : index
    %c14_419 = arith.constant 14 : index
    %224 = memref.load %arg4[%c11_418, %c14_419] : memref<15x15xf32, #tpu.memory_space<smem>>
    %c12_420 = arith.constant 12 : index
    %c0_421 = arith.constant 0 : index
    %225 = memref.load %arg4[%c12_420, %c0_421] : memref<15x15xf32, #tpu.memory_space<smem>>
    %c12_422 = arith.constant 12 : index
    %c1_423 = arith.constant 1 : index
    %226 = memref.load %arg4[%c12_422, %c1_423] : memref<15x15xf32, #tpu.memory_space<smem>>
    %c12_424 = arith.constant 12 : index
    %c2_425 = arith.constant 2 : index
    %227 = memref.load %arg4[%c12_424, %c2_425] : memref<15x15xf32, #tpu.memory_space<smem>>
    %c12_426 = arith.constant 12 : index
    %c3_427 = arith.constant 3 : index
    %228 = memref.load %arg4[%c12_426, %c3_427] : memref<15x15xf32, #tpu.memory_space<smem>>
    %c12_428 = arith.constant 12 : index
    %c4_429 = arith.constant 4 : index
    %229 = memref.load %arg4[%c12_428, %c4_429] : memref<15x15xf32, #tpu.memory_space<smem>>
    %c12_430 = arith.constant 12 : index
    %c5_431 = arith.constant 5 : index
    %230 = memref.load %arg4[%c12_430, %c5_431] : memref<15x15xf32, #tpu.memory_space<smem>>
    %c12_432 = arith.constant 12 : index
    %c6_433 = arith.constant 6 : index
    %231 = memref.load %arg4[%c12_432, %c6_433] : memref<15x15xf32, #tpu.memory_space<smem>>
    %c12_434 = arith.constant 12 : index
    %c7_435 = arith.constant 7 : index
    %232 = memref.load %arg4[%c12_434, %c7_435] : memref<15x15xf32, #tpu.memory_space<smem>>
    %c12_436 = arith.constant 12 : index
    %c8_437 = arith.constant 8 : index
    %233 = memref.load %arg4[%c12_436, %c8_437] : memref<15x15xf32, #tpu.memory_space<smem>>
    %c12_438 = arith.constant 12 : index
    %c9_439 = arith.constant 9 : index
    %234 = memref.load %arg4[%c12_438, %c9_439] : memref<15x15xf32, #tpu.memory_space<smem>>
    %c12_440 = arith.constant 12 : index
    %c10_441 = arith.constant 10 : index
    %235 = memref.load %arg4[%c12_440, %c10_441] : memref<15x15xf32, #tpu.memory_space<smem>>
    %c12_442 = arith.constant 12 : index
    %c11_443 = arith.constant 11 : index
    %236 = memref.load %arg4[%c12_442, %c11_443] : memref<15x15xf32, #tpu.memory_space<smem>>
    %c12_444 = arith.constant 12 : index
    %c12_445 = arith.constant 12 : index
    %237 = memref.load %arg4[%c12_444, %c12_445] : memref<15x15xf32, #tpu.memory_space<smem>>
    %c12_446 = arith.constant 12 : index
    %c13_447 = arith.constant 13 : index
    %238 = memref.load %arg4[%c12_446, %c13_447] : memref<15x15xf32, #tpu.memory_space<smem>>
    %c12_448 = arith.constant 12 : index
    %c14_449 = arith.constant 14 : index
    %239 = memref.load %arg4[%c12_448, %c14_449] : memref<15x15xf32, #tpu.memory_space<smem>>
    %c13_450 = arith.constant 13 : index
    %c0_451 = arith.constant 0 : index
    %240 = memref.load %arg4[%c13_450, %c0_451] : memref<15x15xf32, #tpu.memory_space<smem>>
    %c13_452 = arith.constant 13 : index
    %c1_453 = arith.constant 1 : index
    %241 = memref.load %arg4[%c13_452, %c1_453] : memref<15x15xf32, #tpu.memory_space<smem>>
    %c13_454 = arith.constant 13 : index
    %c2_455 = arith.constant 2 : index
    %242 = memref.load %arg4[%c13_454, %c2_455] : memref<15x15xf32, #tpu.memory_space<smem>>
    %c13_456 = arith.constant 13 : index
    %c3_457 = arith.constant 3 : index
    %243 = memref.load %arg4[%c13_456, %c3_457] : memref<15x15xf32, #tpu.memory_space<smem>>
    %c13_458 = arith.constant 13 : index
    %c4_459 = arith.constant 4 : index
    %244 = memref.load %arg4[%c13_458, %c4_459] : memref<15x15xf32, #tpu.memory_space<smem>>
    %c13_460 = arith.constant 13 : index
    %c5_461 = arith.constant 5 : index
    %245 = memref.load %arg4[%c13_460, %c5_461] : memref<15x15xf32, #tpu.memory_space<smem>>
    %c13_462 = arith.constant 13 : index
    %c6_463 = arith.constant 6 : index
    %246 = memref.load %arg4[%c13_462, %c6_463] : memref<15x15xf32, #tpu.memory_space<smem>>
    %c13_464 = arith.constant 13 : index
    %c7_465 = arith.constant 7 : index
    %247 = memref.load %arg4[%c13_464, %c7_465] : memref<15x15xf32, #tpu.memory_space<smem>>
    %c13_466 = arith.constant 13 : index
    %c8_467 = arith.constant 8 : index
    %248 = memref.load %arg4[%c13_466, %c8_467] : memref<15x15xf32, #tpu.memory_space<smem>>
    %c13_468 = arith.constant 13 : index
    %c9_469 = arith.constant 9 : index
    %249 = memref.load %arg4[%c13_468, %c9_469] : memref<15x15xf32, #tpu.memory_space<smem>>
    %c13_470 = arith.constant 13 : index
    %c10_471 = arith.constant 10 : index
    %250 = memref.load %arg4[%c13_470, %c10_471] : memref<15x15xf32, #tpu.memory_space<smem>>
    %c13_472 = arith.constant 13 : index
    %c11_473 = arith.constant 11 : index
    %251 = memref.load %arg4[%c13_472, %c11_473] : memref<15x15xf32, #tpu.memory_space<smem>>
    %c13_474 = arith.constant 13 : index
    %c12_475 = arith.constant 12 : index
    %252 = memref.load %arg4[%c13_474, %c12_475] : memref<15x15xf32, #tpu.memory_space<smem>>
    %c13_476 = arith.constant 13 : index
    %c13_477 = arith.constant 13 : index
    %253 = memref.load %arg4[%c13_476, %c13_477] : memref<15x15xf32, #tpu.memory_space<smem>>
    %c13_478 = arith.constant 13 : index
    %c14_479 = arith.constant 14 : index
    %254 = memref.load %arg4[%c13_478, %c14_479] : memref<15x15xf32, #tpu.memory_space<smem>>
    %c14_480 = arith.constant 14 : index
    %c0_481 = arith.constant 0 : index
    %255 = memref.load %arg4[%c14_480, %c0_481] : memref<15x15xf32, #tpu.memory_space<smem>>
    %c14_482 = arith.constant 14 : index
    %c1_483 = arith.constant 1 : index
    %256 = memref.load %arg4[%c14_482, %c1_483] : memref<15x15xf32, #tpu.memory_space<smem>>
    %c14_484 = arith.constant 14 : index
    %c2_485 = arith.constant 2 : index
    %257 = memref.load %arg4[%c14_484, %c2_485] : memref<15x15xf32, #tpu.memory_space<smem>>
    %c14_486 = arith.constant 14 : index
    %c3_487 = arith.constant 3 : index
    %258 = memref.load %arg4[%c14_486, %c3_487] : memref<15x15xf32, #tpu.memory_space<smem>>
    %c14_488 = arith.constant 14 : index
    %c4_489 = arith.constant 4 : index
    %259 = memref.load %arg4[%c14_488, %c4_489] : memref<15x15xf32, #tpu.memory_space<smem>>
    %c14_490 = arith.constant 14 : index
    %c5_491 = arith.constant 5 : index
    %260 = memref.load %arg4[%c14_490, %c5_491] : memref<15x15xf32, #tpu.memory_space<smem>>
    %c14_492 = arith.constant 14 : index
    %c6_493 = arith.constant 6 : index
    %261 = memref.load %arg4[%c14_492, %c6_493] : memref<15x15xf32, #tpu.memory_space<smem>>
    %c14_494 = arith.constant 14 : index
    %c7_495 = arith.constant 7 : index
    %262 = memref.load %arg4[%c14_494, %c7_495] : memref<15x15xf32, #tpu.memory_space<smem>>
    %c14_496 = arith.constant 14 : index
    %c8_497 = arith.constant 8 : index
    %263 = memref.load %arg4[%c14_496, %c8_497] : memref<15x15xf32, #tpu.memory_space<smem>>
    %c14_498 = arith.constant 14 : index
    %c9_499 = arith.constant 9 : index
    %264 = memref.load %arg4[%c14_498, %c9_499] : memref<15x15xf32, #tpu.memory_space<smem>>
    %c14_500 = arith.constant 14 : index
    %c10_501 = arith.constant 10 : index
    %265 = memref.load %arg4[%c14_500, %c10_501] : memref<15x15xf32, #tpu.memory_space<smem>>
    %c14_502 = arith.constant 14 : index
    %c11_503 = arith.constant 11 : index
    %266 = memref.load %arg4[%c14_502, %c11_503] : memref<15x15xf32, #tpu.memory_space<smem>>
    %c14_504 = arith.constant 14 : index
    %c12_505 = arith.constant 12 : index
    %267 = memref.load %arg4[%c14_504, %c12_505] : memref<15x15xf32, #tpu.memory_space<smem>>
    %c14_506 = arith.constant 14 : index
    %c13_507 = arith.constant 13 : index
    %268 = memref.load %arg4[%c14_506, %c13_507] : memref<15x15xf32, #tpu.memory_space<smem>>
    %c14_508 = arith.constant 14 : index
    %c14_509 = arith.constant 14 : index
    %269 = memref.load %arg4[%c14_508, %c14_509] : memref<15x15xf32, #tpu.memory_space<smem>>
    %c0_510 = arith.constant 0 : index
    %270 = memref.load %arg5[%c0_510] : memref<15xf32, #tpu.memory_space<smem>>
    %c1_511 = arith.constant 1 : index
    %271 = memref.load %arg5[%c1_511] : memref<15xf32, #tpu.memory_space<smem>>
    %c2_512 = arith.constant 2 : index
    %272 = memref.load %arg5[%c2_512] : memref<15xf32, #tpu.memory_space<smem>>
    %c3_513 = arith.constant 3 : index
    %273 = memref.load %arg5[%c3_513] : memref<15xf32, #tpu.memory_space<smem>>
    %c4_514 = arith.constant 4 : index
    %274 = memref.load %arg5[%c4_514] : memref<15xf32, #tpu.memory_space<smem>>
    %c5_515 = arith.constant 5 : index
    %275 = memref.load %arg5[%c5_515] : memref<15xf32, #tpu.memory_space<smem>>
    %c6_516 = arith.constant 6 : index
    %276 = memref.load %arg5[%c6_516] : memref<15xf32, #tpu.memory_space<smem>>
    %c7_517 = arith.constant 7 : index
    %277 = memref.load %arg5[%c7_517] : memref<15xf32, #tpu.memory_space<smem>>
    %c8_518 = arith.constant 8 : index
    %278 = memref.load %arg5[%c8_518] : memref<15xf32, #tpu.memory_space<smem>>
    %c9_519 = arith.constant 9 : index
    %279 = memref.load %arg5[%c9_519] : memref<15xf32, #tpu.memory_space<smem>>
    %c10_520 = arith.constant 10 : index
    %280 = memref.load %arg5[%c10_520] : memref<15xf32, #tpu.memory_space<smem>>
    %c11_521 = arith.constant 11 : index
    %281 = memref.load %arg5[%c11_521] : memref<15xf32, #tpu.memory_space<smem>>
    %c12_522 = arith.constant 12 : index
    %282 = memref.load %arg5[%c12_522] : memref<15xf32, #tpu.memory_space<smem>>
    %c13_523 = arith.constant 13 : index
    %283 = memref.load %arg5[%c13_523] : memref<15xf32, #tpu.memory_space<smem>>
    %c14_524 = arith.constant 14 : index
    %284 = memref.load %arg5[%c14_524] : memref<15xf32, #tpu.memory_space<smem>>
    %c0_525 = arith.constant 0 : index
    %c0_526 = arith.constant 0 : index
    %285 = memref.load %arg6[%c0_525, %c0_526] : memref<1x15xf32, #tpu.memory_space<smem>>
    %c0_527 = arith.constant 0 : index
    %c1_528 = arith.constant 1 : index
    %286 = memref.load %arg6[%c0_527, %c1_528] : memref<1x15xf32, #tpu.memory_space<smem>>
    %c0_529 = arith.constant 0 : index
    %c2_530 = arith.constant 2 : index
    %287 = memref.load %arg6[%c0_529, %c2_530] : memref<1x15xf32, #tpu.memory_space<smem>>
    %c0_531 = arith.constant 0 : index
    %c3_532 = arith.constant 3 : index
    %288 = memref.load %arg6[%c0_531, %c3_532] : memref<1x15xf32, #tpu.memory_space<smem>>
    %c0_533 = arith.constant 0 : index
    %c4_534 = arith.constant 4 : index
    %289 = memref.load %arg6[%c0_533, %c4_534] : memref<1x15xf32, #tpu.memory_space<smem>>
    %c0_535 = arith.constant 0 : index
    %c5_536 = arith.constant 5 : index
    %290 = memref.load %arg6[%c0_535, %c5_536] : memref<1x15xf32, #tpu.memory_space<smem>>
    %c0_537 = arith.constant 0 : index
    %c6_538 = arith.constant 6 : index
    %291 = memref.load %arg6[%c0_537, %c6_538] : memref<1x15xf32, #tpu.memory_space<smem>>
    %c0_539 = arith.constant 0 : index
    %c7_540 = arith.constant 7 : index
    %292 = memref.load %arg6[%c0_539, %c7_540] : memref<1x15xf32, #tpu.memory_space<smem>>
    %c0_541 = arith.constant 0 : index
    %c8_542 = arith.constant 8 : index
    %293 = memref.load %arg6[%c0_541, %c8_542] : memref<1x15xf32, #tpu.memory_space<smem>>
    %c0_543 = arith.constant 0 : index
    %c9_544 = arith.constant 9 : index
    %294 = memref.load %arg6[%c0_543, %c9_544] : memref<1x15xf32, #tpu.memory_space<smem>>
    %c0_545 = arith.constant 0 : index
    %c10_546 = arith.constant 10 : index
    %295 = memref.load %arg6[%c0_545, %c10_546] : memref<1x15xf32, #tpu.memory_space<smem>>
    %c0_547 = arith.constant 0 : index
    %c11_548 = arith.constant 11 : index
    %296 = memref.load %arg6[%c0_547, %c11_548] : memref<1x15xf32, #tpu.memory_space<smem>>
    %c0_549 = arith.constant 0 : index
    %c12_550 = arith.constant 12 : index
    %297 = memref.load %arg6[%c0_549, %c12_550] : memref<1x15xf32, #tpu.memory_space<smem>>
    %c0_551 = arith.constant 0 : index
    %c13_552 = arith.constant 13 : index
    %298 = memref.load %arg6[%c0_551, %c13_552] : memref<1x15xf32, #tpu.memory_space<smem>>
    %c0_553 = arith.constant 0 : index
    %c14_554 = arith.constant 14 : index
    %299 = memref.load %arg6[%c0_553, %c14_554] : memref<1x15xf32, #tpu.memory_space<smem>>
    %c0_555 = arith.constant 0 : index
    %300 = memref.load %arg7[%c0_555] : memref<1xf32, #tpu.memory_space<smem>>
    %c0_i32 = arith.constant 0 : i32
    %c8_i32 = arith.constant 8 : i32
    %301 = arith.muli %c0_i32, %c8_i32 : i32
    %302 = tpu.assume_multiple %301, 8 : i32
    %c0_556 = arith.constant 0 : index
    %303 = arith.index_cast %302 : i32 to index
    %c0_557 = arith.constant 0 : index
    %304 = vector.load %arg1[%c0_556, %303, %c0_557] : memref<2x8x128xf32, #tpu.memory_space<vmem>>, vector<1x8x128xf32>
    %305 = vector.shape_cast %304 : vector<1x8x128xf32> to vector<8x128xf32>
    %c1_558 = arith.constant 1 : index
    %306 = arith.index_cast %302 : i32 to index
    %c0_559 = arith.constant 0 : index
    %307 = vector.load %arg1[%c1_558, %306, %c0_559] : memref<2x8x128xf32, #tpu.memory_space<vmem>>, vector<1x8x128xf32>
    %308 = vector.shape_cast %307 : vector<1x8x128xf32> to vector<8x128xf32>
    %309 = vector.broadcast %0 : f32 to vector<8x128xf32>
    %310 = arith.mulf %305, %309 : vector<8x128xf32>
    %311 = vector.broadcast %1 : f32 to vector<8x128xf32>
    %312 = arith.mulf %308, %311 : vector<8x128xf32>
    %313 = arith.addf %310, %312 : vector<8x128xf32>
    %314 = vector.broadcast %30 : f32 to vector<8x128xf32>
    %315 = arith.addf %313, %314 : vector<8x128xf32>
    %cst = arith.constant 0.000000e+00 : f32
    %316 = vector.broadcast %cst : f32 to vector<8x128xf32>
    %317 = arith.maximumf %315, %316 : vector<8x128xf32>
    %318 = vector.broadcast %2 : f32 to vector<8x128xf32>
    %319 = arith.mulf %305, %318 : vector<8x128xf32>
    %320 = vector.broadcast %3 : f32 to vector<8x128xf32>
    %321 = arith.mulf %308, %320 : vector<8x128xf32>
    %322 = arith.addf %319, %321 : vector<8x128xf32>
    %323 = vector.broadcast %31 : f32 to vector<8x128xf32>
    %324 = arith.addf %322, %323 : vector<8x128xf32>
    %cst_560 = arith.constant 0.000000e+00 : f32
    %325 = vector.broadcast %cst_560 : f32 to vector<8x128xf32>
    %326 = arith.maximumf %324, %325 : vector<8x128xf32>
    %327 = vector.broadcast %4 : f32 to vector<8x128xf32>
    %328 = arith.mulf %305, %327 : vector<8x128xf32>
    %329 = vector.broadcast %5 : f32 to vector<8x128xf32>
    %330 = arith.mulf %308, %329 : vector<8x128xf32>
    %331 = arith.addf %328, %330 : vector<8x128xf32>
    %332 = vector.broadcast %32 : f32 to vector<8x128xf32>
    %333 = arith.addf %331, %332 : vector<8x128xf32>
    %cst_561 = arith.constant 0.000000e+00 : f32
    %334 = vector.broadcast %cst_561 : f32 to vector<8x128xf32>
    %335 = arith.maximumf %333, %334 : vector<8x128xf32>
    %336 = vector.broadcast %6 : f32 to vector<8x128xf32>
    %337 = arith.mulf %305, %336 : vector<8x128xf32>
    %338 = vector.broadcast %7 : f32 to vector<8x128xf32>
    %339 = arith.mulf %308, %338 : vector<8x128xf32>
    %340 = arith.addf %337, %339 : vector<8x128xf32>
    %341 = vector.broadcast %33 : f32 to vector<8x128xf32>
    %342 = arith.addf %340, %341 : vector<8x128xf32>
    %cst_562 = arith.constant 0.000000e+00 : f32
    %343 = vector.broadcast %cst_562 : f32 to vector<8x128xf32>
    %344 = arith.maximumf %342, %343 : vector<8x128xf32>
    %345 = vector.broadcast %8 : f32 to vector<8x128xf32>
    %346 = arith.mulf %305, %345 : vector<8x128xf32>
    %347 = vector.broadcast %9 : f32 to vector<8x128xf32>
    %348 = arith.mulf %308, %347 : vector<8x128xf32>
    %349 = arith.addf %346, %348 : vector<8x128xf32>
    %350 = vector.broadcast %34 : f32 to vector<8x128xf32>
    %351 = arith.addf %349, %350 : vector<8x128xf32>
    %cst_563 = arith.constant 0.000000e+00 : f32
    %352 = vector.broadcast %cst_563 : f32 to vector<8x128xf32>
    %353 = arith.maximumf %351, %352 : vector<8x128xf32>
    %354 = vector.broadcast %10 : f32 to vector<8x128xf32>
    %355 = arith.mulf %305, %354 : vector<8x128xf32>
    %356 = vector.broadcast %11 : f32 to vector<8x128xf32>
    %357 = arith.mulf %308, %356 : vector<8x128xf32>
    %358 = arith.addf %355, %357 : vector<8x128xf32>
    %359 = vector.broadcast %35 : f32 to vector<8x128xf32>
    %360 = arith.addf %358, %359 : vector<8x128xf32>
    %cst_564 = arith.constant 0.000000e+00 : f32
    %361 = vector.broadcast %cst_564 : f32 to vector<8x128xf32>
    %362 = arith.maximumf %360, %361 : vector<8x128xf32>
    %363 = vector.broadcast %12 : f32 to vector<8x128xf32>
    %364 = arith.mulf %305, %363 : vector<8x128xf32>
    %365 = vector.broadcast %13 : f32 to vector<8x128xf32>
    %366 = arith.mulf %308, %365 : vector<8x128xf32>
    %367 = arith.addf %364, %366 : vector<8x128xf32>
    %368 = vector.broadcast %36 : f32 to vector<8x128xf32>
    %369 = arith.addf %367, %368 : vector<8x128xf32>
    %cst_565 = arith.constant 0.000000e+00 : f32
    %370 = vector.broadcast %cst_565 : f32 to vector<8x128xf32>
    %371 = arith.maximumf %369, %370 : vector<8x128xf32>
    %372 = vector.broadcast %14 : f32 to vector<8x128xf32>
    %373 = arith.mulf %305, %372 : vector<8x128xf32>
    %374 = vector.broadcast %15 : f32 to vector<8x128xf32>
    %375 = arith.mulf %308, %374 : vector<8x128xf32>
    %376 = arith.addf %373, %375 : vector<8x128xf32>
    %377 = vector.broadcast %37 : f32 to vector<8x128xf32>
    %378 = arith.addf %376, %377 : vector<8x128xf32>
    %cst_566 = arith.constant 0.000000e+00 : f32
    %379 = vector.broadcast %cst_566 : f32 to vector<8x128xf32>
    %380 = arith.maximumf %378, %379 : vector<8x128xf32>
    %381 = vector.broadcast %16 : f32 to vector<8x128xf32>
    %382 = arith.mulf %305, %381 : vector<8x128xf32>
    %383 = vector.broadcast %17 : f32 to vector<8x128xf32>
    %384 = arith.mulf %308, %383 : vector<8x128xf32>
    %385 = arith.addf %382, %384 : vector<8x128xf32>
    %386 = vector.broadcast %38 : f32 to vector<8x128xf32>
    %387 = arith.addf %385, %386 : vector<8x128xf32>
    %cst_567 = arith.constant 0.000000e+00 : f32
    %388 = vector.broadcast %cst_567 : f32 to vector<8x128xf32>
    %389 = arith.maximumf %387, %388 : vector<8x128xf32>
    %390 = vector.broadcast %18 : f32 to vector<8x128xf32>
    %391 = arith.mulf %305, %390 : vector<8x128xf32>
    %392 = vector.broadcast %19 : f32 to vector<8x128xf32>
    %393 = arith.mulf %308, %392 : vector<8x128xf32>
    %394 = arith.addf %391, %393 : vector<8x128xf32>
    %395 = vector.broadcast %39 : f32 to vector<8x128xf32>
    %396 = arith.addf %394, %395 : vector<8x128xf32>
    %cst_568 = arith.constant 0.000000e+00 : f32
    %397 = vector.broadcast %cst_568 : f32 to vector<8x128xf32>
    %398 = arith.maximumf %396, %397 : vector<8x128xf32>
    %399 = vector.broadcast %20 : f32 to vector<8x128xf32>
    %400 = arith.mulf %305, %399 : vector<8x128xf32>
    %401 = vector.broadcast %21 : f32 to vector<8x128xf32>
    %402 = arith.mulf %308, %401 : vector<8x128xf32>
    %403 = arith.addf %400, %402 : vector<8x128xf32>
    %404 = vector.broadcast %40 : f32 to vector<8x128xf32>
    %405 = arith.addf %403, %404 : vector<8x128xf32>
    %cst_569 = arith.constant 0.000000e+00 : f32
    %406 = vector.broadcast %cst_569 : f32 to vector<8x128xf32>
    %407 = arith.maximumf %405, %406 : vector<8x128xf32>
    %408 = vector.broadcast %22 : f32 to vector<8x128xf32>
    %409 = arith.mulf %305, %408 : vector<8x128xf32>
    %410 = vector.broadcast %23 : f32 to vector<8x128xf32>
    %411 = arith.mulf %308, %410 : vector<8x128xf32>
    %412 = arith.addf %409, %411 : vector<8x128xf32>
    %413 = vector.broadcast %41 : f32 to vector<8x128xf32>
    %414 = arith.addf %412, %413 : vector<8x128xf32>
    %cst_570 = arith.constant 0.000000e+00 : f32
    %415 = vector.broadcast %cst_570 : f32 to vector<8x128xf32>
    %416 = arith.maximumf %414, %415 : vector<8x128xf32>
    %417 = vector.broadcast %24 : f32 to vector<8x128xf32>
    %418 = arith.mulf %305, %417 : vector<8x128xf32>
    %419 = vector.broadcast %25 : f32 to vector<8x128xf32>
    %420 = arith.mulf %308, %419 : vector<8x128xf32>
    %421 = arith.addf %418, %420 : vector<8x128xf32>
    %422 = vector.broadcast %42 : f32 to vector<8x128xf32>
    %423 = arith.addf %421, %422 : vector<8x128xf32>
    %cst_571 = arith.constant 0.000000e+00 : f32
    %424 = vector.broadcast %cst_571 : f32 to vector<8x128xf32>
    %425 = arith.maximumf %423, %424 : vector<8x128xf32>
    %426 = vector.broadcast %26 : f32 to vector<8x128xf32>
    %427 = arith.mulf %305, %426 : vector<8x128xf32>
    %428 = vector.broadcast %27 : f32 to vector<8x128xf32>
    %429 = arith.mulf %308, %428 : vector<8x128xf32>
    %430 = arith.addf %427, %429 : vector<8x128xf32>
    %431 = vector.broadcast %43 : f32 to vector<8x128xf32>
    %432 = arith.addf %430, %431 : vector<8x128xf32>
    %cst_572 = arith.constant 0.000000e+00 : f32
    %433 = vector.broadcast %cst_572 : f32 to vector<8x128xf32>
    %434 = arith.maximumf %432, %433 : vector<8x128xf32>
    %435 = vector.broadcast %28 : f32 to vector<8x128xf32>
    %436 = arith.mulf %305, %435 : vector<8x128xf32>
    %437 = vector.broadcast %29 : f32 to vector<8x128xf32>
    %438 = arith.mulf %308, %437 : vector<8x128xf32>
    %439 = arith.addf %436, %438 : vector<8x128xf32>
    %440 = vector.broadcast %44 : f32 to vector<8x128xf32>
    %441 = arith.addf %439, %440 : vector<8x128xf32>
    %cst_573 = arith.constant 0.000000e+00 : f32
    %442 = vector.broadcast %cst_573 : f32 to vector<8x128xf32>
    %443 = arith.maximumf %441, %442 : vector<8x128xf32>
    %444 = vector.broadcast %45 : f32 to vector<8x128xf32>
    %445 = arith.mulf %317, %444 : vector<8x128xf32>
    %446 = vector.broadcast %46 : f32 to vector<8x128xf32>
    %447 = arith.mulf %326, %446 : vector<8x128xf32>
    %448 = arith.addf %445, %447 : vector<8x128xf32>
    %449 = vector.broadcast %47 : f32 to vector<8x128xf32>
    %450 = arith.mulf %335, %449 : vector<8x128xf32>
    %451 = arith.addf %448, %450 : vector<8x128xf32>
    %452 = vector.broadcast %48 : f32 to vector<8x128xf32>
    %453 = arith.mulf %344, %452 : vector<8x128xf32>
    %454 = arith.addf %451, %453 : vector<8x128xf32>
    %455 = vector.broadcast %49 : f32 to vector<8x128xf32>
    %456 = arith.mulf %353, %455 : vector<8x128xf32>
    %457 = arith.addf %454, %456 : vector<8x128xf32>
    %458 = vector.broadcast %50 : f32 to vector<8x128xf32>
    %459 = arith.mulf %362, %458 : vector<8x128xf32>
    %460 = arith.addf %457, %459 : vector<8x128xf32>
    %461 = vector.broadcast %51 : f32 to vector<8x128xf32>
    %462 = arith.mulf %371, %461 : vector<8x128xf32>
    %463 = arith.addf %460, %462 : vector<8x128xf32>
    %464 = vector.broadcast %52 : f32 to vector<8x128xf32>
    %465 = arith.mulf %380, %464 : vector<8x128xf32>
    %466 = arith.addf %463, %465 : vector<8x128xf32>
    %467 = vector.broadcast %53 : f32 to vector<8x128xf32>
    %468 = arith.mulf %389, %467 : vector<8x128xf32>
    %469 = arith.addf %466, %468 : vector<8x128xf32>
    %470 = vector.broadcast %54 : f32 to vector<8x128xf32>
    %471 = arith.mulf %398, %470 : vector<8x128xf32>
    %472 = arith.addf %469, %471 : vector<8x128xf32>
    %473 = vector.broadcast %55 : f32 to vector<8x128xf32>
    %474 = arith.mulf %407, %473 : vector<8x128xf32>
    %475 = arith.addf %472, %474 : vector<8x128xf32>
    %476 = vector.broadcast %56 : f32 to vector<8x128xf32>
    %477 = arith.mulf %416, %476 : vector<8x128xf32>
    %478 = arith.addf %475, %477 : vector<8x128xf32>
    %479 = vector.broadcast %57 : f32 to vector<8x128xf32>
    %480 = arith.mulf %425, %479 : vector<8x128xf32>
    %481 = arith.addf %478, %480 : vector<8x128xf32>
    %482 = vector.broadcast %58 : f32 to vector<8x128xf32>
    %483 = arith.mulf %434, %482 : vector<8x128xf32>
    %484 = arith.addf %481, %483 : vector<8x128xf32>
    %485 = vector.broadcast %59 : f32 to vector<8x128xf32>
    %486 = arith.mulf %443, %485 : vector<8x128xf32>
    %487 = arith.addf %484, %486 : vector<8x128xf32>
    %488 = vector.broadcast %270 : f32 to vector<8x128xf32>
    %489 = arith.addf %487, %488 : vector<8x128xf32>
    %cst_574 = arith.constant 0.000000e+00 : f32
    %490 = vector.broadcast %cst_574 : f32 to vector<8x128xf32>
    %491 = arith.maximumf %489, %490 : vector<8x128xf32>
    %492 = vector.broadcast %285 : f32 to vector<8x128xf32>
    %493 = arith.mulf %491, %492 : vector<8x128xf32>
    %494 = vector.broadcast %60 : f32 to vector<8x128xf32>
    %495 = arith.mulf %317, %494 : vector<8x128xf32>
    %496 = vector.broadcast %61 : f32 to vector<8x128xf32>
    %497 = arith.mulf %326, %496 : vector<8x128xf32>
    %498 = arith.addf %495, %497 : vector<8x128xf32>
    %499 = vector.broadcast %62 : f32 to vector<8x128xf32>
    %500 = arith.mulf %335, %499 : vector<8x128xf32>
    %501 = arith.addf %498, %500 : vector<8x128xf32>
    %502 = vector.broadcast %63 : f32 to vector<8x128xf32>
    %503 = arith.mulf %344, %502 : vector<8x128xf32>
    %504 = arith.addf %501, %503 : vector<8x128xf32>
    %505 = vector.broadcast %64 : f32 to vector<8x128xf32>
    %506 = arith.mulf %353, %505 : vector<8x128xf32>
    %507 = arith.addf %504, %506 : vector<8x128xf32>
    %508 = vector.broadcast %65 : f32 to vector<8x128xf32>
    %509 = arith.mulf %362, %508 : vector<8x128xf32>
    %510 = arith.addf %507, %509 : vector<8x128xf32>
    %511 = vector.broadcast %66 : f32 to vector<8x128xf32>
    %512 = arith.mulf %371, %511 : vector<8x128xf32>
    %513 = arith.addf %510, %512 : vector<8x128xf32>
    %514 = vector.broadcast %67 : f32 to vector<8x128xf32>
    %515 = arith.mulf %380, %514 : vector<8x128xf32>
    %516 = arith.addf %513, %515 : vector<8x128xf32>
    %517 = vector.broadcast %68 : f32 to vector<8x128xf32>
    %518 = arith.mulf %389, %517 : vector<8x128xf32>
    %519 = arith.addf %516, %518 : vector<8x128xf32>
    %520 = vector.broadcast %69 : f32 to vector<8x128xf32>
    %521 = arith.mulf %398, %520 : vector<8x128xf32>
    %522 = arith.addf %519, %521 : vector<8x128xf32>
    %523 = vector.broadcast %70 : f32 to vector<8x128xf32>
    %524 = arith.mulf %407, %523 : vector<8x128xf32>
    %525 = arith.addf %522, %524 : vector<8x128xf32>
    %526 = vector.broadcast %71 : f32 to vector<8x128xf32>
    %527 = arith.mulf %416, %526 : vector<8x128xf32>
    %528 = arith.addf %525, %527 : vector<8x128xf32>
    %529 = vector.broadcast %72 : f32 to vector<8x128xf32>
    %530 = arith.mulf %425, %529 : vector<8x128xf32>
    %531 = arith.addf %528, %530 : vector<8x128xf32>
    %532 = vector.broadcast %73 : f32 to vector<8x128xf32>
    %533 = arith.mulf %434, %532 : vector<8x128xf32>
    %534 = arith.addf %531, %533 : vector<8x128xf32>
    %535 = vector.broadcast %74 : f32 to vector<8x128xf32>
    %536 = arith.mulf %443, %535 : vector<8x128xf32>
    %537 = arith.addf %534, %536 : vector<8x128xf32>
    %538 = vector.broadcast %271 : f32 to vector<8x128xf32>
    %539 = arith.addf %537, %538 : vector<8x128xf32>
    %cst_575 = arith.constant 0.000000e+00 : f32
    %540 = vector.broadcast %cst_575 : f32 to vector<8x128xf32>
    %541 = arith.maximumf %539, %540 : vector<8x128xf32>
    %542 = vector.broadcast %286 : f32 to vector<8x128xf32>
    %543 = arith.mulf %541, %542 : vector<8x128xf32>
    %544 = arith.addf %493, %543 : vector<8x128xf32>
    %545 = vector.broadcast %75 : f32 to vector<8x128xf32>
    %546 = arith.mulf %317, %545 : vector<8x128xf32>
    %547 = vector.broadcast %76 : f32 to vector<8x128xf32>
    %548 = arith.mulf %326, %547 : vector<8x128xf32>
    %549 = arith.addf %546, %548 : vector<8x128xf32>
    %550 = vector.broadcast %77 : f32 to vector<8x128xf32>
    %551 = arith.mulf %335, %550 : vector<8x128xf32>
    %552 = arith.addf %549, %551 : vector<8x128xf32>
    %553 = vector.broadcast %78 : f32 to vector<8x128xf32>
    %554 = arith.mulf %344, %553 : vector<8x128xf32>
    %555 = arith.addf %552, %554 : vector<8x128xf32>
    %556 = vector.broadcast %79 : f32 to vector<8x128xf32>
    %557 = arith.mulf %353, %556 : vector<8x128xf32>
    %558 = arith.addf %555, %557 : vector<8x128xf32>
    %559 = vector.broadcast %80 : f32 to vector<8x128xf32>
    %560 = arith.mulf %362, %559 : vector<8x128xf32>
    %561 = arith.addf %558, %560 : vector<8x128xf32>
    %562 = vector.broadcast %81 : f32 to vector<8x128xf32>
    %563 = arith.mulf %371, %562 : vector<8x128xf32>
    %564 = arith.addf %561, %563 : vector<8x128xf32>
    %565 = vector.broadcast %82 : f32 to vector<8x128xf32>
    %566 = arith.mulf %380, %565 : vector<8x128xf32>
    %567 = arith.addf %564, %566 : vector<8x128xf32>
    %568 = vector.broadcast %83 : f32 to vector<8x128xf32>
    %569 = arith.mulf %389, %568 : vector<8x128xf32>
    %570 = arith.addf %567, %569 : vector<8x128xf32>
    %571 = vector.broadcast %84 : f32 to vector<8x128xf32>
    %572 = arith.mulf %398, %571 : vector<8x128xf32>
    %573 = arith.addf %570, %572 : vector<8x128xf32>
    %574 = vector.broadcast %85 : f32 to vector<8x128xf32>
    %575 = arith.mulf %407, %574 : vector<8x128xf32>
    %576 = arith.addf %573, %575 : vector<8x128xf32>
    %577 = vector.broadcast %86 : f32 to vector<8x128xf32>
    %578 = arith.mulf %416, %577 : vector<8x128xf32>
    %579 = arith.addf %576, %578 : vector<8x128xf32>
    %580 = vector.broadcast %87 : f32 to vector<8x128xf32>
    %581 = arith.mulf %425, %580 : vector<8x128xf32>
    %582 = arith.addf %579, %581 : vector<8x128xf32>
    %583 = vector.broadcast %88 : f32 to vector<8x128xf32>
    %584 = arith.mulf %434, %583 : vector<8x128xf32>
    %585 = arith.addf %582, %584 : vector<8x128xf32>
    %586 = vector.broadcast %89 : f32 to vector<8x128xf32>
    %587 = arith.mulf %443, %586 : vector<8x128xf32>
    %588 = arith.addf %585, %587 : vector<8x128xf32>
    %589 = vector.broadcast %272 : f32 to vector<8x128xf32>
    %590 = arith.addf %588, %589 : vector<8x128xf32>
    %cst_576 = arith.constant 0.000000e+00 : f32
    %591 = vector.broadcast %cst_576 : f32 to vector<8x128xf32>
    %592 = arith.maximumf %590, %591 : vector<8x128xf32>
    %593 = vector.broadcast %287 : f32 to vector<8x128xf32>
    %594 = arith.mulf %592, %593 : vector<8x128xf32>
    %595 = arith.addf %544, %594 : vector<8x128xf32>
    %596 = vector.broadcast %90 : f32 to vector<8x128xf32>
    %597 = arith.mulf %317, %596 : vector<8x128xf32>
    %598 = vector.broadcast %91 : f32 to vector<8x128xf32>
    %599 = arith.mulf %326, %598 : vector<8x128xf32>
    %600 = arith.addf %597, %599 : vector<8x128xf32>
    %601 = vector.broadcast %92 : f32 to vector<8x128xf32>
    %602 = arith.mulf %335, %601 : vector<8x128xf32>
    %603 = arith.addf %600, %602 : vector<8x128xf32>
    %604 = vector.broadcast %93 : f32 to vector<8x128xf32>
    %605 = arith.mulf %344, %604 : vector<8x128xf32>
    %606 = arith.addf %603, %605 : vector<8x128xf32>
    %607 = vector.broadcast %94 : f32 to vector<8x128xf32>
    %608 = arith.mulf %353, %607 : vector<8x128xf32>
    %609 = arith.addf %606, %608 : vector<8x128xf32>
    %610 = vector.broadcast %95 : f32 to vector<8x128xf32>
    %611 = arith.mulf %362, %610 : vector<8x128xf32>
    %612 = arith.addf %609, %611 : vector<8x128xf32>
    %613 = vector.broadcast %96 : f32 to vector<8x128xf32>
    %614 = arith.mulf %371, %613 : vector<8x128xf32>
    %615 = arith.addf %612, %614 : vector<8x128xf32>
    %616 = vector.broadcast %97 : f32 to vector<8x128xf32>
    %617 = arith.mulf %380, %616 : vector<8x128xf32>
    %618 = arith.addf %615, %617 : vector<8x128xf32>
    %619 = vector.broadcast %98 : f32 to vector<8x128xf32>
    %620 = arith.mulf %389, %619 : vector<8x128xf32>
    %621 = arith.addf %618, %620 : vector<8x128xf32>
    %622 = vector.broadcast %99 : f32 to vector<8x128xf32>
    %623 = arith.mulf %398, %622 : vector<8x128xf32>
    %624 = arith.addf %621, %623 : vector<8x128xf32>
    %625 = vector.broadcast %100 : f32 to vector<8x128xf32>
    %626 = arith.mulf %407, %625 : vector<8x128xf32>
    %627 = arith.addf %624, %626 : vector<8x128xf32>
    %628 = vector.broadcast %101 : f32 to vector<8x128xf32>
    %629 = arith.mulf %416, %628 : vector<8x128xf32>
    %630 = arith.addf %627, %629 : vector<8x128xf32>
    %631 = vector.broadcast %102 : f32 to vector<8x128xf32>
    %632 = arith.mulf %425, %631 : vector<8x128xf32>
    %633 = arith.addf %630, %632 : vector<8x128xf32>
    %634 = vector.broadcast %103 : f32 to vector<8x128xf32>
    %635 = arith.mulf %434, %634 : vector<8x128xf32>
    %636 = arith.addf %633, %635 : vector<8x128xf32>
    %637 = vector.broadcast %104 : f32 to vector<8x128xf32>
    %638 = arith.mulf %443, %637 : vector<8x128xf32>
    %639 = arith.addf %636, %638 : vector<8x128xf32>
    %640 = vector.broadcast %273 : f32 to vector<8x128xf32>
    %641 = arith.addf %639, %640 : vector<8x128xf32>
    %cst_577 = arith.constant 0.000000e+00 : f32
    %642 = vector.broadcast %cst_577 : f32 to vector<8x128xf32>
    %643 = arith.maximumf %641, %642 : vector<8x128xf32>
    %644 = vector.broadcast %288 : f32 to vector<8x128xf32>
    %645 = arith.mulf %643, %644 : vector<8x128xf32>
    %646 = arith.addf %595, %645 : vector<8x128xf32>
    %647 = vector.broadcast %105 : f32 to vector<8x128xf32>
    %648 = arith.mulf %317, %647 : vector<8x128xf32>
    %649 = vector.broadcast %106 : f32 to vector<8x128xf32>
    %650 = arith.mulf %326, %649 : vector<8x128xf32>
    %651 = arith.addf %648, %650 : vector<8x128xf32>
    %652 = vector.broadcast %107 : f32 to vector<8x128xf32>
    %653 = arith.mulf %335, %652 : vector<8x128xf32>
    %654 = arith.addf %651, %653 : vector<8x128xf32>
    %655 = vector.broadcast %108 : f32 to vector<8x128xf32>
    %656 = arith.mulf %344, %655 : vector<8x128xf32>
    %657 = arith.addf %654, %656 : vector<8x128xf32>
    %658 = vector.broadcast %109 : f32 to vector<8x128xf32>
    %659 = arith.mulf %353, %658 : vector<8x128xf32>
    %660 = arith.addf %657, %659 : vector<8x128xf32>
    %661 = vector.broadcast %110 : f32 to vector<8x128xf32>
    %662 = arith.mulf %362, %661 : vector<8x128xf32>
    %663 = arith.addf %660, %662 : vector<8x128xf32>
    %664 = vector.broadcast %111 : f32 to vector<8x128xf32>
    %665 = arith.mulf %371, %664 : vector<8x128xf32>
    %666 = arith.addf %663, %665 : vector<8x128xf32>
    %667 = vector.broadcast %112 : f32 to vector<8x128xf32>
    %668 = arith.mulf %380, %667 : vector<8x128xf32>
    %669 = arith.addf %666, %668 : vector<8x128xf32>
    %670 = vector.broadcast %113 : f32 to vector<8x128xf32>
    %671 = arith.mulf %389, %670 : vector<8x128xf32>
    %672 = arith.addf %669, %671 : vector<8x128xf32>
    %673 = vector.broadcast %114 : f32 to vector<8x128xf32>
    %674 = arith.mulf %398, %673 : vector<8x128xf32>
    %675 = arith.addf %672, %674 : vector<8x128xf32>
    %676 = vector.broadcast %115 : f32 to vector<8x128xf32>
    %677 = arith.mulf %407, %676 : vector<8x128xf32>
    %678 = arith.addf %675, %677 : vector<8x128xf32>
    %679 = vector.broadcast %116 : f32 to vector<8x128xf32>
    %680 = arith.mulf %416, %679 : vector<8x128xf32>
    %681 = arith.addf %678, %680 : vector<8x128xf32>
    %682 = vector.broadcast %117 : f32 to vector<8x128xf32>
    %683 = arith.mulf %425, %682 : vector<8x128xf32>
    %684 = arith.addf %681, %683 : vector<8x128xf32>
    %685 = vector.broadcast %118 : f32 to vector<8x128xf32>
    %686 = arith.mulf %434, %685 : vector<8x128xf32>
    %687 = arith.addf %684, %686 : vector<8x128xf32>
    %688 = vector.broadcast %119 : f32 to vector<8x128xf32>
    %689 = arith.mulf %443, %688 : vector<8x128xf32>
    %690 = arith.addf %687, %689 : vector<8x128xf32>
    %691 = vector.broadcast %274 : f32 to vector<8x128xf32>
    %692 = arith.addf %690, %691 : vector<8x128xf32>
    %cst_578 = arith.constant 0.000000e+00 : f32
    %693 = vector.broadcast %cst_578 : f32 to vector<8x128xf32>
    %694 = arith.maximumf %692, %693 : vector<8x128xf32>
    %695 = vector.broadcast %289 : f32 to vector<8x128xf32>
    %696 = arith.mulf %694, %695 : vector<8x128xf32>
    %697 = arith.addf %646, %696 : vector<8x128xf32>
    %698 = vector.broadcast %120 : f32 to vector<8x128xf32>
    %699 = arith.mulf %317, %698 : vector<8x128xf32>
    %700 = vector.broadcast %121 : f32 to vector<8x128xf32>
    %701 = arith.mulf %326, %700 : vector<8x128xf32>
    %702 = arith.addf %699, %701 : vector<8x128xf32>
    %703 = vector.broadcast %122 : f32 to vector<8x128xf32>
    %704 = arith.mulf %335, %703 : vector<8x128xf32>
    %705 = arith.addf %702, %704 : vector<8x128xf32>
    %706 = vector.broadcast %123 : f32 to vector<8x128xf32>
    %707 = arith.mulf %344, %706 : vector<8x128xf32>
    %708 = arith.addf %705, %707 : vector<8x128xf32>
    %709 = vector.broadcast %124 : f32 to vector<8x128xf32>
    %710 = arith.mulf %353, %709 : vector<8x128xf32>
    %711 = arith.addf %708, %710 : vector<8x128xf32>
    %712 = vector.broadcast %125 : f32 to vector<8x128xf32>
    %713 = arith.mulf %362, %712 : vector<8x128xf32>
    %714 = arith.addf %711, %713 : vector<8x128xf32>
    %715 = vector.broadcast %126 : f32 to vector<8x128xf32>
    %716 = arith.mulf %371, %715 : vector<8x128xf32>
    %717 = arith.addf %714, %716 : vector<8x128xf32>
    %718 = vector.broadcast %127 : f32 to vector<8x128xf32>
    %719 = arith.mulf %380, %718 : vector<8x128xf32>
    %720 = arith.addf %717, %719 : vector<8x128xf32>
    %721 = vector.broadcast %128 : f32 to vector<8x128xf32>
    %722 = arith.mulf %389, %721 : vector<8x128xf32>
    %723 = arith.addf %720, %722 : vector<8x128xf32>
    %724 = vector.broadcast %129 : f32 to vector<8x128xf32>
    %725 = arith.mulf %398, %724 : vector<8x128xf32>
    %726 = arith.addf %723, %725 : vector<8x128xf32>
    %727 = vector.broadcast %130 : f32 to vector<8x128xf32>
    %728 = arith.mulf %407, %727 : vector<8x128xf32>
    %729 = arith.addf %726, %728 : vector<8x128xf32>
    %730 = vector.broadcast %131 : f32 to vector<8x128xf32>
    %731 = arith.mulf %416, %730 : vector<8x128xf32>
    %732 = arith.addf %729, %731 : vector<8x128xf32>
    %733 = vector.broadcast %132 : f32 to vector<8x128xf32>
    %734 = arith.mulf %425, %733 : vector<8x128xf32>
    %735 = arith.addf %732, %734 : vector<8x128xf32>
    %736 = vector.broadcast %133 : f32 to vector<8x128xf32>
    %737 = arith.mulf %434, %736 : vector<8x128xf32>
    %738 = arith.addf %735, %737 : vector<8x128xf32>
    %739 = vector.broadcast %134 : f32 to vector<8x128xf32>
    %740 = arith.mulf %443, %739 : vector<8x128xf32>
    %741 = arith.addf %738, %740 : vector<8x128xf32>
    %742 = vector.broadcast %275 : f32 to vector<8x128xf32>
    %743 = arith.addf %741, %742 : vector<8x128xf32>
    %cst_579 = arith.constant 0.000000e+00 : f32
    %744 = vector.broadcast %cst_579 : f32 to vector<8x128xf32>
    %745 = arith.maximumf %743, %744 : vector<8x128xf32>
    %746 = vector.broadcast %290 : f32 to vector<8x128xf32>
    %747 = arith.mulf %745, %746 : vector<8x128xf32>
    %748 = arith.addf %697, %747 : vector<8x128xf32>
    %749 = vector.broadcast %135 : f32 to vector<8x128xf32>
    %750 = arith.mulf %317, %749 : vector<8x128xf32>
    %751 = vector.broadcast %136 : f32 to vector<8x128xf32>
    %752 = arith.mulf %326, %751 : vector<8x128xf32>
    %753 = arith.addf %750, %752 : vector<8x128xf32>
    %754 = vector.broadcast %137 : f32 to vector<8x128xf32>
    %755 = arith.mulf %335, %754 : vector<8x128xf32>
    %756 = arith.addf %753, %755 : vector<8x128xf32>
    %757 = vector.broadcast %138 : f32 to vector<8x128xf32>
    %758 = arith.mulf %344, %757 : vector<8x128xf32>
    %759 = arith.addf %756, %758 : vector<8x128xf32>
    %760 = vector.broadcast %139 : f32 to vector<8x128xf32>
    %761 = arith.mulf %353, %760 : vector<8x128xf32>
    %762 = arith.addf %759, %761 : vector<8x128xf32>
    %763 = vector.broadcast %140 : f32 to vector<8x128xf32>
    %764 = arith.mulf %362, %763 : vector<8x128xf32>
    %765 = arith.addf %762, %764 : vector<8x128xf32>
    %766 = vector.broadcast %141 : f32 to vector<8x128xf32>
    %767 = arith.mulf %371, %766 : vector<8x128xf32>
    %768 = arith.addf %765, %767 : vector<8x128xf32>
    %769 = vector.broadcast %142 : f32 to vector<8x128xf32>
    %770 = arith.mulf %380, %769 : vector<8x128xf32>
    %771 = arith.addf %768, %770 : vector<8x128xf32>
    %772 = vector.broadcast %143 : f32 to vector<8x128xf32>
    %773 = arith.mulf %389, %772 : vector<8x128xf32>
    %774 = arith.addf %771, %773 : vector<8x128xf32>
    %775 = vector.broadcast %144 : f32 to vector<8x128xf32>
    %776 = arith.mulf %398, %775 : vector<8x128xf32>
    %777 = arith.addf %774, %776 : vector<8x128xf32>
    %778 = vector.broadcast %145 : f32 to vector<8x128xf32>
    %779 = arith.mulf %407, %778 : vector<8x128xf32>
    %780 = arith.addf %777, %779 : vector<8x128xf32>
    %781 = vector.broadcast %146 : f32 to vector<8x128xf32>
    %782 = arith.mulf %416, %781 : vector<8x128xf32>
    %783 = arith.addf %780, %782 : vector<8x128xf32>
    %784 = vector.broadcast %147 : f32 to vector<8x128xf32>
    %785 = arith.mulf %425, %784 : vector<8x128xf32>
    %786 = arith.addf %783, %785 : vector<8x128xf32>
    %787 = vector.broadcast %148 : f32 to vector<8x128xf32>
    %788 = arith.mulf %434, %787 : vector<8x128xf32>
    %789 = arith.addf %786, %788 : vector<8x128xf32>
    %790 = vector.broadcast %149 : f32 to vector<8x128xf32>
    %791 = arith.mulf %443, %790 : vector<8x128xf32>
    %792 = arith.addf %789, %791 : vector<8x128xf32>
    %793 = vector.broadcast %276 : f32 to vector<8x128xf32>
    %794 = arith.addf %792, %793 : vector<8x128xf32>
    %cst_580 = arith.constant 0.000000e+00 : f32
    %795 = vector.broadcast %cst_580 : f32 to vector<8x128xf32>
    %796 = arith.maximumf %794, %795 : vector<8x128xf32>
    %797 = vector.broadcast %291 : f32 to vector<8x128xf32>
    %798 = arith.mulf %796, %797 : vector<8x128xf32>
    %799 = arith.addf %748, %798 : vector<8x128xf32>
    %800 = vector.broadcast %150 : f32 to vector<8x128xf32>
    %801 = arith.mulf %317, %800 : vector<8x128xf32>
    %802 = vector.broadcast %151 : f32 to vector<8x128xf32>
    %803 = arith.mulf %326, %802 : vector<8x128xf32>
    %804 = arith.addf %801, %803 : vector<8x128xf32>
    %805 = vector.broadcast %152 : f32 to vector<8x128xf32>
    %806 = arith.mulf %335, %805 : vector<8x128xf32>
    %807 = arith.addf %804, %806 : vector<8x128xf32>
    %808 = vector.broadcast %153 : f32 to vector<8x128xf32>
    %809 = arith.mulf %344, %808 : vector<8x128xf32>
    %810 = arith.addf %807, %809 : vector<8x128xf32>
    %811 = vector.broadcast %154 : f32 to vector<8x128xf32>
    %812 = arith.mulf %353, %811 : vector<8x128xf32>
    %813 = arith.addf %810, %812 : vector<8x128xf32>
    %814 = vector.broadcast %155 : f32 to vector<8x128xf32>
    %815 = arith.mulf %362, %814 : vector<8x128xf32>
    %816 = arith.addf %813, %815 : vector<8x128xf32>
    %817 = vector.broadcast %156 : f32 to vector<8x128xf32>
    %818 = arith.mulf %371, %817 : vector<8x128xf32>
    %819 = arith.addf %816, %818 : vector<8x128xf32>
    %820 = vector.broadcast %157 : f32 to vector<8x128xf32>
    %821 = arith.mulf %380, %820 : vector<8x128xf32>
    %822 = arith.addf %819, %821 : vector<8x128xf32>
    %823 = vector.broadcast %158 : f32 to vector<8x128xf32>
    %824 = arith.mulf %389, %823 : vector<8x128xf32>
    %825 = arith.addf %822, %824 : vector<8x128xf32>
    %826 = vector.broadcast %159 : f32 to vector<8x128xf32>
    %827 = arith.mulf %398, %826 : vector<8x128xf32>
    %828 = arith.addf %825, %827 : vector<8x128xf32>
    %829 = vector.broadcast %160 : f32 to vector<8x128xf32>
    %830 = arith.mulf %407, %829 : vector<8x128xf32>
    %831 = arith.addf %828, %830 : vector<8x128xf32>
    %832 = vector.broadcast %161 : f32 to vector<8x128xf32>
    %833 = arith.mulf %416, %832 : vector<8x128xf32>
    %834 = arith.addf %831, %833 : vector<8x128xf32>
    %835 = vector.broadcast %162 : f32 to vector<8x128xf32>
    %836 = arith.mulf %425, %835 : vector<8x128xf32>
    %837 = arith.addf %834, %836 : vector<8x128xf32>
    %838 = vector.broadcast %163 : f32 to vector<8x128xf32>
    %839 = arith.mulf %434, %838 : vector<8x128xf32>
    %840 = arith.addf %837, %839 : vector<8x128xf32>
    %841 = vector.broadcast %164 : f32 to vector<8x128xf32>
    %842 = arith.mulf %443, %841 : vector<8x128xf32>
    %843 = arith.addf %840, %842 : vector<8x128xf32>
    %844 = vector.broadcast %277 : f32 to vector<8x128xf32>
    %845 = arith.addf %843, %844 : vector<8x128xf32>
    %cst_581 = arith.constant 0.000000e+00 : f32
    %846 = vector.broadcast %cst_581 : f32 to vector<8x128xf32>
    %847 = arith.maximumf %845, %846 : vector<8x128xf32>
    %848 = vector.broadcast %292 : f32 to vector<8x128xf32>
    %849 = arith.mulf %847, %848 : vector<8x128xf32>
    %850 = arith.addf %799, %849 : vector<8x128xf32>
    %851 = vector.broadcast %165 : f32 to vector<8x128xf32>
    %852 = arith.mulf %317, %851 : vector<8x128xf32>
    %853 = vector.broadcast %166 : f32 to vector<8x128xf32>
    %854 = arith.mulf %326, %853 : vector<8x128xf32>
    %855 = arith.addf %852, %854 : vector<8x128xf32>
    %856 = vector.broadcast %167 : f32 to vector<8x128xf32>
    %857 = arith.mulf %335, %856 : vector<8x128xf32>
    %858 = arith.addf %855, %857 : vector<8x128xf32>
    %859 = vector.broadcast %168 : f32 to vector<8x128xf32>
    %860 = arith.mulf %344, %859 : vector<8x128xf32>
    %861 = arith.addf %858, %860 : vector<8x128xf32>
    %862 = vector.broadcast %169 : f32 to vector<8x128xf32>
    %863 = arith.mulf %353, %862 : vector<8x128xf32>
    %864 = arith.addf %861, %863 : vector<8x128xf32>
    %865 = vector.broadcast %170 : f32 to vector<8x128xf32>
    %866 = arith.mulf %362, %865 : vector<8x128xf32>
    %867 = arith.addf %864, %866 : vector<8x128xf32>
    %868 = vector.broadcast %171 : f32 to vector<8x128xf32>
    %869 = arith.mulf %371, %868 : vector<8x128xf32>
    %870 = arith.addf %867, %869 : vector<8x128xf32>
    %871 = vector.broadcast %172 : f32 to vector<8x128xf32>
    %872 = arith.mulf %380, %871 : vector<8x128xf32>
    %873 = arith.addf %870, %872 : vector<8x128xf32>
    %874 = vector.broadcast %173 : f32 to vector<8x128xf32>
    %875 = arith.mulf %389, %874 : vector<8x128xf32>
    %876 = arith.addf %873, %875 : vector<8x128xf32>
    %877 = vector.broadcast %174 : f32 to vector<8x128xf32>
    %878 = arith.mulf %398, %877 : vector<8x128xf32>
    %879 = arith.addf %876, %878 : vector<8x128xf32>
    %880 = vector.broadcast %175 : f32 to vector<8x128xf32>
    %881 = arith.mulf %407, %880 : vector<8x128xf32>
    %882 = arith.addf %879, %881 : vector<8x128xf32>
    %883 = vector.broadcast %176 : f32 to vector<8x128xf32>
    %884 = arith.mulf %416, %883 : vector<8x128xf32>
    %885 = arith.addf %882, %884 : vector<8x128xf32>
    %886 = vector.broadcast %177 : f32 to vector<8x128xf32>
    %887 = arith.mulf %425, %886 : vector<8x128xf32>
    %888 = arith.addf %885, %887 : vector<8x128xf32>
    %889 = vector.broadcast %178 : f32 to vector<8x128xf32>
    %890 = arith.mulf %434, %889 : vector<8x128xf32>
    %891 = arith.addf %888, %890 : vector<8x128xf32>
    %892 = vector.broadcast %179 : f32 to vector<8x128xf32>
    %893 = arith.mulf %443, %892 : vector<8x128xf32>
    %894 = arith.addf %891, %893 : vector<8x128xf32>
    %895 = vector.broadcast %278 : f32 to vector<8x128xf32>
    %896 = arith.addf %894, %895 : vector<8x128xf32>
    %cst_582 = arith.constant 0.000000e+00 : f32
    %897 = vector.broadcast %cst_582 : f32 to vector<8x128xf32>
    %898 = arith.maximumf %896, %897 : vector<8x128xf32>
    %899 = vector.broadcast %293 : f32 to vector<8x128xf32>
    %900 = arith.mulf %898, %899 : vector<8x128xf32>
    %901 = arith.addf %850, %900 : vector<8x128xf32>
    %902 = vector.broadcast %180 : f32 to vector<8x128xf32>
    %903 = arith.mulf %317, %902 : vector<8x128xf32>
    %904 = vector.broadcast %181 : f32 to vector<8x128xf32>
    %905 = arith.mulf %326, %904 : vector<8x128xf32>
    %906 = arith.addf %903, %905 : vector<8x128xf32>
    %907 = vector.broadcast %182 : f32 to vector<8x128xf32>
    %908 = arith.mulf %335, %907 : vector<8x128xf32>
    %909 = arith.addf %906, %908 : vector<8x128xf32>
    %910 = vector.broadcast %183 : f32 to vector<8x128xf32>
    %911 = arith.mulf %344, %910 : vector<8x128xf32>
    %912 = arith.addf %909, %911 : vector<8x128xf32>
    %913 = vector.broadcast %184 : f32 to vector<8x128xf32>
    %914 = arith.mulf %353, %913 : vector<8x128xf32>
    %915 = arith.addf %912, %914 : vector<8x128xf32>
    %916 = vector.broadcast %185 : f32 to vector<8x128xf32>
    %917 = arith.mulf %362, %916 : vector<8x128xf32>
    %918 = arith.addf %915, %917 : vector<8x128xf32>
    %919 = vector.broadcast %186 : f32 to vector<8x128xf32>
    %920 = arith.mulf %371, %919 : vector<8x128xf32>
    %921 = arith.addf %918, %920 : vector<8x128xf32>
    %922 = vector.broadcast %187 : f32 to vector<8x128xf32>
    %923 = arith.mulf %380, %922 : vector<8x128xf32>
    %924 = arith.addf %921, %923 : vector<8x128xf32>
    %925 = vector.broadcast %188 : f32 to vector<8x128xf32>
    %926 = arith.mulf %389, %925 : vector<8x128xf32>
    %927 = arith.addf %924, %926 : vector<8x128xf32>
    %928 = vector.broadcast %189 : f32 to vector<8x128xf32>
    %929 = arith.mulf %398, %928 : vector<8x128xf32>
    %930 = arith.addf %927, %929 : vector<8x128xf32>
    %931 = vector.broadcast %190 : f32 to vector<8x128xf32>
    %932 = arith.mulf %407, %931 : vector<8x128xf32>
    %933 = arith.addf %930, %932 : vector<8x128xf32>
    %934 = vector.broadcast %191 : f32 to vector<8x128xf32>
    %935 = arith.mulf %416, %934 : vector<8x128xf32>
    %936 = arith.addf %933, %935 : vector<8x128xf32>
    %937 = vector.broadcast %192 : f32 to vector<8x128xf32>
    %938 = arith.mulf %425, %937 : vector<8x128xf32>
    %939 = arith.addf %936, %938 : vector<8x128xf32>
    %940 = vector.broadcast %193 : f32 to vector<8x128xf32>
    %941 = arith.mulf %434, %940 : vector<8x128xf32>
    %942 = arith.addf %939, %941 : vector<8x128xf32>
    %943 = vector.broadcast %194 : f32 to vector<8x128xf32>
    %944 = arith.mulf %443, %943 : vector<8x128xf32>
    %945 = arith.addf %942, %944 : vector<8x128xf32>
    %946 = vector.broadcast %279 : f32 to vector<8x128xf32>
    %947 = arith.addf %945, %946 : vector<8x128xf32>
    %cst_583 = arith.constant 0.000000e+00 : f32
    %948 = vector.broadcast %cst_583 : f32 to vector<8x128xf32>
    %949 = arith.maximumf %947, %948 : vector<8x128xf32>
    %950 = vector.broadcast %294 : f32 to vector<8x128xf32>
    %951 = arith.mulf %949, %950 : vector<8x128xf32>
    %952 = arith.addf %901, %951 : vector<8x128xf32>
    %953 = vector.broadcast %195 : f32 to vector<8x128xf32>
    %954 = arith.mulf %317, %953 : vector<8x128xf32>
    %955 = vector.broadcast %196 : f32 to vector<8x128xf32>
    %956 = arith.mulf %326, %955 : vector<8x128xf32>
    %957 = arith.addf %954, %956 : vector<8x128xf32>
    %958 = vector.broadcast %197 : f32 to vector<8x128xf32>
    %959 = arith.mulf %335, %958 : vector<8x128xf32>
    %960 = arith.addf %957, %959 : vector<8x128xf32>
    %961 = vector.broadcast %198 : f32 to vector<8x128xf32>
    %962 = arith.mulf %344, %961 : vector<8x128xf32>
    %963 = arith.addf %960, %962 : vector<8x128xf32>
    %964 = vector.broadcast %199 : f32 to vector<8x128xf32>
    %965 = arith.mulf %353, %964 : vector<8x128xf32>
    %966 = arith.addf %963, %965 : vector<8x128xf32>
    %967 = vector.broadcast %200 : f32 to vector<8x128xf32>
    %968 = arith.mulf %362, %967 : vector<8x128xf32>
    %969 = arith.addf %966, %968 : vector<8x128xf32>
    %970 = vector.broadcast %201 : f32 to vector<8x128xf32>
    %971 = arith.mulf %371, %970 : vector<8x128xf32>
    %972 = arith.addf %969, %971 : vector<8x128xf32>
    %973 = vector.broadcast %202 : f32 to vector<8x128xf32>
    %974 = arith.mulf %380, %973 : vector<8x128xf32>
    %975 = arith.addf %972, %974 : vector<8x128xf32>
    %976 = vector.broadcast %203 : f32 to vector<8x128xf32>
    %977 = arith.mulf %389, %976 : vector<8x128xf32>
    %978 = arith.addf %975, %977 : vector<8x128xf32>
    %979 = vector.broadcast %204 : f32 to vector<8x128xf32>
    %980 = arith.mulf %398, %979 : vector<8x128xf32>
    %981 = arith.addf %978, %980 : vector<8x128xf32>
    %982 = vector.broadcast %205 : f32 to vector<8x128xf32>
    %983 = arith.mulf %407, %982 : vector<8x128xf32>
    %984 = arith.addf %981, %983 : vector<8x128xf32>
    %985 = vector.broadcast %206 : f32 to vector<8x128xf32>
    %986 = arith.mulf %416, %985 : vector<8x128xf32>
    %987 = arith.addf %984, %986 : vector<8x128xf32>
    %988 = vector.broadcast %207 : f32 to vector<8x128xf32>
    %989 = arith.mulf %425, %988 : vector<8x128xf32>
    %990 = arith.addf %987, %989 : vector<8x128xf32>
    %991 = vector.broadcast %208 : f32 to vector<8x128xf32>
    %992 = arith.mulf %434, %991 : vector<8x128xf32>
    %993 = arith.addf %990, %992 : vector<8x128xf32>
    %994 = vector.broadcast %209 : f32 to vector<8x128xf32>
    %995 = arith.mulf %443, %994 : vector<8x128xf32>
    %996 = arith.addf %993, %995 : vector<8x128xf32>
    %997 = vector.broadcast %280 : f32 to vector<8x128xf32>
    %998 = arith.addf %996, %997 : vector<8x128xf32>
    %cst_584 = arith.constant 0.000000e+00 : f32
    %999 = vector.broadcast %cst_584 : f32 to vector<8x128xf32>
    %1000 = arith.maximumf %998, %999 : vector<8x128xf32>
    %1001 = vector.broadcast %295 : f32 to vector<8x128xf32>
    %1002 = arith.mulf %1000, %1001 : vector<8x128xf32>
    %1003 = arith.addf %952, %1002 : vector<8x128xf32>
    %1004 = vector.broadcast %210 : f32 to vector<8x128xf32>
    %1005 = arith.mulf %317, %1004 : vector<8x128xf32>
    %1006 = vector.broadcast %211 : f32 to vector<8x128xf32>
    %1007 = arith.mulf %326, %1006 : vector<8x128xf32>
    %1008 = arith.addf %1005, %1007 : vector<8x128xf32>
    %1009 = vector.broadcast %212 : f32 to vector<8x128xf32>
    %1010 = arith.mulf %335, %1009 : vector<8x128xf32>
    %1011 = arith.addf %1008, %1010 : vector<8x128xf32>
    %1012 = vector.broadcast %213 : f32 to vector<8x128xf32>
    %1013 = arith.mulf %344, %1012 : vector<8x128xf32>
    %1014 = arith.addf %1011, %1013 : vector<8x128xf32>
    %1015 = vector.broadcast %214 : f32 to vector<8x128xf32>
    %1016 = arith.mulf %353, %1015 : vector<8x128xf32>
    %1017 = arith.addf %1014, %1016 : vector<8x128xf32>
    %1018 = vector.broadcast %215 : f32 to vector<8x128xf32>
    %1019 = arith.mulf %362, %1018 : vector<8x128xf32>
    %1020 = arith.addf %1017, %1019 : vector<8x128xf32>
    %1021 = vector.broadcast %216 : f32 to vector<8x128xf32>
    %1022 = arith.mulf %371, %1021 : vector<8x128xf32>
    %1023 = arith.addf %1020, %1022 : vector<8x128xf32>
    %1024 = vector.broadcast %217 : f32 to vector<8x128xf32>
    %1025 = arith.mulf %380, %1024 : vector<8x128xf32>
    %1026 = arith.addf %1023, %1025 : vector<8x128xf32>
    %1027 = vector.broadcast %218 : f32 to vector<8x128xf32>
    %1028 = arith.mulf %389, %1027 : vector<8x128xf32>
    %1029 = arith.addf %1026, %1028 : vector<8x128xf32>
    %1030 = vector.broadcast %219 : f32 to vector<8x128xf32>
    %1031 = arith.mulf %398, %1030 : vector<8x128xf32>
    %1032 = arith.addf %1029, %1031 : vector<8x128xf32>
    %1033 = vector.broadcast %220 : f32 to vector<8x128xf32>
    %1034 = arith.mulf %407, %1033 : vector<8x128xf32>
    %1035 = arith.addf %1032, %1034 : vector<8x128xf32>
    %1036 = vector.broadcast %221 : f32 to vector<8x128xf32>
    %1037 = arith.mulf %416, %1036 : vector<8x128xf32>
    %1038 = arith.addf %1035, %1037 : vector<8x128xf32>
    %1039 = vector.broadcast %222 : f32 to vector<8x128xf32>
    %1040 = arith.mulf %425, %1039 : vector<8x128xf32>
    %1041 = arith.addf %1038, %1040 : vector<8x128xf32>
    %1042 = vector.broadcast %223 : f32 to vector<8x128xf32>
    %1043 = arith.mulf %434, %1042 : vector<8x128xf32>
    %1044 = arith.addf %1041, %1043 : vector<8x128xf32>
    %1045 = vector.broadcast %224 : f32 to vector<8x128xf32>
    %1046 = arith.mulf %443, %1045 : vector<8x128xf32>
    %1047 = arith.addf %1044, %1046 : vector<8x128xf32>
    %1048 = vector.broadcast %281 : f32 to vector<8x128xf32>
    %1049 = arith.addf %1047, %1048 : vector<8x128xf32>
    %cst_585 = arith.constant 0.000000e+00 : f32
    %1050 = vector.broadcast %cst_585 : f32 to vector<8x128xf32>
    %1051 = arith.maximumf %1049, %1050 : vector<8x128xf32>
    %1052 = vector.broadcast %296 : f32 to vector<8x128xf32>
    %1053 = arith.mulf %1051, %1052 : vector<8x128xf32>
    %1054 = arith.addf %1003, %1053 : vector<8x128xf32>
    %1055 = vector.broadcast %225 : f32 to vector<8x128xf32>
    %1056 = arith.mulf %317, %1055 : vector<8x128xf32>
    %1057 = vector.broadcast %226 : f32 to vector<8x128xf32>
    %1058 = arith.mulf %326, %1057 : vector<8x128xf32>
    %1059 = arith.addf %1056, %1058 : vector<8x128xf32>
    %1060 = vector.broadcast %227 : f32 to vector<8x128xf32>
    %1061 = arith.mulf %335, %1060 : vector<8x128xf32>
    %1062 = arith.addf %1059, %1061 : vector<8x128xf32>
    %1063 = vector.broadcast %228 : f32 to vector<8x128xf32>
    %1064 = arith.mulf %344, %1063 : vector<8x128xf32>
    %1065 = arith.addf %1062, %1064 : vector<8x128xf32>
    %1066 = vector.broadcast %229 : f32 to vector<8x128xf32>
    %1067 = arith.mulf %353, %1066 : vector<8x128xf32>
    %1068 = arith.addf %1065, %1067 : vector<8x128xf32>
    %1069 = vector.broadcast %230 : f32 to vector<8x128xf32>
    %1070 = arith.mulf %362, %1069 : vector<8x128xf32>
    %1071 = arith.addf %1068, %1070 : vector<8x128xf32>
    %1072 = vector.broadcast %231 : f32 to vector<8x128xf32>
    %1073 = arith.mulf %371, %1072 : vector<8x128xf32>
    %1074 = arith.addf %1071, %1073 : vector<8x128xf32>
    %1075 = vector.broadcast %232 : f32 to vector<8x128xf32>
    %1076 = arith.mulf %380, %1075 : vector<8x128xf32>
    %1077 = arith.addf %1074, %1076 : vector<8x128xf32>
    %1078 = vector.broadcast %233 : f32 to vector<8x128xf32>
    %1079 = arith.mulf %389, %1078 : vector<8x128xf32>
    %1080 = arith.addf %1077, %1079 : vector<8x128xf32>
    %1081 = vector.broadcast %234 : f32 to vector<8x128xf32>
    %1082 = arith.mulf %398, %1081 : vector<8x128xf32>
    %1083 = arith.addf %1080, %1082 : vector<8x128xf32>
    %1084 = vector.broadcast %235 : f32 to vector<8x128xf32>
    %1085 = arith.mulf %407, %1084 : vector<8x128xf32>
    %1086 = arith.addf %1083, %1085 : vector<8x128xf32>
    %1087 = vector.broadcast %236 : f32 to vector<8x128xf32>
    %1088 = arith.mulf %416, %1087 : vector<8x128xf32>
    %1089 = arith.addf %1086, %1088 : vector<8x128xf32>
    %1090 = vector.broadcast %237 : f32 to vector<8x128xf32>
    %1091 = arith.mulf %425, %1090 : vector<8x128xf32>
    %1092 = arith.addf %1089, %1091 : vector<8x128xf32>
    %1093 = vector.broadcast %238 : f32 to vector<8x128xf32>
    %1094 = arith.mulf %434, %1093 : vector<8x128xf32>
    %1095 = arith.addf %1092, %1094 : vector<8x128xf32>
    %1096 = vector.broadcast %239 : f32 to vector<8x128xf32>
    %1097 = arith.mulf %443, %1096 : vector<8x128xf32>
    %1098 = arith.addf %1095, %1097 : vector<8x128xf32>
    %1099 = vector.broadcast %282 : f32 to vector<8x128xf32>
    %1100 = arith.addf %1098, %1099 : vector<8x128xf32>
    %cst_586 = arith.constant 0.000000e+00 : f32
    %1101 = vector.broadcast %cst_586 : f32 to vector<8x128xf32>
    %1102 = arith.maximumf %1100, %1101 : vector<8x128xf32>
    %1103 = vector.broadcast %297 : f32 to vector<8x128xf32>
    %1104 = arith.mulf %1102, %1103 : vector<8x128xf32>
    %1105 = arith.addf %1054, %1104 : vector<8x128xf32>
    %1106 = vector.broadcast %240 : f32 to vector<8x128xf32>
    %1107 = arith.mulf %317, %1106 : vector<8x128xf32>
    %1108 = vector.broadcast %241 : f32 to vector<8x128xf32>
    %1109 = arith.mulf %326, %1108 : vector<8x128xf32>
    %1110 = arith.addf %1107, %1109 : vector<8x128xf32>
    %1111 = vector.broadcast %242 : f32 to vector<8x128xf32>
    %1112 = arith.mulf %335, %1111 : vector<8x128xf32>
    %1113 = arith.addf %1110, %1112 : vector<8x128xf32>
    %1114 = vector.broadcast %243 : f32 to vector<8x128xf32>
    %1115 = arith.mulf %344, %1114 : vector<8x128xf32>
    %1116 = arith.addf %1113, %1115 : vector<8x128xf32>
    %1117 = vector.broadcast %244 : f32 to vector<8x128xf32>
    %1118 = arith.mulf %353, %1117 : vector<8x128xf32>
    %1119 = arith.addf %1116, %1118 : vector<8x128xf32>
    %1120 = vector.broadcast %245 : f32 to vector<8x128xf32>
    %1121 = arith.mulf %362, %1120 : vector<8x128xf32>
    %1122 = arith.addf %1119, %1121 : vector<8x128xf32>
    %1123 = vector.broadcast %246 : f32 to vector<8x128xf32>
    %1124 = arith.mulf %371, %1123 : vector<8x128xf32>
    %1125 = arith.addf %1122, %1124 : vector<8x128xf32>
    %1126 = vector.broadcast %247 : f32 to vector<8x128xf32>
    %1127 = arith.mulf %380, %1126 : vector<8x128xf32>
    %1128 = arith.addf %1125, %1127 : vector<8x128xf32>
    %1129 = vector.broadcast %248 : f32 to vector<8x128xf32>
    %1130 = arith.mulf %389, %1129 : vector<8x128xf32>
    %1131 = arith.addf %1128, %1130 : vector<8x128xf32>
    %1132 = vector.broadcast %249 : f32 to vector<8x128xf32>
    %1133 = arith.mulf %398, %1132 : vector<8x128xf32>
    %1134 = arith.addf %1131, %1133 : vector<8x128xf32>
    %1135 = vector.broadcast %250 : f32 to vector<8x128xf32>
    %1136 = arith.mulf %407, %1135 : vector<8x128xf32>
    %1137 = arith.addf %1134, %1136 : vector<8x128xf32>
    %1138 = vector.broadcast %251 : f32 to vector<8x128xf32>
    %1139 = arith.mulf %416, %1138 : vector<8x128xf32>
    %1140 = arith.addf %1137, %1139 : vector<8x128xf32>
    %1141 = vector.broadcast %252 : f32 to vector<8x128xf32>
    %1142 = arith.mulf %425, %1141 : vector<8x128xf32>
    %1143 = arith.addf %1140, %1142 : vector<8x128xf32>
    %1144 = vector.broadcast %253 : f32 to vector<8x128xf32>
    %1145 = arith.mulf %434, %1144 : vector<8x128xf32>
    %1146 = arith.addf %1143, %1145 : vector<8x128xf32>
    %1147 = vector.broadcast %254 : f32 to vector<8x128xf32>
    %1148 = arith.mulf %443, %1147 : vector<8x128xf32>
    %1149 = arith.addf %1146, %1148 : vector<8x128xf32>
    %1150 = vector.broadcast %283 : f32 to vector<8x128xf32>
    %1151 = arith.addf %1149, %1150 : vector<8x128xf32>
    %cst_587 = arith.constant 0.000000e+00 : f32
    %1152 = vector.broadcast %cst_587 : f32 to vector<8x128xf32>
    %1153 = arith.maximumf %1151, %1152 : vector<8x128xf32>
    %1154 = vector.broadcast %298 : f32 to vector<8x128xf32>
    %1155 = arith.mulf %1153, %1154 : vector<8x128xf32>
    %1156 = arith.addf %1105, %1155 : vector<8x128xf32>
    %1157 = vector.broadcast %255 : f32 to vector<8x128xf32>
    %1158 = arith.mulf %317, %1157 : vector<8x128xf32>
    %1159 = vector.broadcast %256 : f32 to vector<8x128xf32>
    %1160 = arith.mulf %326, %1159 : vector<8x128xf32>
    %1161 = arith.addf %1158, %1160 : vector<8x128xf32>
    %1162 = vector.broadcast %257 : f32 to vector<8x128xf32>
    %1163 = arith.mulf %335, %1162 : vector<8x128xf32>
    %1164 = arith.addf %1161, %1163 : vector<8x128xf32>
    %1165 = vector.broadcast %258 : f32 to vector<8x128xf32>
    %1166 = arith.mulf %344, %1165 : vector<8x128xf32>
    %1167 = arith.addf %1164, %1166 : vector<8x128xf32>
    %1168 = vector.broadcast %259 : f32 to vector<8x128xf32>
    %1169 = arith.mulf %353, %1168 : vector<8x128xf32>
    %1170 = arith.addf %1167, %1169 : vector<8x128xf32>
    %1171 = vector.broadcast %260 : f32 to vector<8x128xf32>
    %1172 = arith.mulf %362, %1171 : vector<8x128xf32>
    %1173 = arith.addf %1170, %1172 : vector<8x128xf32>
    %1174 = vector.broadcast %261 : f32 to vector<8x128xf32>
    %1175 = arith.mulf %371, %1174 : vector<8x128xf32>
    %1176 = arith.addf %1173, %1175 : vector<8x128xf32>
    %1177 = vector.broadcast %262 : f32 to vector<8x128xf32>
    %1178 = arith.mulf %380, %1177 : vector<8x128xf32>
    %1179 = arith.addf %1176, %1178 : vector<8x128xf32>
    %1180 = vector.broadcast %263 : f32 to vector<8x128xf32>
    %1181 = arith.mulf %389, %1180 : vector<8x128xf32>
    %1182 = arith.addf %1179, %1181 : vector<8x128xf32>
    %1183 = vector.broadcast %264 : f32 to vector<8x128xf32>
    %1184 = arith.mulf %398, %1183 : vector<8x128xf32>
    %1185 = arith.addf %1182, %1184 : vector<8x128xf32>
    %1186 = vector.broadcast %265 : f32 to vector<8x128xf32>
    %1187 = arith.mulf %407, %1186 : vector<8x128xf32>
    %1188 = arith.addf %1185, %1187 : vector<8x128xf32>
    %1189 = vector.broadcast %266 : f32 to vector<8x128xf32>
    %1190 = arith.mulf %416, %1189 : vector<8x128xf32>
    %1191 = arith.addf %1188, %1190 : vector<8x128xf32>
    %1192 = vector.broadcast %267 : f32 to vector<8x128xf32>
    %1193 = arith.mulf %425, %1192 : vector<8x128xf32>
    %1194 = arith.addf %1191, %1193 : vector<8x128xf32>
    %1195 = vector.broadcast %268 : f32 to vector<8x128xf32>
    %1196 = arith.mulf %434, %1195 : vector<8x128xf32>
    %1197 = arith.addf %1194, %1196 : vector<8x128xf32>
    %1198 = vector.broadcast %269 : f32 to vector<8x128xf32>
    %1199 = arith.mulf %443, %1198 : vector<8x128xf32>
    %1200 = arith.addf %1197, %1199 : vector<8x128xf32>
    %1201 = vector.broadcast %284 : f32 to vector<8x128xf32>
    %1202 = arith.addf %1200, %1201 : vector<8x128xf32>
    %cst_588 = arith.constant 0.000000e+00 : f32
    %1203 = vector.broadcast %cst_588 : f32 to vector<8x128xf32>
    %1204 = arith.maximumf %1202, %1203 : vector<8x128xf32>
    %1205 = vector.broadcast %299 : f32 to vector<8x128xf32>
    %1206 = arith.mulf %1204, %1205 : vector<8x128xf32>
    %1207 = arith.addf %1156, %1206 : vector<8x128xf32>
    %1208 = vector.broadcast %300 : f32 to vector<8x128xf32>
    %1209 = arith.addf %1207, %1208 : vector<8x128xf32>
    %cst_589 = arith.constant 0.000000e+00 : f32
    %1210 = vector.broadcast %cst_589 : f32 to vector<8x128xf32>
    %1211 = arith.maximumf %1209, %1210 : vector<8x128xf32>
    %1212 = arith.index_cast %302 : i32 to index
    %c0_590 = arith.constant 0 : index
    %1213 = vector.load %arg8[%1212, %c0_590] : memref<8x128xf32, #tpu.memory_space<vmem>>, vector<8x128xf32>
    tpu.vector_store %arg8[%1212, %c0_590], %1211 {strides = array<i32>} : memref<8x128xf32, #tpu.memory_space<vmem>>, vector<8x128xf32>,
    %c1_i32 = arith.constant 1 : i32
    return
  }
  func.func @transform_0(%arg0: i32) -> (i32, i32, i32) {
    %c0_i32 = arith.constant 0 : i32
    %c0_i32_0 = arith.constant 0 : i32
    %c0_i32_1 = arith.constant 0 : i32
    return %c0_i32, %arg0, %c0_i32_0 : i32, i32, i32
  }
  func.func @transform_1(%arg0: i32) -> (i32, i32) {
    %c0_i32 = arith.constant 0 : i32
    %c0_i32_0 = arith.constant 0 : i32
    %c0_i32_1 = arith.constant 0 : i32
    return %c0_i32, %c0_i32_0 : i32, i32
  }
  func.func @transform_2(%arg0: i32) -> i32 {
    %c0_i32 = arith.constant 0 : i32
    %c0_i32_0 = arith.constant 0 : i32
    return %c0_i32 : i32
  }
  func.func @transform_3(%arg0: i32) -> (i32, i32) {
    %c0_i32 = arith.constant 0 : i32
    %c0_i32_0 = arith.constant 0 : i32
    %c0_i32_1 = arith.constant 0 : i32
    return %c0_i32, %c0_i32_0 : i32, i32
  }
  func.func @transform_4(%arg0: i32) -> i32 {
    %c0_i32 = arith.constant 0 : i32
    %c0_i32_0 = arith.constant 0 : i32
    return %c0_i32 : i32
  }
  func.func @transform_5(%arg0: i32) -> (i32, i32) {
    %c0_i32 = arith.constant 0 : i32
    %c0_i32_0 = arith.constant 0 : i32
    %c0_i32_1 = arith.constant 0 : i32
    return %c0_i32, %c0_i32_0 : i32, i32
  }
  func.func @transform_6(%arg0: i32) -> i32 {
    %c0_i32 = arith.constant 0 : i32
    %c0_i32_0 = arith.constant 0 : i32
    return %c0_i32 : i32
  }
  func.func @transform_7(%arg0: i32) -> (i32, i32) {
    %c0_i32 = arith.constant 0 : i32
    %c0_i32_0 = arith.constant 0 : i32
    return %arg0, %c0_i32 : i32, i32
  }
}

</mosaic_0001>

<llo_original>
// kernel: ta130_fuel_nn.1
$region0: #{ta130_fuel_nn.1}
  #allocation0 [shape = 'u32[]', space=smem, size = 0x4, offset = 0x4, fixed_abs, tag = 'smem constant byte address 0x4 - core index']
  #allocation1 [shape = 'u32[144,128]{1,0:T(1,128)}', space=vmem, size = 0x12000, scoped, tag = 'internal scratch']
  #allocation2 [shape = 'f32[1]{0:T(128)S(6)}', space=smem, size = 0x200, scoped, tag = 'scoped memory for ta130_fuel_nn.1']
  %s0 = inlined_call_operand.vmem [shape: f32[2,8,128], index: 0, kind: input, shape index: {}]
  %s1 = inlined_call_operand.vmem [shape: f32[15,2], index: 1, kind: input, shape index: {}]
  %s2 = inlined_call_operand.vmem [shape: f32[15], index: 2, kind: input, shape index: {}]
  %s3 = inlined_call_operand.vmem [shape: f32[15,15], index: 3, kind: input, shape index: {}]
  %s4 = inlined_call_operand.vmem [shape: f32[15], index: 4, kind: input, shape index: {}]
  %s5 = inlined_call_operand.vmem [shape: f32[1,15], index: 5, kind: input, shape index: {}]
  %s6 = inlined_call_operand.<no memory space> [shape: f32[1], index: 6, kind: input, shape index: {}]
  %s7 = inlined_call_operand.vmem [shape: f32[8,128], index: 7, kind: output, shape index: {}]
  %s8 = sld [smem:[#allocation0]]
  $region58: #{ta130_fuel_nn.1} parent=0
    _
  %s10 = ssub.s32 1, %s8
  %s11 = scalar_select 0, %s10, %s8
  %12 = sst [smem:[#allocation2]] %s6
  $region1: #{ta130_fuel_nn.1} parent=0
    #allocation3 [shape = 'u8[8192]{0}', space=smem, size = 0x2000, scoped, tag = 'input window, operand 1, single buffered']
    #allocation4 [shape = 's32[1]{0}', space=sflag, size = 0x4, scoped, tag = 'scoped memory for ta130_fuel_nn.1']
    #allocation5 [shape = 'u8[512]{0}', space=smem, size = 0x200, scoped, tag = 'input window, operand 2, single buffered']
    #allocation6 [shape = 's32[1]{0}', space=sflag, size = 0x4, scoped, tag = 'scoped memory for ta130_fuel_nn.1']
    #allocation7 [shape = 'u8[8192]{0}', space=smem, size = 0x2000, scoped, tag = 'input window, operand 3, single buffered']
    #allocation8 [shape = 'u8[512]{0}', space=smem, size = 0x200, scoped, tag = 'input window, operand 4, single buffered']
    #allocation9 [shape = 's32[1]{0}', space=sflag, size = 0x4, scoped, tag = 'scoped memory for ta130_fuel_nn.1']
    #allocation10 [shape = 'u8[512]{0}', space=smem, size = 0x200, scoped, tag = 'input window, operand 5, single buffered']
    %13 = vsyncpa [#allocation4], 0
    %14 = vsyncpa [#allocation6], 0
    %15 = vsyncpa [#allocation9], 0
    // Predicated region
    $region2: #{ta130_fuel_nn.1} parent=1 // pred_check
      _
    $region3: #{ta130_fuel_nn.1} parent=1 // pred_check_branch
      %17 = sbr.rel (0) target = $region5
    $region4: #{ta130_fuel_nn.1} parent=1 // pred_region
      _
    $region5: #{ta130_fuel_nn.1} parent=1 // pred_fallthru
      _
    // Predicated region
    $region6: #{ta130_fuel_nn.1} parent=1 // pred_check
      _
    $region7: #{ta130_fuel_nn.1} parent=1 // pred_check_branch
      %19 = sbr.rel (0) target = $region9
    $region8: #{ta130_fuel_nn.1} parent=1 // pred_region
      %s21 = ssub.s32 256, 256
      %22 = vsyncadd [#allocation4], %s21
      %s23 = sshll.u32 %s1, 4
      %s24 = int_to_ptr.vmem [resolvable:$true] %s23
      %29 = dma.vmem_to_smem %s24, 256, [#allocation3], [#allocation4], 128, 128, 8
    $region9: #{ta130_fuel_nn.1} parent=1 // pred_fallthru
      _
    // Predicated region
    $region10: #{ta130_fuel_nn.1} parent=1 // pred_check
      _
    $region11: #{ta130_fuel_nn.1} parent=1 // pred_check_branch
      %31 = sbr.rel (0) target = $region13
    $region12: #{ta130_fuel_nn.1} parent=1 // pred_region
      %s33 = ssub.s32 16, 16
      %34 = vsyncadd [#allocation6], %s33
      %s36 = sshll.u32 %s2, 4
      %s37 = int_to_ptr.vmem [resolvable:$true] %s36
      %39 = dma.vmem_to_smem %s37, 16, [#allocation5], [#allocation6]
    $region13: #{ta130_fuel_nn.1} parent=1 // pred_fallthru
      _
    // Predicated region
    $region14: #{ta130_fuel_nn.1} parent=1 // pred_check
      _
    $region15: #{ta130_fuel_nn.1} parent=1 // pred_check_branch
      %41 = sbr.rel (0) target = $region17
    $region16: #{ta130_fuel_nn.1} parent=1 // pred_region
      %s43 = ssub.s32 256, 256
      %44 = vsyncadd [#allocation6], %s43
      %s45 = sshll.u32 %s3, 4
      %s46 = int_to_ptr.vmem [resolvable:$true] %s45
      %51 = dma.vmem_to_smem %s46, 256, [#allocation7], [#allocation6], 128, 128, 8
    $region17: #{ta130_fuel_nn.1} parent=1 // pred_fallthru
      _
    // Predicated region
    $region18: #{ta130_fuel_nn.1} parent=1 // pred_check
      _
    $region19: #{ta130_fuel_nn.1} parent=1 // pred_check_branch
      %53 = sbr.rel (0) target = $region21
    $region20: #{ta130_fuel_nn.1} parent=1 // pred_region
      %s55 = ssub.s32 16, 16
      %56 = vsyncadd [#allocation9], %s55
      %s58 = sshll.u32 %s4, 4
      %s59 = int_to_ptr.vmem [resolvable:$true] %s58
      %61 = dma.vmem_to_smem %s59, 16, [#allocation8], [#allocation9]
    $region21: #{ta130_fuel_nn.1} parent=1 // pred_fallthru
      _
    // Predicated region
    $region22: #{ta130_fuel_nn.1} parent=1 // pred_check
      _
    $region23: #{ta130_fuel_nn.1} parent=1 // pred_check_branch
      %63 = sbr.rel (0) target = $region25
    $region24: #{ta130_fuel_nn.1} parent=1 // pred_region
      %s65 = ssub.s32 16, 16
      %66 = vsyncadd [#allocation9], %s65
      %s68 = sshll.u32 %s5, 4
      %s69 = int_to_ptr.vmem [resolvable:$true] %s68
      %71 = dma.vmem_to_smem %s69, 16, [#allocation10], [#allocation9]
    $region25: #{ta130_fuel_nn.1} parent=1 // pred_fallthru
      _
    // Predicated region
    $region26: #{ta130_fuel_nn.1} parent=1 // pred_check
      _
    $region27: #{ta130_fuel_nn.1} parent=1 // pred_check_branch
      %73 = sbr.rel (0) target = $region29
    $region28: #{ta130_fuel_nn.1} parent=1 // pred_region
      _
    $region29: #{ta130_fuel_nn.1} parent=1 // pred_fallthru
      _
    // Predicated region
    $region30: #{ta130_fuel_nn.1} parent=1 // pred_check
      _
    $region31: #{ta130_fuel_nn.1} parent=1 // pred_check_branch
      %75 = sbr.rel (0) target = $region33
    $region32: #{ta130_fuel_nn.1} parent=1 // pred_region
      %76 = dma.done [#allocation4], 256
    $region33: #{ta130_fuel_nn.1} parent=1 // pred_fallthru
      _
    // Predicated region
    $region34: #{ta130_fuel_nn.1} parent=1 // pred_check
      _
    $region35: #{ta130_fuel_nn.1} parent=1 // pred_check_branch
      %78 = sbr.rel (0) target = $region37
    $region36: #{ta130_fuel_nn.1} parent=1 // pred_region
      %79 = dma.done [#allocation6], 16
    $region37: #{ta130_fuel_nn.1} parent=1 // pred_fallthru
      _
    // Predicated region
    $region38: #{ta130_fuel_nn.1} parent=1 // pred_check
      _
    $region39: #{ta130_fuel_nn.1} parent=1 // pred_check_branch
      %81 = sbr.rel (0) target = $region41
    $region40: #{ta130_fuel_nn.1} parent=1 // pred_region
      %82 = dma.done [#allocation6], 256
    $region41: #{ta130_fuel_nn.1} parent=1 // pred_fallthru
      _
    // Predicated region
    $region42: #{ta130_fuel_nn.1} parent=1 // pred_check
      _
    $region43: #{ta130_fuel_nn.1} parent=1 // pred_check_branch
      %84 = sbr.rel (0) target = $region45
    $region44: #{ta130_fuel_nn.1} parent=1 // pred_region
      %85 = dma.done [#allocation9], 16
    $region45: #{ta130_fuel_nn.1} parent=1 // pred_fallthru
      _
    // Predicated region
    $region46: #{ta130_fuel_nn.1} parent=1 // pred_check
      _
    $region47: #{ta130_fuel_nn.1} parent=1 // pred_check_branch
      %87 = sbr.rel (0) target = $region49
    $region48: #{ta130_fuel_nn.1} parent=1 // pred_region
      %88 = dma.done [#allocation9], 16
    $region49: #{ta130_fuel_nn.1} parent=1 // pred_fallthru
      _
    %89 = sfence
    %s90 = sld [smem:[#allocation3]]
    %s91 = sld [smem:[#allocation3 + $0x1]]
    %s92 = sld [smem:[#allocation3 + $0x80]]
    %s93 = sld [smem:[#allocation3 + $0x81]]
    %s94 = sld [smem:[#allocation3 + $0x100]]
    %s95 = sld [smem:[#allocation3 + $0x101]]
    %s96 = sld [smem:[#allocation3 + $0x180]]
    %s97 = sld [smem:[#allocation3 + $0x181]]
    %s98 = sld [smem:[#allocation3 + $0x200]]
    %s99 = sld [smem:[#allocation3 + $0x201]]
    %s100 = sld [smem:[#allocation3 + $0x280]]
    %s101 = sld [smem:[#allocation3 + $0x281]]
    %s102 = sld [smem:[#allocation3 + $0x300]]
    %s103 = sld [smem:[#allocation3 + $0x301]]
    %s104 = sld [smem:[#allocation3 + $0x380]]
    %s105 = sld [smem:[#allocation3 + $0x381]]
    %s106 = sld [smem:[#allocation3 + $0x400]]
    %s107 = sld [smem:[#allocation3 + $0x401]]
    %s108 = sld [smem:[#allocation3 + $0x480]]
    %s109 = sld [smem:[#allocation3 + $0x481]]
    %s110 = sld [smem:[#allocation3 + $0x500]]
    %s111 = sld [smem:[#allocation3 + $0x501]]
    %s112 = sld [smem:[#allocation3 + $0x580]]
    %s113 = sld [smem:[#allocation3 + $0x581]]
    %s114 = sld [smem:[#allocation3 + $0x600]]
    %s115 = sld [smem:[#allocation3 + $0x601]]
    %s116 = sld [smem:[#allocation3 + $0x680]]
    %s117 = sld [smem:[#allocation3 + $0x681]]
    %s118 = sld [smem:[#allocation3 + $0x700]]
    %s119 = sld [smem:[#allocation3 + $0x701]]
    %s120 = sld [smem:[#allocation5]]
    %s121 = sld [smem:[#allocation5 + $0x1]]
    %s122 = sld [smem:[#allocation5 + $0x2]]
    %s123 = sld [smem:[#allocation5 + $0x3]]
    %s124 = sld [smem:[#allocation5 + $0x4]]
    %s125 = sld [smem:[#allocation5 + $0x5]]
    %s126 = sld [smem:[#allocation5 + $0x6]]
    %s127 = sld [smem:[#allocation5 + $0x7]]
    %s128 = sld [smem:[#allocation5 + $0x8]]
    %s129 = sld [smem:[#allocation5 + $0x9]]
    %s130 = sld [smem:[#allocation5 + $0xa]]
    %s131 = sld [smem:[#allocation5 + $0xb]]
    %s132 = sld [smem:[#allocation5 + $0xc]]
    %s133 = sld [smem:[#allocation5 + $0xd]]
    %s134 = sld [smem:[#allocation5 + $0xe]]
    %s135 = sld [smem:[#allocation7]]
    %s136 = sld [smem:[#allocation7 + $0x1]]
    %s137 = sld [smem:[#allocation7 + $0x2]]
    %s138 = sld [smem:[#allocation7 + $0x3]]
    %s139 = sld [smem:[#allocation7 + $0x4]]
    %s140 = sld [smem:[#allocation7 + $0x5]]
    %s141 = sld [smem:[#allocation7 + $0x6]]
    %s142 = sld [smem:[#allocation7 + $0x7]]
    %s143 = sld [smem:[#allocation7 + $0x8]]
    %s144 = sld [smem:[#allocation7 + $0x9]]
    %s145 = sld [smem:[#allocation7 + $0xa]]
    %s146 = sld [smem:[#allocation7 + $0xb]]
    %s147 = sld [smem:[#allocation7 + $0xc]]
    %s148 = sld [smem:[#allocation7 + $0xd]]
    %s149 = sld [smem:[#allocation7 + $0xe]]
    %s150 = sld [smem:[#allocation7 + $0x80]]
    %s151 = sld [smem:[#allocation7 + $0x81]]
    %s152 = sld [smem:[#allocation7 + $0x82]]
    %s153 = sld [smem:[#allocation7 + $0x83]]
    %s154 = sld [smem:[#allocation7 + $0x84]]
    %s155 = sld [smem:[#allocation7 + $0x85]]
    %s156 = sld [smem:[#allocation7 + $0x86]]
    %s157 = sld [smem:[#allocation7 + $0x87]]
    %s158 = sld [smem:[#allocation7 + $0x88]]
    %s159 = sld [smem:[#allocation7 + $0x89]]
    %s160 = sld [smem:[#allocation7 + $0x8a]]
    %s161 = sld [smem:[#allocation7 + $0x8b]]
    %s162 = sld [smem:[#allocation7 + $0x8c]]
    %s163 = sld [smem:[#allocation7 + $0x8d]]
    %s164 = sld [smem:[#allocation7 + $0x8e]]
    %s165 = sld [smem:[#allocation7 + $0x100]]
    %s166 = sld [smem:[#allocation7 + $0x101]]
    %s167 = sld [smem:[#allocation7 + $0x102]]
    %s168 = sld [smem:[#allocation7 + $0x103]]
    %s169 = sld [smem:[#allocation7 + $0x104]]
    %s170 = sld [smem:[#allocation7 + $0x105]]
    %s171 = sld [smem:[#allocation7 + $0x106]]
    %s172 = sld [smem:[#allocation7 + $0x107]]
    %s173 = sld [smem:[#allocation7 + $0x108]]
    %s174 = sld [smem:[#allocation7 + $0x109]]
    %s175 = sld [smem:[#allocation7 + $0x10a]]
    %s176 = sld [smem:[#allocation7 + $0x10b]]
    %s177 = sld [smem:[#allocation7 + $0x10c]]
    %s178 = sld [smem:[#allocation7 + $0x10d]]
    %s179 = sld [smem:[#allocation7 + $0x10e]]
    %s180 = sld [smem:[#allocation7 + $0x180]]
    %s181 = sld [smem:[#allocation7 + $0x181]]
    %s182 = sld [smem:[#allocation7 + $0x182]]
    %s183 = sld [smem:[#allocation7 + $0x183]]
    %s184 = sld [smem:[#allocation7 + $0x184]]
    %s185 = sld [smem:[#allocation7 + $0x185]]
    %s186 = sld [smem:[#allocation7 + $0x186]]
    %s187 = sld [smem:[#allocation7 + $0x187]]
    %s188 = sld [smem:[#allocation7 + $0x188]]
    %s189 = sld [smem:[#allocation7 + $0x189]]
    %s190 = sld [smem:[#allocation7 + $0x18a]]
    %s191 = sld [smem:[#allocation7 + $0x18b]]
    %s192 = sld [smem:[#allocation7 + $0x18c]]
    %s193 = sld [smem:[#allocation7 + $0x18d]]
    %s194 = sld [smem:[#allocation7 + $0x18e]]
    %s195 = sld [smem:[#allocation7 + $0x200]]
    %s196 = sld [smem:[#allocation7 + $0x201]]
    %s197 = sld [smem:[#allocation7 + $0x202]]
    %s198 = sld [smem:[#allocation7 + $0x203]]
    %s199 = sld [smem:[#allocation7 + $0x204]]
    %s200 = sld [smem:[#allocation7 + $0x205]]
    %s201 = sld [smem:[#allocation7 + $0x206]]
    %s202 = sld [smem:[#allocation7 + $0x207]]
    %s203 = sld [smem:[#allocation7 + $0x208]]
    %s204 = sld [smem:[#allocation7 + $0x209]]
    %s205 = sld [smem:[#allocation7 + $0x20a]]
    %s206 = sld [smem:[#allocation7 + $0x20b]]
    %s207 = sld [smem:[#allocation7 + $0x20c]]
    %s208 = sld [smem:[#allocation7 + $0x20d]]
    %s209 = sld [smem:[#allocation7 + $0x20e]]
    %s210 = sld [smem:[#allocation7 + $0x280]]
    %s211 = sld [smem:[#allocation7 + $0x281]]
    %s212 = sld [smem:[#allocation7 + $0x282]]
    %s213 = sld [smem:[#allocation7 + $0x283]]
    %s214 = sld [smem:[#allocation7 + $0x284]]
    %s215 = sld [smem:[#allocation7 + $0x285]]
    %s216 = sld [smem:[#allocation7 + $0x286]]
    %s217 = sld [smem:[#allocation7 + $0x287]]
    %s218 = sld [smem:[#allocation7 + $0x288]]
    %s219 = sld [smem:[#allocation7 + $0x289]]
    %s220 = sld [smem:[#allocation7 + $0x28a]]
    %s221 = sld [smem:[#allocation7 + $0x28b]]
    %s222 = sld [smem:[#allocation7 + $0x28c]]
    %s223 = sld [smem:[#allocation7 + $0x28d]]
    %s224 = sld [smem:[#allocation7 + $0x28e]]
    %s225 = sld [smem:[#allocation7 + $0x300]]
    %s226 = sld [smem:[#allocation7 + $0x301]]
    %s227 = sld [smem:[#allocation7 + $0x302]]
    %s228 = sld [smem:[#allocation7 + $0x303]]
    %s229 = sld [smem:[#allocation7 + $0x304]]
    %s230 = sld [smem:[#allocation7 + $0x305]]
    %s231 = sld [smem:[#allocation7 + $0x306]]
    %s232 = sld [smem:[#allocation7 + $0x307]]
    %s233 = sld [smem:[#allocation7 + $0x308]]
    %s234 = sld [smem:[#allocation7 + $0x309]]
    %s235 = sld [smem:[#allocation7 + $0x30a]]
    %s236 = sld [smem:[#allocation7 + $0x30b]]
    %s237 = sld [smem:[#allocation7 + $0x30c]]
    %s238 = sld [smem:[#allocation7 + $0x30d]]
    %s239 = sld [smem:[#allocation7 + $0x30e]]
    %s240 = sld [smem:[#allocation7 + $0x380]]
    %s241 = sld [smem:[#allocation7 + $0x381]]
    %s242 = sld [smem:[#allocation7 + $0x382]]
    %s243 = sld [smem:[#allocation7 + $0x383]]
    %s244 = sld [smem:[#allocation7 + $0x384]]
    %s245 = sld [smem:[#allocation7 + $0x385]]
    %s246 = sld [smem:[#allocation7 + $0x386]]
    %s247 = sld [smem:[#allocation7 + $0x387]]
    %s248 = sld [smem:[#allocation7 + $0x388]]
    %s249 = sld [smem:[#allocation7 + $0x389]]
    %s250 = sld [smem:[#allocation7 + $0x38a]]
    %s251 = sld [smem:[#allocation7 + $0x38b]]
    %s252 = sld [smem:[#allocation7 + $0x38c]]
    %s253 = sld [smem:[#allocation7 + $0x38d]]
    %s254 = sld [smem:[#allocation7 + $0x38e]]
    %s255 = sld [smem:[#allocation7 + $0x400]]
    %s256 = sld [smem:[#allocation7 + $0x401]]
    %s257 = sld [smem:[#allocation7 + $0x402]]
    %s258 = sld [smem:[#allocation7 + $0x403]]
    %s259 = sld [smem:[#allocation7 + $0x404]]
    %s260 = sld [smem:[#allocation7 + $0x405]]
    %s261 = sld [smem:[#allocation7 + $0x406]]
    %s262 = sld [smem:[#allocation7 + $0x407]]
    %s263 = sld [smem:[#allocation7 + $0x408]]
    %s264 = sld [smem:[#allocation7 + $0x409]]
    %s265 = sld [smem:[#allocation7 + $0x40a]]
    %s266 = sld [smem:[#allocation7 + $0x40b]]
    %s267 = sld [smem:[#allocation7 + $0x40c]]
    %s268 = sld [smem:[#allocation7 + $0x40d]]
    %s269 = sld [smem:[#allocation7 + $0x40e]]
    %s270 = sld [smem:[#allocation7 + $0x480]]
    %s271 = sld [smem:[#allocation7 + $0x481]]
    %s272 = sld [smem:[#allocation7 + $0x482]]
    %s273 = sld [smem:[#allocation7 + $0x483]]
    %s274 = sld [smem:[#allocation7 + $0x484]]
    %s275 = sld [smem:[#allocation7 + $0x485]]
    %s276 = sld [smem:[#allocation7 + $0x486]]
    %s277 = sld [smem:[#allocation7 + $0x487]]
    %s278 = sld [smem:[#allocation7 + $0x488]]
    %s279 = sld [smem:[#allocation7 + $0x489]]
    %s280 = sld [smem:[#allocation7 + $0x48a]]
    %s281 = sld [smem:[#allocation7 + $0x48b]]
    %s282 = sld [smem:[#allocation7 + $0x48c]]
    %s283 = sld [smem:[#allocation7 + $0x48d]]
    %s284 = sld [smem:[#allocation7 + $0x48e]]
    %s285 = sld [smem:[#allocation7 + $0x500]]
    %s286 = sld [smem:[#allocation7 + $0x501]]
    %s287 = sld [smem:[#allocation7 + $0x502]]
    %s288 = sld [smem:[#allocation7 + $0x503]]
    %s289 = sld [smem:[#allocation7 + $0x504]]
    %s290 = sld [smem:[#allocation7 + $0x505]]
    %s291 = sld [smem:[#allocation7 + $0x506]]
    %s292 = sld [smem:[#allocation7 + $0x507]]
    %s293 = sld [smem:[#allocation7 + $0x508]]
    %s294 = sld [smem:[#allocation7 + $0x509]]
    %s295 = sld [smem:[#allocation7 + $0x50a]]
    %s296 = sld [smem:[#allocation7 + $0x50b]]
    %s297 = sld [smem:[#allocation7 + $0x50c]]
    %s298 = sld [smem:[#allocation7 + $0x50d]]
    %s299 = sld [smem:[#allocation7 + $0x50e]]
    %s300 = sld [smem:[#allocation7 + $0x580]]
    %s301 = sld [smem:[#allocation7 + $0x581]]
    %s302 = sld [smem:[#allocation7 + $0x582]]
    %s303 = sld [smem:[#allocation7 + $0x583]]
    %s304 = sld [smem:[#allocation7 + $0x584]]
    %s305 = sld [smem:[#allocation7 + $0x585]]
    %s306 = sld [smem:[#allocation7 + $0x586]]
    %s307 = sld [smem:[#allocation7 + $0x587]]
    %s308 = sld [smem:[#allocation7 + $0x588]]
    %s309 = sld [smem:[#allocation7 + $0x589]]
    %s310 = sld [smem:[#allocation7 + $0x58a]]
    %s311 = sld [smem:[#allocation7 + $0x58b]]
    %s312 = sld [smem:[#allocation7 + $0x58c]]
    %s313 = sld [smem:[#allocation7 + $0x58d]]
    %s314 = sld [smem:[#allocation7 + $0x58e]]
    %s315 = sld [smem:[#allocation7 + $0x600]]
    %s316 = sld [smem:[#allocation7 + $0x601]]
    %s317 = sld [smem:[#allocation7 + $0x602]]
    %s318 = sld [smem:[#allocation7 + $0x603]]
    %s319 = sld [smem:[#allocation7 + $0x604]]
    %s320 = sld [smem:[#allocation7 + $0x605]]
    %s321 = sld [smem:[#allocation7 + $0x606]]
    %s322 = sld [smem:[#allocation7 + $0x607]]
    %s323 = sld [smem:[#allocation7 + $0x608]]
    %s324 = sld [smem:[#allocation7 + $0x609]]
    %s325 = sld [smem:[#allocation7 + $0x60a]]
    %s326 = sld [smem:[#allocation7 + $0x60b]]
    %s327 = sld [smem:[#allocation7 + $0x60c]]
    %s328 = sld [smem:[#allocation7 + $0x60d]]
    %s329 = sld [smem:[#allocation7 + $0x60e]]
    %s330 = sld [smem:[#allocation7 + $0x680]]
    %s331 = sld [smem:[#allocation7 + $0x681]]
    %s332 = sld [smem:[#allocation7 + $0x682]]
    %s333 = sld [smem:[#allocation7 + $0x683]]
    %s334 = sld [smem:[#allocation7 + $0x684]]
    %s335 = sld [smem:[#allocation7 + $0x685]]
    %s336 = sld [smem:[#allocation7 + $0x686]]
    %s337 = sld [smem:[#allocation7 + $0x687]]
    %s338 = sld [smem:[#allocation7 + $0x688]]
    %s339 = sld [smem:[#allocation7 + $0x689]]
    %s340 = sld [smem:[#allocation7 + $0x68a]]
    %s341 = sld [smem:[#allocation7 + $0x68b]]
    %s342 = sld [smem:[#allocation7 + $0x68c]]
    %s343 = sld [smem:[#allocation7 + $0x68d]]
    %s344 = sld [smem:[#allocation7 + $0x68e]]
    %s345 = sld [smem:[#allocation7 + $0x700]]
    %s346 = sld [smem:[#allocation7 + $0x701]]
    %s347 = sld [smem:[#allocation7 + $0x702]]
    %s348 = sld [smem:[#allocation7 + $0x703]]
    %s349 = sld [smem:[#allocation7 + $0x704]]
    %s350 = sld [smem:[#allocation7 + $0x705]]
    %s351 = sld [smem:[#allocation7 + $0x706]]
    %s352 = sld [smem:[#allocation7 + $0x707]]
    %s353 = sld [smem:[#allocation7 + $0x708]]
    %s354 = sld [smem:[#allocation7 + $0x709]]
    %s355 = sld [smem:[#allocation7 + $0x70a]]
    %s356 = sld [smem:[#allocation7 + $0x70b]]
    %s357 = sld [smem:[#allocation7 + $0x70c]]
    %s358 = sld [smem:[#allocation7 + $0x70d]]
    %s359 = sld [smem:[#allocation7 + $0x70e]]
    %s360 = sld [smem:[#allocation8]]
    %s361 = sld [smem:[#allocation8 + $0x1]]
    %s362 = sld [smem:[#allocation8 + $0x2]]
    %s363 = sld [smem:[#allocation8 + $0x3]]
    %s364 = sld [smem:[#allocation8 + $0x4]]
    %s365 = sld [smem:[#allocation8 + $0x5]]
    %s366 = sld [smem:[#allocation8 + $0x6]]
    %s367 = sld [smem:[#allocation8 + $0x7]]
    %s368 = sld [smem:[#allocation8 + $0x8]]
    %s369 = sld [smem:[#allocation8 + $0x9]]
    %s370 = sld [smem:[#allocation8 + $0xa]]
    %s371 = sld [smem:[#allocation8 + $0xb]]
    %s372 = sld [smem:[#allocation8 + $0xc]]
    %s373 = sld [smem:[#allocation8 + $0xd]]
    %s374 = sld [smem:[#allocation8 + $0xe]]
    %s375 = sld [smem:[#allocation10]]
    %s376 = sld [smem:[#allocation10 + $0x1]]
    %s377 = sld [smem:[#allocation10 + $0x2]]
    %s378 = sld [smem:[#allocation10 + $0x3]]
    %s379 = sld [smem:[#allocation10 + $0x4]]
    %s380 = sld [smem:[#allocation10 + $0x5]]
    %s381 = sld [smem:[#allocation10 + $0x6]]
    %s382 = sld [smem:[#allocation10 + $0x7]]
    %s383 = sld [smem:[#allocation10 + $0x8]]
    %s384 = sld [smem:[#allocation10 + $0x9]]
    %s385 = sld [smem:[#allocation10 + $0xa]]
    %s386 = sld [smem:[#allocation10 + $0xb]]
    %s387 = sld [smem:[#allocation10 + $0xc]]
    %s388 = sld [smem:[#allocation10 + $0xd]]
    %s389 = sld [smem:[#allocation10 + $0xe]]
    %s390 = sld [smem:[#allocation2]]
    %v391 = vld [vmem:[%s0] sm:$0xff]
    %s392 = sadd.s32 0, 8
    %s393 = scalar_lea.vmem %s0, %s392
    %v394 = vld [vmem:[%s393] sm:$0xff]
    %v395 = vstv %s90
    %v396 = vmul.f32 %v391, %v395
    %v397 = vstv %s91
    %v398 = vmul.f32 %v394, %v397
    %v399 = vadd.f32 %v396, %v398
    %v400 = vstv %s120
    %v401 = vadd.f32 %v399, %v400
    %v402 = vmax.f32 %v401, 0.0
    %v403 = vstv %s92
    %v404 = vmul.f32 %v391, %v403
    %v405 = vstv %s93
    %v406 = vmul.f32 %v394, %v405
    %v407 = vadd.f32 %v404, %v406
    %v408 = vstv %s121
    %v409 = vadd.f32 %v407, %v408
    %v410 = vmax.f32 %v409, 0.0
    %v411 = vstv %s94
    %v412 = vmul.f32 %v391, %v411
    %v413 = vstv %s95
    %v414 = vmul.f32 %v394, %v413
    %v415 = vadd.f32 %v412, %v414
    %v416 = vstv %s122
    %v417 = vadd.f32 %v415, %v416
    %v418 = vmax.f32 %v417, 0.0
    %v419 = vstv %s96
    %v420 = vmul.f32 %v391, %v419
    %v421 = vstv %s97
    %v422 = vmul.f32 %v394, %v421
    %v423 = vadd.f32 %v420, %v422
    %v424 = vstv %s123
    %v425 = vadd.f32 %v423, %v424
    %v426 = vmax.f32 %v425, 0.0
    %v427 = vstv %s98
    %v428 = vmul.f32 %v391, %v427
    %v429 = vstv %s99
    %v430 = vmul.f32 %v394, %v429
    %v431 = vadd.f32 %v428, %v430
    %v432 = vstv %s124
    %v433 = vadd.f32 %v431, %v432
    %v434 = vmax.f32 %v433, 0.0
    %v435 = vstv %s100
    %v436 = vmul.f32 %v391, %v435
    %v437 = vstv %s101
    %v438 = vmul.f32 %v394, %v437
    %v439 = vadd.f32 %v436, %v438
    %v440 = vstv %s125
    %v441 = vadd.f32 %v439, %v440
    %v442 = vmax.f32 %v441, 0.0
    %v443 = vstv %s102
    %v444 = vmul.f32 %v391, %v443
    %v445 = vstv %s103
    %v446 = vmul.f32 %v394, %v445
    %v447 = vadd.f32 %v444, %v446
    %v448 = vstv %s126
    %v449 = vadd.f32 %v447, %v448
    %v450 = vmax.f32 %v449, 0.0
    %v451 = vstv %s104
    %v452 = vmul.f32 %v391, %v451
    %v453 = vstv %s105
    %v454 = vmul.f32 %v394, %v453
    %v455 = vadd.f32 %v452, %v454
    %v456 = vstv %s127
    %v457 = vadd.f32 %v455, %v456
    %v458 = vmax.f32 %v457, 0.0
    %v459 = vstv %s106
    %v460 = vmul.f32 %v391, %v459
    %v461 = vstv %s107
    %v462 = vmul.f32 %v394, %v461
    %v463 = vadd.f32 %v460, %v462
    %v464 = vstv %s128
    %v465 = vadd.f32 %v463, %v464
    %v466 = vmax.f32 %v465, 0.0
    %v467 = vstv %s108
    %v468 = vmul.f32 %v391, %v467
    %v469 = vstv %s109
    %v470 = vmul.f32 %v394, %v469
    %v471 = vadd.f32 %v468, %v470
    %v472 = vstv %s129
    %v473 = vadd.f32 %v471, %v472
    %v474 = vmax.f32 %v473, 0.0
    %v475 = vstv %s110
    %v476 = vmul.f32 %v391, %v475
    %v477 = vstv %s111
    %v478 = vmul.f32 %v394, %v477
    %v479 = vadd.f32 %v476, %v478
    %v480 = vstv %s130
    %v481 = vadd.f32 %v479, %v480
    %v482 = vmax.f32 %v481, 0.0
    %v483 = vstv %s112
    %v484 = vmul.f32 %v391, %v483
    %v485 = vstv %s113
    %v486 = vmul.f32 %v394, %v485
    %v487 = vadd.f32 %v484, %v486
    %v488 = vstv %s131
    %v489 = vadd.f32 %v487, %v488
    %v490 = vmax.f32 %v489, 0.0
    %v491 = vstv %s114
    %v492 = vmul.f32 %v391, %v491
    %v493 = vstv %s115
    %v494 = vmul.f32 %v394, %v493
    %v495 = vadd.f32 %v492, %v494
    %v496 = vstv %s132
    %v497 = vadd.f32 %v495, %v496
    %v498 = vmax.f32 %v497, 0.0
    %v499 = vstv %s116
    %v500 = vmul.f32 %v391, %v499
    %v501 = vstv %s117
    %v502 = vmul.f32 %v394, %v501
    %v503 = vadd.f32 %v500, %v502
    %v504 = vstv %s133
    %v505 = vadd.f32 %v503, %v504
    %v506 = vmax.f32 %v505, 0.0
    %v507 = vstv %s118
    %v508 = vmul.f32 %v391, %v507
    %v509 = vstv %s119
    %v510 = vmul.f32 %v394, %v509
    %v511 = vadd.f32 %v508, %v510
    %v512 = vstv %s134
    %v513 = vadd.f32 %v511, %v512
    %v514 = vmax.f32 %v513, 0.0
    %v515 = vstv %s135
    %v516 = vmul.f32 %v402, %v515
    %v517 = vstv %s136
    %v518 = vmul.f32 %v410, %v517
    %v519 = vadd.f32 %v516, %v518
    %v520 = vstv %s137
    %v521 = vmul.f32 %v418, %v520
    %v522 = vadd.f32 %v519, %v521
    %v523 = vstv %s138
    %v524 = vmul.f32 %v426, %v523
    %v525 = vadd.f32 %v522, %v524
    %v526 = vstv %s139
    %v527 = vmul.f32 %v434, %v526
    %v528 = vadd.f32 %v525, %v527
    %v529 = vstv %s140
    %v530 = vmul.f32 %v442, %v529
    %v531 = vadd.f32 %v528, %v530
    %v532 = vstv %s141
    %v533 = vmul.f32 %v450, %v532
    %v534 = vadd.f32 %v531, %v533
    %v535 = vstv %s142
    %v536 = vmul.f32 %v458, %v535
    %v537 = vadd.f32 %v534, %v536
    %v538 = vstv %s143
    %v539 = vmul.f32 %v466, %v538
    %v540 = vadd.f32 %v537, %v539
    %v541 = vstv %s144
    %v542 = vmul.f32 %v474, %v541
    %v543 = vadd.f32 %v540, %v542
    %v544 = vstv %s145
    %v545 = vmul.f32 %v482, %v544
    %v546 = vadd.f32 %v543, %v545
    %v547 = vstv %s146
    %v548 = vmul.f32 %v490, %v547
    %v549 = vadd.f32 %v546, %v548
    %v550 = vstv %s147
    %v551 = vmul.f32 %v498, %v550
    %v552 = vadd.f32 %v549, %v551
    %v553 = vstv %s148
    %v554 = vmul.f32 %v506, %v553
    %v555 = vadd.f32 %v552, %v554
    %v556 = vstv %s149
    %v557 = vmul.f32 %v514, %v556
    %v558 = vadd.f32 %v555, %v557
    %v559 = vstv %s360
    %v560 = vadd.f32 %v558, %v559
    %v561 = vmax.f32 %v560, 0.0
    %v562 = vstv %s375
    %v563 = vmul.f32 %v561, %v562
    %v564 = vstv %s150
    %v565 = vmul.f32 %v402, %v564
    %v566 = vstv %s151
    %v567 = vmul.f32 %v410, %v566
    %v568 = vadd.f32 %v565, %v567
    %v569 = vstv %s152
    %v570 = vmul.f32 %v418, %v569
    %v571 = vadd.f32 %v568, %v570
    %v572 = vstv %s153
    %v573 = vmul.f32 %v426, %v572
    %v574 = vadd.f32 %v571, %v573
    %v575 = vstv %s154
    %v576 = vmul.f32 %v434, %v575
    %v577 = vadd.f32 %v574, %v576
    %v578 = vstv %s155
    %v579 = vmul.f32 %v442, %v578
    %v580 = vadd.f32 %v577, %v579
    %v581 = vstv %s156
    %v582 = vmul.f32 %v450, %v581
    %v583 = vadd.f32 %v580, %v582
    %v584 = vstv %s157
    %v585 = vmul.f32 %v458, %v584
    %v586 = vadd.f32 %v583, %v585
    %v587 = vstv %s158
    %v588 = vmul.f32 %v466, %v587
    %v589 = vadd.f32 %v586, %v588
    %v590 = vstv %s159
    %v591 = vmul.f32 %v474, %v590
    %v592 = vadd.f32 %v589, %v591
    %v593 = vstv %s160
    %v594 = vmul.f32 %v482, %v593
    %v595 = vadd.f32 %v592, %v594
    %v596 = vstv %s161
    %v597 = vmul.f32 %v490, %v596
    %v598 = vadd.f32 %v595, %v597
    %v599 = vstv %s162
    %v600 = vmul.f32 %v498, %v599
    %v601 = vadd.f32 %v598, %v600
    %v602 = vstv %s163
    %v603 = vmul.f32 %v506, %v602
    %v604 = vadd.f32 %v601, %v603
    %v605 = vstv %s164
    %v606 = vmul.f32 %v514, %v605
    %v607 = vadd.f32 %v604, %v606
    %v608 = vstv %s361
    %v609 = vadd.f32 %v607, %v608
    %v610 = vmax.f32 %v609, 0.0
    %v611 = vstv %s376
    %v612 = vmul.f32 %v610, %v611
    %v613 = vadd.f32 %v563, %v612
    %v614 = vstv %s165
    %v615 = vmul.f32 %v402, %v614
    %v616 = vstv %s166
    %v617 = vmul.f32 %v410, %v616
    %v618 = vadd.f32 %v615, %v617
    %v619 = vstv %s167
    %v620 = vmul.f32 %v418, %v619
    %v621 = vadd.f32 %v618, %v620
    %v622 = vstv %s168
    %v623 = vmul.f32 %v426, %v622
    %v624 = vadd.f32 %v621, %v623
    %v625 = vstv %s169
    %v626 = vmul.f32 %v434, %v625
    %v627 = vadd.f32 %v624, %v626
    %v628 = vstv %s170
    %v629 = vmul.f32 %v442, %v628
    %v630 = vadd.f32 %v627, %v629
    %v631 = vstv %s171
    %v632 = vmul.f32 %v450, %v631
    %v633 = vadd.f32 %v630, %v632
    %v634 = vstv %s172
    %v635 = vmul.f32 %v458, %v634
    %v636 = vadd.f32 %v633, %v635
    %v637 = vstv %s173
    %v638 = vmul.f32 %v466, %v637
    %v639 = vadd.f32 %v636, %v638
    %v640 = vstv %s174
    %v641 = vmul.f32 %v474, %v640
    %v642 = vadd.f32 %v639, %v641
    %v643 = vstv %s175
    %v644 = vmul.f32 %v482, %v643
    %v645 = vadd.f32 %v642, %v644
    %v646 = vstv %s176
    %v647 = vmul.f32 %v490, %v646
    %v648 = vadd.f32 %v645, %v647
    %v649 = vstv %s177
    %v650 = vmul.f32 %v498, %v649
    %v651 = vadd.f32 %v648, %v650
    %v652 = vstv %s178
    %v653 = vmul.f32 %v506, %v652
    %v654 = vadd.f32 %v651, %v653
    %v655 = vstv %s179
    %v656 = vmul.f32 %v514, %v655
    %v657 = vadd.f32 %v654, %v656
    %v658 = vstv %s362
    %v659 = vadd.f32 %v657, %v658
    %v660 = vmax.f32 %v659, 0.0
    %v661 = vstv %s377
    %v662 = vmul.f32 %v660, %v661
    %v663 = vadd.f32 %v613, %v662
    %v664 = vstv %s180
    %v665 = vmul.f32 %v402, %v664
    %v666 = vstv %s181
    %v667 = vmul.f32 %v410, %v666
    %v668 = vadd.f32 %v665, %v667
    %v669 = vstv %s182
    %v670 = vmul.f32 %v418, %v669
    %v671 = vadd.f32 %v668, %v670
    %v672 = vstv %s183
    %v673 = vmul.f32 %v426, %v672
    %v674 = vadd.f32 %v671, %v673
    %v675 = vstv %s184
    %v676 = vmul.f32 %v434, %v675
    %v677 = vadd.f32 %v674, %v676
    %v678 = vstv %s185
    %v679 = vmul.f32 %v442, %v678
    %v680 = vadd.f32 %v677, %v679
    %v681 = vstv %s186
    %v682 = vmul.f32 %v450, %v681
    %v683 = vadd.f32 %v680, %v682
    %v684 = vstv %s187
    %v685 = vmul.f32 %v458, %v684
    %v686 = vadd.f32 %v683, %v685
    %v687 = vstv %s188
    %v688 = vmul.f32 %v466, %v687
    %v689 = vadd.f32 %v686, %v688
    %v690 = vstv %s189
    %v691 = vmul.f32 %v474, %v690
    %v692 = vadd.f32 %v689, %v691
    %v693 = vstv %s190
    %v694 = vmul.f32 %v482, %v693
    %v695 = vadd.f32 %v692, %v694
    %v696 = vstv %s191
    %v697 = vmul.f32 %v490, %v696
    %v698 = vadd.f32 %v695, %v697
    %v699 = vstv %s192
    %v700 = vmul.f32 %v498, %v699
    %v701 = vadd.f32 %v698, %v700
    %v702 = vstv %s193
    %v703 = vmul.f32 %v506, %v702
    %v704 = vadd.f32 %v701, %v703
    %v705 = vstv %s194
    %v706 = vmul.f32 %v514, %v705
    %v707 = vadd.f32 %v704, %v706
    %v708 = vstv %s363
    %v709 = vadd.f32 %v707, %v708
    %v710 = vmax.f32 %v709, 0.0
    %v711 = vstv %s378
    %v712 = vmul.f32 %v710, %v711
    %v713 = vadd.f32 %v663, %v712
    %v714 = vstv %s195
    %v715 = vmul.f32 %v402, %v714
    %v716 = vstv %s196
    %v717 = vmul.f32 %v410, %v716
    %v718 = vadd.f32 %v715, %v717
    %v719 = vstv %s197
    %v720 = vmul.f32 %v418, %v719
    %v721 = vadd.f32 %v718, %v720
    %v722 = vstv %s198
    %v723 = vmul.f32 %v426, %v722
    %v724 = vadd.f32 %v721, %v723
    %v725 = vstv %s199
    %v726 = vmul.f32 %v434, %v725
    %v727 = vadd.f32 %v724, %v726
    %v728 = vstv %s200
    %v729 = vmul.f32 %v442, %v728
    %v730 = vadd.f32 %v727, %v729
    %v731 = vstv %s201
    %v732 = vmul.f32 %v450, %v731
    %v733 = vadd.f32 %v730, %v732
    %v734 = vstv %s202
    %v735 = vmul.f32 %v458, %v734
    %v736 = vadd.f32 %v733, %v735
    %v737 = vstv %s203
    %v738 = vmul.f32 %v466, %v737
    %v739 = vadd.f32 %v736, %v738
    %v740 = vstv %s204
    %v741 = vmul.f32 %v474, %v740
    %v742 = vadd.f32 %v739, %v741
    %v743 = vstv %s205
    %v744 = vmul.f32 %v482, %v743
    %v745 = vadd.f32 %v742, %v744
    %v746 = vstv %s206
    %v747 = vmul.f32 %v490, %v746
    %v748 = vadd.f32 %v745, %v747
    %v749 = vstv %s207
    %v750 = vmul.f32 %v498, %v749
    %v751 = vadd.f32 %v748, %v750
    %v752 = vstv %s208
    %v753 = vmul.f32 %v506, %v752
    %v754 = vadd.f32 %v751, %v753
    %v755 = vstv %s209
    %v756 = vmul.f32 %v514, %v755
    %v757 = vadd.f32 %v754, %v756
    %v758 = vstv %s364
    %v759 = vadd.f32 %v757, %v758
    %v760 = vmax.f32 %v759, 0.0
    %v761 = vstv %s379
    %v762 = vmul.f32 %v760, %v761
    %v763 = vadd.f32 %v713, %v762
    %v764 = vstv %s210
    %v765 = vmul.f32 %v402, %v764
    %v766 = vstv %s211
    %v767 = vmul.f32 %v410, %v766
    %v768 = vadd.f32 %v765, %v767
    %v769 = vstv %s212
    %v770 = vmul.f32 %v418, %v769
    %v771 = vadd.f32 %v768, %v770
    %v772 = vstv %s213
    %v773 = vmul.f32 %v426, %v772
    %v774 = vadd.f32 %v771, %v773
    %v775 = vstv %s214
    %v776 = vmul.f32 %v434, %v775
    %v777 = vadd.f32 %v774, %v776
    %v778 = vstv %s215
    %v779 = vmul.f32 %v442, %v778
    %v780 = vadd.f32 %v777, %v779
    %v781 = vstv %s216
    %v782 = vmul.f32 %v450, %v781
    %v783 = vadd.f32 %v780, %v782
    %v784 = vstv %s217
    %v785 = vmul.f32 %v458, %v784
    %v786 = vadd.f32 %v783, %v785
    %v787 = vstv %s218
    %v788 = vmul.f32 %v466, %v787
    %v789 = vadd.f32 %v786, %v788
    %v790 = vstv %s219
    %v791 = vmul.f32 %v474, %v790
    %v792 = vadd.f32 %v789, %v791
    %v793 = vstv %s220
    %v794 = vmul.f32 %v482, %v793
    %v795 = vadd.f32 %v792, %v794
    %v796 = vstv %s221
    %v797 = vmul.f32 %v490, %v796
    %v798 = vadd.f32 %v795, %v797
    %v799 = vstv %s222
    %v800 = vmul.f32 %v498, %v799
    %v801 = vadd.f32 %v798, %v800
    %v802 = vstv %s223
    %v803 = vmul.f32 %v506, %v802
    %v804 = vadd.f32 %v801, %v803
    %v805 = vstv %s224
    %v806 = vmul.f32 %v514, %v805
    %v807 = vadd.f32 %v804, %v806
    %v808 = vstv %s365
    %v809 = vadd.f32 %v807, %v808
    %v810 = vmax.f32 %v809, 0.0
    %v811 = vstv %s380
    %v812 = vmul.f32 %v810, %v811
    %v813 = vadd.f32 %v763, %v812
    %v814 = vstv %s225
    %v815 = vmul.f32 %v402, %v814
    %v816 = vstv %s226
    %v817 = vmul.f32 %v410, %v816
    %v818 = vadd.f32 %v815, %v817
    %v819 = vstv %s227
    %v820 = vmul.f32 %v418, %v819
    %v821 = vadd.f32 %v818, %v820
    %v822 = vstv %s228
    %v823 = vmul.f32 %v426, %v822
    %v824 = vadd.f32 %v821, %v823
    %v825 = vstv %s229
    %v826 = vmul.f32 %v434, %v825
    %v827 = vadd.f32 %v824, %v826
    %v828 = vstv %s230
    %v829 = vmul.f32 %v442, %v828
    %v830 = vadd.f32 %v827, %v829
    %v831 = vstv %s231
    %v832 = vmul.f32 %v450, %v831
    %v833 = vadd.f32 %v830, %v832
    %v834 = vstv %s232
    %v835 = vmul.f32 %v458, %v834
    %v836 = vadd.f32 %v833, %v835
    %v837 = vstv %s233
    %v838 = vmul.f32 %v466, %v837
    %v839 = vadd.f32 %v836, %v838
    %v840 = vstv %s234
    %v841 = vmul.f32 %v474, %v840
    %v842 = vadd.f32 %v839, %v841
    %v843 = vstv %s235
    %v844 = vmul.f32 %v482, %v843
    %v845 = vadd.f32 %v842, %v844
    %v846 = vstv %s236
    %v847 = vmul.f32 %v490, %v846
    %v848 = vadd.f32 %v845, %v847
    %v849 = vstv %s237
    %v850 = vmul.f32 %v498, %v849
    %v851 = vadd.f32 %v848, %v850
    %v852 = vstv %s238
    %v853 = vmul.f32 %v506, %v852
    %v854 = vadd.f32 %v851, %v853
    %v855 = vstv %s239
    %v856 = vmul.f32 %v514, %v855
    %v857 = vadd.f32 %v854, %v856
    %v858 = vstv %s366
    %v859 = vadd.f32 %v857, %v858
    %v860 = vmax.f32 %v859, 0.0
    %v861 = vstv %s381
    %v862 = vmul.f32 %v860, %v861
    %v863 = vadd.f32 %v813, %v862
    %v864 = vstv %s240
    %v865 = vmul.f32 %v402, %v864
    %v866 = vstv %s241
    %v867 = vmul.f32 %v410, %v866
    %v868 = vadd.f32 %v865, %v867
    %v869 = vstv %s242
    %v870 = vmul.f32 %v418, %v869
    %v871 = vadd.f32 %v868, %v870
    %v872 = vstv %s243
    %v873 = vmul.f32 %v426, %v872
    %v874 = vadd.f32 %v871, %v873
    %v875 = vstv %s244
    %v876 = vmul.f32 %v434, %v875
    %v877 = vadd.f32 %v874, %v876
    %v878 = vstv %s245
    %v879 = vmul.f32 %v442, %v878
    %v880 = vadd.f32 %v877, %v879
    %v881 = vstv %s246
    %v882 = vmul.f32 %v450, %v881
    %v883 = vadd.f32 %v880, %v882
    %v884 = vstv %s247
    %v885 = vmul.f32 %v458, %v884
    %v886 = vadd.f32 %v883, %v885
    %v887 = vstv %s248
    %v888 = vmul.f32 %v466, %v887
    %v889 = vadd.f32 %v886, %v888
    %v890 = vstv %s249
    %v891 = vmul.f32 %v474, %v890
    %v892 = vadd.f32 %v889, %v891
    %v893 = vstv %s250
    %v894 = vmul.f32 %v482, %v893
    %v895 = vadd.f32 %v892, %v894
    %v896 = vstv %s251
    %v897 = vmul.f32 %v490, %v896
    %v898 = vadd.f32 %v895, %v897
    %v899 = vstv %s252
    %v900 = vmul.f32 %v498, %v899
    %v901 = vadd.f32 %v898, %v900
    %v902 = vstv %s253
    %v903 = vmul.f32 %v506, %v902
    %v904 = vadd.f32 %v901, %v903
    %v905 = vstv %s254
    %v906 = vmul.f32 %v514, %v905
    %v907 = vadd.f32 %v904, %v906
    %v908 = vstv %s367
    %v909 = vadd.f32 %v907, %v908
    %v910 = vmax.f32 %v909, 0.0
    %v911 = vstv %s382
    %v912 = vmul.f32 %v910, %v911
    %v913 = vadd.f32 %v863, %v912
    %v914 = vstv %s255
    %v915 = vmul.f32 %v402, %v914
    %v916 = vstv %s256
    %v917 = vmul.f32 %v410, %v916
    %v918 = vadd.f32 %v915, %v917
    %v919 = vstv %s257
    %v920 = vmul.f32 %v418, %v919
    %v921 = vadd.f32 %v918, %v920
    %v922 = vstv %s258
    %v923 = vmul.f32 %v426, %v922
    %v924 = vadd.f32 %v921, %v923
    %v925 = vstv %s259
    %v926 = vmul.f32 %v434, %v925
    %v927 = vadd.f32 %v924, %v926
    %v928 = vstv %s260
    %v929 = vmul.f32 %v442, %v928
    %v930 = vadd.f32 %v927, %v929
    %v931 = vstv %s261
    %v932 = vmul.f32 %v450, %v931
    %v933 = vadd.f32 %v930, %v932
    %v934 = vstv %s262
    %v935 = vmul.f32 %v458, %v934
    %v936 = vadd.f32 %v933, %v935
    %v937 = vstv %s263
    %v938 = vmul.f32 %v466, %v937
    %v939 = vadd.f32 %v936, %v938
    %v940 = vstv %s264
    %v941 = vmul.f32 %v474, %v940
    %v942 = vadd.f32 %v939, %v941
    %v943 = vstv %s265
    %v944 = vmul.f32 %v482, %v943
    %v945 = vadd.f32 %v942, %v944
    %v946 = vstv %s266
    %v947 = vmul.f32 %v490, %v946
    %v948 = vadd.f32 %v945, %v947
    %v949 = vstv %s267
    %v950 = vmul.f32 %v498, %v949
    %v951 = vadd.f32 %v948, %v950
    %v952 = vstv %s268
    %v953 = vmul.f32 %v506, %v952
    %v954 = vadd.f32 %v951, %v953
    %v955 = vstv %s269
    %v956 = vmul.f32 %v514, %v955
    %v957 = vadd.f32 %v954, %v956
    %v958 = vstv %s368
    %v959 = vadd.f32 %v957, %v958
    %v960 = vmax.f32 %v959, 0.0
    %v961 = vstv %s383
    %v962 = vmul.f32 %v960, %v961
    %v963 = vadd.f32 %v913, %v962
    %v964 = vstv %s270
    %v965 = vmul.f32 %v402, %v964
    %v966 = vstv %s271
    %v967 = vmul.f32 %v410, %v966
    %v968 = vadd.f32 %v965, %v967
    %v969 = vstv %s272
    %v970 = vmul.f32 %v418, %v969
    %v971 = vadd.f32 %v968, %v970
    %v972 = vstv %s273
    %v973 = vmul.f32 %v426, %v972
    %v974 = vadd.f32 %v971, %v973
    %v975 = vstv %s274
    %v976 = vmul.f32 %v434, %v975
    %v977 = vadd.f32 %v974, %v976
    %v978 = vstv %s275
    %v979 = vmul.f32 %v442, %v978
    %v980 = vadd.f32 %v977, %v979
    %v981 = vstv %s276
    %v982 = vmul.f32 %v450, %v981
    %v983 = vadd.f32 %v980, %v982
    %v984 = vstv %s277
    %v985 = vmul.f32 %v458, %v984
    %v986 = vadd.f32 %v983, %v985
    %v987 = vstv %s278
    %v988 = vmul.f32 %v466, %v987
    %v989 = vadd.f32 %v986, %v988
    %v990 = vstv %s279
    %v991 = vmul.f32 %v474, %v990
    %v992 = vadd.f32 %v989, %v991
    %v993 = vstv %s280
    %v994 = vmul.f32 %v482, %v993
    %v995 = vadd.f32 %v992, %v994
    %v996 = vstv %s281
    %v997 = vmul.f32 %v490, %v996
    %v998 = vadd.f32 %v995, %v997
    %v999 = vstv %s282
    %v1000 = vmul.f32 %v498, %v999
    %v1001 = vadd.f32 %v998, %v1000
    %v1002 = vstv %s283
    %v1003 = vmul.f32 %v506, %v1002
    %v1004 = vadd.f32 %v1001, %v1003
    %v1005 = vstv %s284
    %v1006 = vmul.f32 %v514, %v1005
    %v1007 = vadd.f32 %v1004, %v1006
    %v1008 = vstv %s369
    %v1009 = vadd.f32 %v1007, %v1008
    %v1010 = vmax.f32 %v1009, 0.0
    %v1011 = vstv %s384
    %v1012 = vmul.f32 %v1010, %v1011
    %v1013 = vadd.f32 %v963, %v1012
    %v1014 = vstv %s285
    %v1015 = vmul.f32 %v402, %v1014
    %v1016 = vstv %s286
    %v1017 = vmul.f32 %v410, %v1016
    %v1018 = vadd.f32 %v1015, %v1017
    %v1019 = vstv %s287
    %v1020 = vmul.f32 %v418, %v1019
    %v1021 = vadd.f32 %v1018, %v1020
    %v1022 = vstv %s288
    %v1023 = vmul.f32 %v426, %v1022
    %v1024 = vadd.f32 %v1021, %v1023
    %v1025 = vstv %s289
    %v1026 = vmul.f32 %v434, %v1025
    %v1027 = vadd.f32 %v1024, %v1026
    %v1028 = vstv %s290
    %v1029 = vmul.f32 %v442, %v1028
    %v1030 = vadd.f32 %v1027, %v1029
    %v1031 = vstv %s291
    %v1032 = vmul.f32 %v450, %v1031
    %v1033 = vadd.f32 %v1030, %v1032
    %v1034 = vstv %s292
    %v1035 = vmul.f32 %v458, %v1034
    %v1036 = vadd.f32 %v1033, %v1035
    %v1037 = vstv %s293
    %v1038 = vmul.f32 %v466, %v1037
    %v1039 = vadd.f32 %v1036, %v1038
    %v1040 = vstv %s294
    %v1041 = vmul.f32 %v474, %v1040
    %v1042 = vadd.f32 %v1039, %v1041
    %v1043 = vstv %s295
    %v1044 = vmul.f32 %v482, %v1043
    %v1045 = vadd.f32 %v1042, %v1044
    %v1046 = vstv %s296
    %v1047 = vmul.f32 %v490, %v1046
    %v1048 = vadd.f32 %v1045, %v1047
    %v1049 = vstv %s297
    %v1050 = vmul.f32 %v498, %v1049
    %v1051 = vadd.f32 %v1048, %v1050
    %v1052 = vstv %s298
    %v1053 = vmul.f32 %v506, %v1052
    %v1054 = vadd.f32 %v1051, %v1053
    %v1055 = vstv %s299
    %v1056 = vmul.f32 %v514, %v1055
    %v1057 = vadd.f32 %v1054, %v1056
    %v1058 = vstv %s370
    %v1059 = vadd.f32 %v1057, %v1058
    %v1060 = vmax.f32 %v1059, 0.0
    %v1061 = vstv %s385
    %v1062 = vmul.f32 %v1060, %v1061
    %v1063 = vadd.f32 %v1013, %v1062
    %v1064 = vstv %s300
    %v1065 = vmul.f32 %v402, %v1064
    %v1066 = vstv %s301
    %v1067 = vmul.f32 %v410, %v1066
    %v1068 = vadd.f32 %v1065, %v1067
    %v1069 = vstv %s302
    %v1070 = vmul.f32 %v418, %v1069
    %v1071 = vadd.f32 %v1068, %v1070
    %v1072 = vstv %s303
    %v1073 = vmul.f32 %v426, %v1072
    %v1074 = vadd.f32 %v1071, %v1073
    %v1075 = vstv %s304
    %v1076 = vmul.f32 %v434, %v1075
    %v1077 = vadd.f32 %v1074, %v1076
    %v1078 = vstv %s305
    %v1079 = vmul.f32 %v442, %v1078
    %v1080 = vadd.f32 %v1077, %v1079
    %v1081 = vstv %s306
    %v1082 = vmul.f32 %v450, %v1081
    %v1083 = vadd.f32 %v1080, %v1082
    %v1084 = vstv %s307
    %v1085 = vmul.f32 %v458, %v1084
    %v1086 = vadd.f32 %v1083, %v1085
    %v1087 = vstv %s308
    %v1088 = vmul.f32 %v466, %v1087
    %v1089 = vadd.f32 %v1086, %v1088
    %v1090 = vstv %s309
    %v1091 = vmul.f32 %v474, %v1090
    %v1092 = vadd.f32 %v1089, %v1091
    %v1093 = vstv %s310
    %v1094 = vmul.f32 %v482, %v1093
    %v1095 = vadd.f32 %v1092, %v1094
    %v1096 = vstv %s311
    %v1097 = vmul.f32 %v490, %v1096
    %v1098 = vadd.f32 %v1095, %v1097
    %v1099 = vstv %s312
    %v1100 = vmul.f32 %v498, %v1099
    %v1101 = vadd.f32 %v1098, %v1100
    %v1102 = vstv %s313
    %v1103 = vmul.f32 %v506, %v1102
    %v1104 = vadd.f32 %v1101, %v1103
    %v1105 = vstv %s314
    %v1106 = vmul.f32 %v514, %v1105
    %v1107 = vadd.f32 %v1104, %v1106
    %v1108 = vstv %s371
    %v1109 = vadd.f32 %v1107, %v1108
    %v1110 = vmax.f32 %v1109, 0.0
    %v1111 = vstv %s386
    %v1112 = vmul.f32 %v1110, %v1111
    %v1113 = vadd.f32 %v1063, %v1112
    %v1114 = vstv %s315
    %v1115 = vmul.f32 %v402, %v1114
    %v1116 = vstv %s316
    %v1117 = vmul.f32 %v410, %v1116
    %v1118 = vadd.f32 %v1115, %v1117
    %v1119 = vstv %s317
    %v1120 = vmul.f32 %v418, %v1119
    %v1121 = vadd.f32 %v1118, %v1120
    %v1122 = vstv %s318
    %v1123 = vmul.f32 %v426, %v1122
    %v1124 = vadd.f32 %v1121, %v1123
    %v1125 = vstv %s319
    %v1126 = vmul.f32 %v434, %v1125
    %v1127 = vadd.f32 %v1124, %v1126
    %v1128 = vstv %s320
    %v1129 = vmul.f32 %v442, %v1128
    %v1130 = vadd.f32 %v1127, %v1129
    %v1131 = vstv %s321
    %v1132 = vmul.f32 %v450, %v1131
    %v1133 = vadd.f32 %v1130, %v1132
    %v1134 = vstv %s322
    %v1135 = vmul.f32 %v458, %v1134
    %v1136 = vadd.f32 %v1133, %v1135
    %v1137 = vstv %s323
    %v1138 = vmul.f32 %v466, %v1137
    %v1139 = vadd.f32 %v1136, %v1138
    %v1140 = vstv %s324
    %v1141 = vmul.f32 %v474, %v1140
    %v1142 = vadd.f32 %v1139, %v1141
    %v1143 = vstv %s325
    %v1144 = vmul.f32 %v482, %v1143
    %v1145 = vadd.f32 %v1142, %v1144
    %v1146 = vstv %s326
    %v1147 = vmul.f32 %v490, %v1146
    %v1148 = vadd.f32 %v1145, %v1147
    %v1149 = vstv %s327
    %v1150 = vmul.f32 %v498, %v1149
    %v1151 = vadd.f32 %v1148, %v1150
    %v1152 = vstv %s328
    %v1153 = vmul.f32 %v506, %v1152
    %v1154 = vadd.f32 %v1151, %v1153
    %v1155 = vstv %s329
    %v1156 = vmul.f32 %v514, %v1155
    %v1157 = vadd.f32 %v1154, %v1156
    %v1158 = vstv %s372
    %v1159 = vadd.f32 %v1157, %v1158
    %v1160 = vmax.f32 %v1159, 0.0
    %v1161 = vstv %s387
    %v1162 = vmul.f32 %v1160, %v1161
    %v1163 = vadd.f32 %v1113, %v1162
    %v1164 = vstv %s330
    %v1165 = vmul.f32 %v402, %v1164
    %v1166 = vstv %s331
    %v1167 = vmul.f32 %v410, %v1166
    %v1168 = vadd.f32 %v1165, %v1167
    %v1169 = vstv %s332
    %v1170 = vmul.f32 %v418, %v1169
    %v1171 = vadd.f32 %v1168, %v1170
    %v1172 = vstv %s333
    %v1173 = vmul.f32 %v426, %v1172
    %v1174 = vadd.f32 %v1171, %v1173
    %v1175 = vstv %s334
    %v1176 = vmul.f32 %v434, %v1175
    %v1177 = vadd.f32 %v1174, %v1176
    %v1178 = vstv %s335
    %v1179 = vmul.f32 %v442, %v1178
    %v1180 = vadd.f32 %v1177, %v1179
    %v1181 = vstv %s336
    %v1182 = vmul.f32 %v450, %v1181
    %v1183 = vadd.f32 %v1180, %v1182
    %v1184 = vstv %s337
    %v1185 = vmul.f32 %v458, %v1184
    %v1186 = vadd.f32 %v1183, %v1185
    %v1187 = vstv %s338
    %v1188 = vmul.f32 %v466, %v1187
    %v1189 = vadd.f32 %v1186, %v1188
    %v1190 = vstv %s339
    %v1191 = vmul.f32 %v474, %v1190
    %v1192 = vadd.f32 %v1189, %v1191
    %v1193 = vstv %s340
    %v1194 = vmul.f32 %v482, %v1193
    %v1195 = vadd.f32 %v1192, %v1194
    %v1196 = vstv %s341
    %v1197 = vmul.f32 %v490, %v1196
    %v1198 = vadd.f32 %v1195, %v1197
    %v1199 = vstv %s342
    %v1200 = vmul.f32 %v498, %v1199
    %v1201 = vadd.f32 %v1198, %v1200
    %v1202 = vstv %s343
    %v1203 = vmul.f32 %v506, %v1202
    %v1204 = vadd.f32 %v1201, %v1203
    %v1205 = vstv %s344
    %v1206 = vmul.f32 %v514, %v1205
    %v1207 = vadd.f32 %v1204, %v1206
    %v1208 = vstv %s373
    %v1209 = vadd.f32 %v1207, %v1208
    %v1210 = vmax.f32 %v1209, 0.0
    %v1211 = vstv %s388
    %v1212 = vmul.f32 %v1210, %v1211
    %v1213 = vadd.f32 %v1163, %v1212
    %v1214 = vstv %s345
    %v1215 = vmul.f32 %v402, %v1214
    %v1216 = vstv %s346
    %v1217 = vmul.f32 %v410, %v1216
    %v1218 = vadd.f32 %v1215, %v1217
    %v1219 = vstv %s347
    %v1220 = vmul.f32 %v418, %v1219
    %v1221 = vadd.f32 %v1218, %v1220
    %v1222 = vstv %s348
    %v1223 = vmul.f32 %v426, %v1222
    %v1224 = vadd.f32 %v1221, %v1223
    %v1225 = vstv %s349
    %v1226 = vmul.f32 %v434, %v1225
    %v1227 = vadd.f32 %v1224, %v1226
    %v1228 = vstv %s350
    %v1229 = vmul.f32 %v442, %v1228
    %v1230 = vadd.f32 %v1227, %v1229
    %v1231 = vstv %s351
    %v1232 = vmul.f32 %v450, %v1231
    %v1233 = vadd.f32 %v1230, %v1232
    %v1234 = vstv %s352
    %v1235 = vmul.f32 %v458, %v1234
    %v1236 = vadd.f32 %v1233, %v1235
    %v1237 = vstv %s353
    %v1238 = vmul.f32 %v466, %v1237
    %v1239 = vadd.f32 %v1236, %v1238
    %v1240 = vstv %s354
    %v1241 = vmul.f32 %v474, %v1240
    %v1242 = vadd.f32 %v1239, %v1241
    %v1243 = vstv %s355
    %v1244 = vmul.f32 %v482, %v1243
    %v1245 = vadd.f32 %v1242, %v1244
    %v1246 = vstv %s356
    %v1247 = vmul.f32 %v490, %v1246
    %v1248 = vadd.f32 %v1245, %v1247
    %v1249 = vstv %s357
    %v1250 = vmul.f32 %v498, %v1249
    %v1251 = vadd.f32 %v1248, %v1250
    %v1252 = vstv %s358
    %v1253 = vmul.f32 %v506, %v1252
    %v1254 = vadd.f32 %v1251, %v1253
    %v1255 = vstv %s359
    %v1256 = vmul.f32 %v514, %v1255
    %v1257 = vadd.f32 %v1254, %v1256
    %v1258 = vstv %s374
    %v1259 = vadd.f32 %v1257, %v1258
    %v1260 = vmax.f32 %v1259, 0.0
    %v1261 = vstv %s389
    %v1262 = vmul.f32 %v1260, %v1261
    %v1263 = vadd.f32 %v1213, %v1262
    %v1264 = vstv %s390
    %v1265 = vadd.f32 %v1263, %v1264
    %v1266 = vmax.f32 %v1265, 0.0
    %1267 = vst [vmem:[%s7] sm:$0xff] %v1266
    // Predicated region
    $region50: #{ta130_fuel_nn.1} parent=1 // pred_check
      _
    $region51: #{ta130_fuel_nn.1} parent=1 // pred_check_branch
      %1269 = sbr.rel (0) target = $region53
    $region52: #{ta130_fuel_nn.1} parent=1 // pred_region
      _
    $region53: #{ta130_fuel_nn.1} parent=1 // pred_fallthru
      _
    // Predicated region
    $region54: #{ta130_fuel_nn.1} parent=1 // pred_check
      _
    $region55: #{ta130_fuel_nn.1} parent=1 // pred_check_branch
      %1271 = sbr.rel (0) target = $region57
    $region56: #{ta130_fuel_nn.1} parent=1 // pred_region
      _
    $region57: #{ta130_fuel_nn.1} parent=1 // pred_fallthru
      _
    %1272 = vsyncpa [#allocation4], 1
    %1273 = vsyncpa [#allocation6], 1
    %1274 = vsyncpa [#allocation9], 1

</llo_original>
